<compile_context>
chip_gen: v6e
topology: v6e:2x2x1
jax: 0.10.0
libtpu: 0.0.40
codegen_flags: <defaults>
</compile_context>

<pallas_src>
import functools

import jax
import jax.numpy as jnp
from jax.experimental import pallas as pl
from jax.experimental.pallas import tpu as pltpu


def _spatial_attn_kernel(w_ref, b_ref, x_ref, col_ref, o_ref, m_acc, s_acc,
                         *, H, W, k, C, ct):
    # w_ref   : (2*k*k,) f32 SMEM   conv weight, layout [in_ch, ky, kx]
    # b_ref   : (1,)     f32 SMEM   conv bias
    # x_ref   : (ct, H*W)  VMEM     one channel tile of one batch element
    # col_ref : (1, H*W) i32 VMEM   column index (i mod W) of each pixel
    # o_ref   : (1, H*W)   VMEM     one batch element of the flattened output
    # m_acc   : (1, H*W) f32 VMEM   running channel max
    # s_acc   : (1, H*W) f32 VMEM   running channel sum (f32 accumulation)
    HW = H * W
    p = k // 2

    c_step = pl.program_id(1)
    n_c = pl.num_programs(1)

    @pl.when(c_step == 0)
    def _init():
        m_acc[...] = jnp.full(m_acc.shape, -jnp.inf, dtype=m_acc.dtype)
        s_acc[...] = jnp.zeros(s_acc.shape, dtype=s_acc.dtype)

    # ---- streaming phase: one pass over the tile feeds both reductions ----
    x = x_ref[...]                                            # (ct, HW)
    if C % ct != 0:
        # Ragged last channel tile: mask out the out-of-range (garbage) rows.
        ch = c_step * ct + jax.lax.broadcasted_iota(jnp.int32, (ct, 1), 0)
        valid = ch < C
        x_for_max = jnp.where(valid, x, jnp.array(-jnp.inf, dtype=x.dtype))
        x_for_sum = jnp.where(valid, x, jnp.array(0, dtype=x.dtype))
    else:
        x_for_max = x
        x_for_sum = x
    m_acc[...] = jnp.maximum(
        m_acc[...],
        jnp.max(x_for_max, axis=0, keepdims=True).astype(jnp.float32))
    s_acc[...] = s_acc[...] + jnp.sum(
        x_for_sum, axis=0, keepdims=True, dtype=jnp.float32)

    # ---- finalize: mean, 2->1 kxk conv on the flattened maps, sigmoid ----
    @pl.when(c_step == n_c - 1)
    def _finalize():
        m_map = m_acc[...]                                    # (1, HW) f32
        a_map = s_acc[...] / jnp.float32(C)                   # true-C mean

        # Border-validity masks factorize into k vertical x k horizontal
        # masks.  Vertical = contiguous ranges of the flattened index;
        # horizontal = ranges of the precomputed column index.  No vector
        # integer div/mod needed.
        idx = jax.lax.broadcasted_iota(jnp.int32, (1, HW), 1)
        col = col_ref[...]
        vmask = []
        for dy in range(k):
            r0 = max(0, p - dy)
            r1 = min(H, H + p - dy)
            vmask.append(jnp.logical_and(idx >= r0 * W, idx < r1 * W))
        hmask = []
        for dx in range(k):
            c0 = max(0, p - dx)
            c1 = min(W, W + p - dx)
            hmask.append(jnp.logical_and(col >= c0, col < c1))

        # out[y,x] = b + sum_{dy,dx} w[:,dy,dx] . maps[y+dy-p, x+dx-p]
        # In flattened index space the tap offset is d = (dy-p)*W + (dx-p),
        # realized as a static lane roll by (-d) mod HW; invalid (out-of-
        # image / row-wrapped) positions are masked out.
        acc = jnp.full((1, HW), b_ref[0], dtype=jnp.float32)
        for dy in range(k):
            for dx in range(k):
                d = (dy - p) * W + (dx - p)
                shift = (-d) % HW                 # shifted[i] = map[i + d]
                if shift:
                    sm = pltpu.roll(m_map, shift, axis=1)
                    sa = pltpu.roll(a_map, shift, axis=1)
                else:
                    sm, sa = m_map, a_map
                tap = (w_ref[dy * k + dx] * sm
                       + w_ref[k * k + dy * k + dx] * sa)
                mask = jnp.logical_and(vmask[dy], hmask[dx])
                acc = acc + jnp.where(mask, tap, 0.0)

        # Single lane-dense store of the whole (1, H*W) output block.
        o_ref[...] = jax.nn.sigmoid(acc).astype(o_ref.dtype)


def _pick_c_tile(C, HW, itemsize, max_block_bytes=4 * 1024 * 1024):
    """Channel tile: largest multiple of 8 (or full C) within the byte budget."""
    if C * HW * itemsize <= max_block_bytes or C <= 8:
        return C
    ct = (max_block_bytes // (HW * itemsize)) // 8 * 8
    ct = max(8, min(ct, (C // 8) * 8))
    # Prefer a tile that divides C exactly (no ragged masking), but do not
    # shrink below ~half the budget to get one.
    for cand in range(ct, max(7, ct // 2 - 1), -8):
        if C % cand == 0:
            return cand
    return ct   # ragged last tile; masked in-kernel


def spatial_attention(x, weight, bias, kernel_size):
    """x: (B, C, H, W); weight: (1, 2, k, k); bias: (1,). Returns (B, 1, H, W)."""
    B, C, H, W = x.shape
    k = kernel_size
    assert k % 2 == 1, "kernel_size must be odd ('same' spatial padding)"
    HW = H * W

    # Free, contiguous relayouts only (no HBM round trip such as jnp.pad of x).
    x_flat = x.reshape(B, C, HW)
    w_flat = weight.reshape(-1).astype(jnp.float32)            # (2*k*k,)
    b_flat = bias.reshape(-1).astype(jnp.float32)              # (1,)
    # Tiny column-index map (i mod W) used for the conv border masks.
    col_map = (jnp.arange(HW, dtype=jnp.int32) % jnp.int32(W)).reshape(1, HW)

    ct = _pick_c_tile(C, HW, x.dtype.itemsize)
    nc = pl.cdiv(C, ct)

    kernel = functools.partial(_spatial_attn_kernel, H=H, W=W, k=k, C=C, ct=ct)

    out_flat = pl.pallas_call(
        kernel,
        out_shape=jax.ShapeDtypeStruct((B, 1, HW), x.dtype),
        grid=(B, nc),
        in_specs=[
            pl.BlockSpec(memory_space=pltpu.MemorySpace.SMEM),   # conv weight
            pl.BlockSpec(memory_space=pltpu.MemorySpace.SMEM),   # conv bias
            pl.BlockSpec((None, ct, HW), lambda b, c: (b, c, 0)),  # x tile
            pl.BlockSpec((1, HW), lambda b, c: (0, 0)),          # column idx
        ],
        out_specs=pl.BlockSpec((None, 1, HW), lambda b, c: (b, 0, 0)),
        scratch_shapes=[
            pltpu.VMEM((1, HW), jnp.float32),       # running max
            pltpu.VMEM((1, HW), jnp.float32),       # running sum
        ],
        compiler_params=pltpu.CompilerParams(
            dimension_semantics=("parallel", "arbitrary"),
            vmem_limit_bytes=32 * 1024 * 1024,
        ),
    )(w_flat, b_flat, x_flat, col_map)

    return out_flat.reshape(B, 1, H, W)


def _reference(x, weight, bias):
    """Pure-JAX reference mirroring the PyTorch module."""
    max_c = jnp.max(x, axis=1, keepdims=True)
    avg_c = jnp.mean(x, axis=1, keepdims=True)
    feat = jnp.concatenate([max_c, avg_c], axis=1)          # (B, 2, H, W)
    k = weight.shape[-1]
    out = jax.lax.conv_general_dilated(
        feat, weight,
        window_strides=(1, 1),
        padding=[(k // 2, k // 2), (k // 2, k // 2)],
        dimension_numbers=("NCHW", "OIHW", "NCHW"),
    ) + bias.reshape(1, 1, 1, 1)
    return jax.nn.sigmoid(out)


if __name__ == "__main__":
    B, C, H, W = 2, 4, 16, 16
    kernel_size = 7

    key = jax.random.PRNGKey(0)
    kx, kw, kb = jax.random.split(key, 3)

    x = jax.random.normal(kx, (B, C, H, W), dtype=jnp.float32)

    # Conv2d(2, 1, k) -> weight (1,2,k,k), bias (1,), PyTorch-style init bound.
    fan_in = 2 * kernel_size * kernel_size
    bound = 1.0 / (fan_in ** 0.5)
    weight = jax.random.uniform(kw, (1, 2, kernel_size, kernel_size),
                                dtype=jnp.float32, minval=-bound, maxval=bound)
    bias = jax.random.uniform(kb, (1,), dtype=jnp.float32,
                              minval=-bound, maxval=bound)

    out = spatial_attention(x, weight, bias, kernel_size)
    out = jax.block_until_ready(out)

    ref = _reference(x, weight, bias)
    assert out.shape == (B, 1, H, W)
    assert jnp.allclose(out, ref, atol=1e-5, rtol=1e-5), "mismatch vs reference"

    print("KERNEL_OK")
</pallas_src>

<mosaic_0001>
module attributes {stable_mosaic.version = 11 : i64} {
  func.func @_spatial_attn_kernel(%arg0: i32, %arg1: i32, %arg2: memref<98xf32, #tpu.memory_space<smem>>, %arg3: memref<1xf32, #tpu.memory_space<smem>>, %arg4: memref<1x4x256xf32, #tpu.memory_space<vmem>>, %arg5: memref<1x256xi32, #tpu.memory_space<vmem>>, %arg6: memref<1x1x256xf32, #tpu.memory_space<vmem>>, %arg7: memref<1x256xf32, #tpu.memory_space<vmem>>, %arg8: memref<1x256xf32, #tpu.memory_space<vmem>>) attributes {dimension_semantics = [#tpu.dimension_semantics<parallel>, #tpu.dimension_semantics<arbitrary>], iteration_bounds = array<i64: 2, 1>, scalar_prefetch = 0 : i64, scratch_operands = 2 : i64, tpu.core_type = #tpu.core_type<tc>, window_params = [{transform_indices = @transform_0, window_bounds = array<i64: 98>}, {transform_indices = @transform_1, window_bounds = array<i64: 1>}, {transform_indices = @transform_2, window_bounds = array<i64: 1, 4, 256>}, {pipeline_mode = #tpu.pipeline_mode<synchronous>, transform_indices = @transform_3, window_bounds = array<i64: 1, 256>}, {transform_indices = @transform_4, window_bounds = array<i64: 1, 1, 256>}]} {
    %c0_i32 = arith.constant 0 : i32
    %0 = arith.cmpi eq, %arg1, %c0_i32 : i32
    %1 = arith.extui %0 : i1 to i32
    %c0_i32_0 = arith.constant 0 : i32
    %2 = arith.cmpi ne, %1, %c0_i32_0 : i32
    scf.if %2 {
      %cst_14 = arith.constant 0xFF800000 : f32
      %18 = vector.broadcast %cst_14 : f32 to vector<1x256xf32>
      %c0_15 = arith.constant 0 : index
      %c0_16 = arith.constant 0 : index
      %19 = vector.load %arg7[%c0_15, %c0_16] : memref<1x256xf32, #tpu.memory_space<vmem>>, vector<1x256xf32>
      tpu.vector_store %arg7[%c0_15, %c0_16], %18 {strides = array<i32>} : memref<1x256xf32, #tpu.memory_space<vmem>>, vector<1x256xf32>,
      %cst_17 = arith.constant 0.000000e+00 : f32
      %20 = vector.broadcast %cst_17 : f32 to vector<1x256xf32>
      %c0_18 = arith.constant 0 : index
      %c0_19 = arith.constant 0 : index
      %21 = vector.load %arg8[%c0_18, %c0_19] : memref<1x256xf32, #tpu.memory_space<vmem>>, vector<1x256xf32>
      tpu.vector_store %arg8[%c0_18, %c0_19], %20 {strides = array<i32>} : memref<1x256xf32, #tpu.memory_space<vmem>>, vector<1x256xf32>,
    } else {
    }
    %c0 = arith.constant 0 : index
    %c0_1 = arith.constant 0 : index
    %c0_2 = arith.constant 0 : index
    %3 = vector.load %arg4[%c0, %c0_1, %c0_2] : memref<1x4x256xf32, #tpu.memory_space<vmem>>, vector<1x4x256xf32>
    %4 = vector.shape_cast %3 : vector<1x4x256xf32> to vector<4x256xf32>
    %c0_3 = arith.constant 0 : index
    %c0_4 = arith.constant 0 : index
    %5 = vector.load %arg7[%c0_3, %c0_4] : memref<1x256xf32, #tpu.memory_space<vmem>>, vector<1x256xf32>
    %cst = arith.constant dense<0xFF800000> : vector<256xf32>
    %6 = vector.multi_reduction <maximumf>, %4, %cst [0] : vector<4x256xf32> to vector<256xf32>
    %7 = vector.shape_cast %6 : vector<256xf32> to vector<1x256xf32>
    %8 = arith.maximumf %5, %7 : vector<1x256xf32>
    %c0_5 = arith.constant 0 : index
    %c0_6 = arith.constant 0 : index
    %9 = vector.load %arg7[%c0_5, %c0_6] : memref<1x256xf32, #tpu.memory_space<vmem>>, vector<1x256xf32>
    tpu.vector_store %arg7[%c0_5, %c0_6], %8 {strides = array<i32>} : memref<1x256xf32, #tpu.memory_space<vmem>>, vector<1x256xf32>,
    %c0_7 = arith.constant 0 : index
    %c0_8 = arith.constant 0 : index
    %10 = vector.load %arg8[%c0_7, %c0_8] : memref<1x256xf32, #tpu.memory_space<vmem>>, vector<1x256xf32>
    %cst_9 = arith.constant dense<0.000000e+00> : vector<256xf32>
    %11 = vector.multi_reduction <add>, %4, %cst_9 [0] : vector<4x256xf32> to vector<256xf32>
    %12 = vector.shape_cast %11 : vector<256xf32> to vector<1x256xf32>
    %13 = arith.addf %10, %12 : vector<1x256xf32>
    %c0_10 = arith.constant 0 : index
    %c0_11 = arith.constant 0 : index
    %14 = vector.load %arg8[%c0_10, %c0_11] : memref<1x256xf32, #tpu.memory_space<vmem>>, vector<1x256xf32>
    tpu.vector_store %arg8[%c0_10, %c0_11], %13 {strides = array<i32>} : memref<1x256xf32, #tpu.memory_space<vmem>>, vector<1x256xf32>,
    %c0_i32_12 = arith.constant 0 : i32
    %15 = arith.cmpi eq, %arg1, %c0_i32_12 : i32
    %16 = arith.extui %15 : i1 to i32
    %c0_i32_13 = arith.constant 0 : i32
    %17 = arith.cmpi ne, %16, %c0_i32_13 : i32
    scf.if %17 {
      %c0_14 = arith.constant 0 : index
      %c0_15 = arith.constant 0 : index
      %18 = vector.load %arg7[%c0_14, %c0_15] : memref<1x256xf32, #tpu.memory_space<vmem>>, vector<1x256xf32>
      %c0_16 = arith.constant 0 : index
      %c0_17 = arith.constant 0 : index
      %19 = vector.load %arg8[%c0_16, %c0_17] : memref<1x256xf32, #tpu.memory_space<vmem>>, vector<1x256xf32>
      %cst_18 = arith.constant 4.000000e+00 : f32
      %20 = vector.broadcast %cst_18 : f32 to vector<1x256xf32>
      %21 = arith.divf %19, %20 : vector<1x256xf32>
      %22 = tpu.iota {dimensions = array<i32: 1>} : vector<1x256xi32>
      %c0_19 = arith.constant 0 : index
      %c0_20 = arith.constant 0 : index
      %23 = vector.load %arg5[%c0_19, %c0_20] : memref<1x256xi32, #tpu.memory_space<vmem>>, vector<1x256xi32>
      %c48_i32 = arith.constant 48 : i32
      %24 = vector.broadcast %c48_i32 : i32 to vector<1x256xi32>
      %25 = arith.cmpi sge, %22, %24 : vector<1x256xi32>
      %c256_i32 = arith.constant 256 : i32
      %26 = vector.broadcast %c256_i32 : i32 to vector<1x256xi32>
      %27 = arith.cmpi slt, %22, %26 : vector<1x256xi32>
      %28 = arith.andi %25, %27 : vector<1x256xi1>
      %c32_i32 = arith.constant 32 : i32
      %29 = vector.broadcast %c32_i32 : i32 to vector<1x256xi32>
      %30 = arith.cmpi sge, %22, %29 : vector<1x256xi32>
      %c256_i32_21 = arith.constant 256 : i32
      %31 = vector.broadcast %c256_i32_21 : i32 to vector<1x256xi32>
      %32 = arith.cmpi slt, %22, %31 : vector<1x256xi32>
      %33 = arith.andi %30, %32 : vector<1x256xi1>
      %c16_i32 = arith.constant 16 : i32
      %34 = vector.broadcast %c16_i32 : i32 to vector<1x256xi32>
      %35 = arith.cmpi sge, %22, %34 : vector<1x256xi32>
      %c256_i32_22 = arith.constant 256 : i32
      %36 = vector.broadcast %c256_i32_22 : i32 to vector<1x256xi32>
      %37 = arith.cmpi slt, %22, %36 : vector<1x256xi32>
      %38 = arith.andi %35, %37 : vector<1x256xi1>
      %c0_i32_23 = arith.constant 0 : i32
      %39 = vector.broadcast %c0_i32_23 : i32 to vector<1x256xi32>
      %40 = arith.cmpi sge, %22, %39 : vector<1x256xi32>
      %c256_i32_24 = arith.constant 256 : i32
      %41 = vector.broadcast %c256_i32_24 : i32 to vector<1x256xi32>
      %42 = arith.cmpi slt, %22, %41 : vector<1x256xi32>
      %43 = arith.andi %40, %42 : vector<1x256xi1>
      %c0_i32_25 = arith.constant 0 : i32
      %44 = vector.broadcast %c0_i32_25 : i32 to vector<1x256xi32>
      %45 = arith.cmpi sge, %22, %44 : vector<1x256xi32>
      %c240_i32 = arith.constant 240 : i32
      %46 = vector.broadcast %c240_i32 : i32 to vector<1x256xi32>
      %47 = arith.cmpi slt, %22, %46 : vector<1x256xi32>
      %48 = arith.andi %45, %47 : vector<1x256xi1>
      %c0_i32_26 = arith.constant 0 : i32
      %49 = vector.broadcast %c0_i32_26 : i32 to vector<1x256xi32>
      %50 = arith.cmpi sge, %22, %49 : vector<1x256xi32>
      %c224_i32 = arith.constant 224 : i32
      %51 = vector.broadcast %c224_i32 : i32 to vector<1x256xi32>
      %52 = arith.cmpi slt, %22, %51 : vector<1x256xi32>
      %53 = arith.andi %50, %52 : vector<1x256xi1>
      %c0_i32_27 = arith.constant 0 : i32
      %54 = vector.broadcast %c0_i32_27 : i32 to vector<1x256xi32>
      %55 = arith.cmpi sge, %22, %54 : vector<1x256xi32>
      %c208_i32 = arith.constant 208 : i32
      %56 = vector.broadcast %c208_i32 : i32 to vector<1x256xi32>
      %57 = arith.cmpi slt, %22, %56 : vector<1x256xi32>
      %58 = arith.andi %55, %57 : vector<1x256xi1>
      %c3_i32 = arith.constant 3 : i32
      %59 = vector.broadcast %c3_i32 : i32 to vector<1x256xi32>
      %60 = arith.cmpi sge, %23, %59 : vector<1x256xi32>
      %c16_i32_28 = arith.constant 16 : i32
      %61 = vector.broadcast %c16_i32_28 : i32 to vector<1x256xi32>
      %62 = arith.cmpi slt, %23, %61 : vector<1x256xi32>
      %63 = arith.andi %60, %62 : vector<1x256xi1>
      %c2_i32 = arith.constant 2 : i32
      %64 = vector.broadcast %c2_i32 : i32 to vector<1x256xi32>
      %65 = arith.cmpi sge, %23, %64 : vector<1x256xi32>
      %c16_i32_29 = arith.constant 16 : i32
      %66 = vector.broadcast %c16_i32_29 : i32 to vector<1x256xi32>
      %67 = arith.cmpi slt, %23, %66 : vector<1x256xi32>
      %68 = arith.andi %65, %67 : vector<1x256xi1>
      %c1_i32 = arith.constant 1 : i32
      %69 = vector.broadcast %c1_i32 : i32 to vector<1x256xi32>
      %70 = arith.cmpi sge, %23, %69 : vector<1x256xi32>
      %c16_i32_30 = arith.constant 16 : i32
      %71 = vector.broadcast %c16_i32_30 : i32 to vector<1x256xi32>
      %72 = arith.cmpi slt, %23, %71 : vector<1x256xi32>
      %73 = arith.andi %70, %72 : vector<1x256xi1>
      %c0_i32_31 = arith.constant 0 : i32
      %74 = vector.broadcast %c0_i32_31 : i32 to vector<1x256xi32>
      %75 = arith.cmpi sge, %23, %74 : vector<1x256xi32>
      %c16_i32_32 = arith.constant 16 : i32
      %76 = vector.broadcast %c16_i32_32 : i32 to vector<1x256xi32>
      %77 = arith.cmpi slt, %23, %76 : vector<1x256xi32>
      %78 = arith.andi %75, %77 : vector<1x256xi1>
      %c0_i32_33 = arith.constant 0 : i32
      %79 = vector.broadcast %c0_i32_33 : i32 to vector<1x256xi32>
      %80 = arith.cmpi sge, %23, %79 : vector<1x256xi32>
      %c15_i32 = arith.constant 15 : i32
      %81 = vector.broadcast %c15_i32 : i32 to vector<1x256xi32>
      %82 = arith.cmpi slt, %23, %81 : vector<1x256xi32>
      %83 = arith.andi %80, %82 : vector<1x256xi1>
      %c0_i32_34 = arith.constant 0 : i32
      %84 = vector.broadcast %c0_i32_34 : i32 to vector<1x256xi32>
      %85 = arith.cmpi sge, %23, %84 : vector<1x256xi32>
      %c14_i32 = arith.constant 14 : i32
      %86 = vector.broadcast %c14_i32 : i32 to vector<1x256xi32>
      %87 = arith.cmpi slt, %23, %86 : vector<1x256xi32>
      %88 = arith.andi %85, %87 : vector<1x256xi1>
      %c0_i32_35 = arith.constant 0 : i32
      %89 = vector.broadcast %c0_i32_35 : i32 to vector<1x256xi32>
      %90 = arith.cmpi sge, %23, %89 : vector<1x256xi32>
      %c13_i32 = arith.constant 13 : i32
      %91 = vector.broadcast %c13_i32 : i32 to vector<1x256xi32>
      %92 = arith.cmpi slt, %23, %91 : vector<1x256xi32>
      %93 = arith.andi %90, %92 : vector<1x256xi1>
      %c0_36 = arith.constant 0 : index
      %94 = memref.load %arg3[%c0_36] : memref<1xf32, #tpu.memory_space<smem>>
      %95 = vector.broadcast %94 : f32 to vector<1x256xf32>
      %c51_i32 = arith.constant 51 : i32
      %96 = tpu.dynamic_rotate %18 by %c51_i32 dim 1 : vector<1x256xf32>, i32 -> vector<1x256xf32>
      %c51_i32_37 = arith.constant 51 : i32
      %97 = tpu.dynamic_rotate %21 by %c51_i32_37 dim 1 : vector<1x256xf32>, i32 -> vector<1x256xf32>
      %c0_38 = arith.constant 0 : index
      %98 = memref.load %arg2[%c0_38] : memref<98xf32, #tpu.memory_space<smem>>
      %99 = vector.broadcast %98 : f32 to vector<1x256xf32>
      %100 = arith.mulf %99, %96 : vector<1x256xf32>
      %c49 = arith.constant 49 : index
      %101 = memref.load %arg2[%c49] : memref<98xf32, #tpu.memory_space<smem>>
      %102 = vector.broadcast %101 : f32 to vector<1x256xf32>
      %103 = arith.mulf %102, %97 : vector<1x256xf32>
      %104 = arith.addf %100, %103 : vector<1x256xf32>
      %105 = arith.andi %28, %63 : vector<1x256xi1>
      %cst_39 = arith.constant 0.000000e+00 : f32
      %106 = vector.broadcast %cst_39 : f32 to vector<1x256xf32>
      %107 = arith.select %105, %104, %106 : vector<1x256xi1>, vector<1x256xf32>
      %108 = arith.addf %95, %107 : vector<1x256xf32>
      %c50_i32 = arith.constant 50 : i32
      %109 = tpu.dynamic_rotate %18 by %c50_i32 dim 1 : vector<1x256xf32>, i32 -> vector<1x256xf32>
      %c50_i32_40 = arith.constant 50 : i32
      %110 = tpu.dynamic_rotate %21 by %c50_i32_40 dim 1 : vector<1x256xf32>, i32 -> vector<1x256xf32>
      %c1 = arith.constant 1 : index
      %111 = memref.load %arg2[%c1] : memref<98xf32, #tpu.memory_space<smem>>
      %112 = vector.broadcast %111 : f32 to vector<1x256xf32>
      %113 = arith.mulf %112, %109 : vector<1x256xf32>
      %c50 = arith.constant 50 : index
      %114 = memref.load %arg2[%c50] : memref<98xf32, #tpu.memory_space<smem>>
      %115 = vector.broadcast %114 : f32 to vector<1x256xf32>
      %116 = arith.mulf %115, %110 : vector<1x256xf32>
      %117 = arith.addf %113, %116 : vector<1x256xf32>
      %118 = arith.andi %28, %68 : vector<1x256xi1>
      %cst_41 = arith.constant 0.000000e+00 : f32
      %119 = vector.broadcast %cst_41 : f32 to vector<1x256xf32>
      %120 = arith.select %118, %117, %119 : vector<1x256xi1>, vector<1x256xf32>
      %121 = arith.addf %108, %120 : vector<1x256xf32>
      %c49_i32 = arith.constant 49 : i32
      %122 = tpu.dynamic_rotate %18 by %c49_i32 dim 1 : vector<1x256xf32>, i32 -> vector<1x256xf32>
      %c49_i32_42 = arith.constant 49 : i32
      %123 = tpu.dynamic_rotate %21 by %c49_i32_42 dim 1 : vector<1x256xf32>, i32 -> vector<1x256xf32>
      %c2 = arith.constant 2 : index
      %124 = memref.load %arg2[%c2] : memref<98xf32, #tpu.memory_space<smem>>
      %125 = vector.broadcast %124 : f32 to vector<1x256xf32>
      %126 = arith.mulf %125, %122 : vector<1x256xf32>
      %c51 = arith.constant 51 : index
      %127 = memref.load %arg2[%c51] : memref<98xf32, #tpu.memory_space<smem>>
      %128 = vector.broadcast %127 : f32 to vector<1x256xf32>
      %129 = arith.mulf %128, %123 : vector<1x256xf32>
      %130 = arith.addf %126, %129 : vector<1x256xf32>
      %131 = arith.andi %28, %73 : vector<1x256xi1>
      %cst_43 = arith.constant 0.000000e+00 : f32
      %132 = vector.broadcast %cst_43 : f32 to vector<1x256xf32>
      %133 = arith.select %131, %130, %132 : vector<1x256xi1>, vector<1x256xf32>
      %134 = arith.addf %121, %133 : vector<1x256xf32>
      %c48_i32_44 = arith.constant 48 : i32
      %135 = tpu.dynamic_rotate %18 by %c48_i32_44 dim 1 : vector<1x256xf32>, i32 -> vector<1x256xf32>
      %c48_i32_45 = arith.constant 48 : i32
      %136 = tpu.dynamic_rotate %21 by %c48_i32_45 dim 1 : vector<1x256xf32>, i32 -> vector<1x256xf32>
      %c3 = arith.constant 3 : index
      %137 = memref.load %arg2[%c3] : memref<98xf32, #tpu.memory_space<smem>>
      %138 = vector.broadcast %137 : f32 to vector<1x256xf32>
      %139 = arith.mulf %138, %135 : vector<1x256xf32>
      %c52 = arith.constant 52 : index
      %140 = memref.load %arg2[%c52] : memref<98xf32, #tpu.memory_space<smem>>
      %141 = vector.broadcast %140 : f32 to vector<1x256xf32>
      %142 = arith.mulf %141, %136 : vector<1x256xf32>
      %143 = arith.addf %139, %142 : vector<1x256xf32>
      %144 = arith.andi %28, %78 : vector<1x256xi1>
      %cst_46 = arith.constant 0.000000e+00 : f32
      %145 = vector.broadcast %cst_46 : f32 to vector<1x256xf32>
      %146 = arith.select %144, %143, %145 : vector<1x256xi1>, vector<1x256xf32>
      %147 = arith.addf %134, %146 : vector<1x256xf32>
      %c47_i32 = arith.constant 47 : i32
      %148 = tpu.dynamic_rotate %18 by %c47_i32 dim 1 : vector<1x256xf32>, i32 -> vector<1x256xf32>
      %c47_i32_47 = arith.constant 47 : i32
      %149 = tpu.dynamic_rotate %21 by %c47_i32_47 dim 1 : vector<1x256xf32>, i32 -> vector<1x256xf32>
      %c4 = arith.constant 4 : index
      %150 = memref.load %arg2[%c4] : memref<98xf32, #tpu.memory_space<smem>>
      %151 = vector.broadcast %150 : f32 to vector<1x256xf32>
      %152 = arith.mulf %151, %148 : vector<1x256xf32>
      %c53 = arith.constant 53 : index
      %153 = memref.load %arg2[%c53] : memref<98xf32, #tpu.memory_space<smem>>
      %154 = vector.broadcast %153 : f32 to vector<1x256xf32>
      %155 = arith.mulf %154, %149 : vector<1x256xf32>
      %156 = arith.addf %152, %155 : vector<1x256xf32>
      %157 = arith.andi %28, %83 : vector<1x256xi1>
      %cst_48 = arith.constant 0.000000e+00 : f32
      %158 = vector.broadcast %cst_48 : f32 to vector<1x256xf32>
      %159 = arith.select %157, %156, %158 : vector<1x256xi1>, vector<1x256xf32>
      %160 = arith.addf %147, %159 : vector<1x256xf32>
      %c46_i32 = arith.constant 46 : i32
      %161 = tpu.dynamic_rotate %18 by %c46_i32 dim 1 : vector<1x256xf32>, i32 -> vector<1x256xf32>
      %c46_i32_49 = arith.constant 46 : i32
      %162 = tpu.dynamic_rotate %21 by %c46_i32_49 dim 1 : vector<1x256xf32>, i32 -> vector<1x256xf32>
      %c5 = arith.constant 5 : index
      %163 = memref.load %arg2[%c5] : memref<98xf32, #tpu.memory_space<smem>>
      %164 = vector.broadcast %163 : f32 to vector<1x256xf32>
      %165 = arith.mulf %164, %161 : vector<1x256xf32>
      %c54 = arith.constant 54 : index
      %166 = memref.load %arg2[%c54] : memref<98xf32, #tpu.memory_space<smem>>
      %167 = vector.broadcast %166 : f32 to vector<1x256xf32>
      %168 = arith.mulf %167, %162 : vector<1x256xf32>
      %169 = arith.addf %165, %168 : vector<1x256xf32>
      %170 = arith.andi %28, %88 : vector<1x256xi1>
      %cst_50 = arith.constant 0.000000e+00 : f32
      %171 = vector.broadcast %cst_50 : f32 to vector<1x256xf32>
      %172 = arith.select %170, %169, %171 : vector<1x256xi1>, vector<1x256xf32>
      %173 = arith.addf %160, %172 : vector<1x256xf32>
      %c45_i32 = arith.constant 45 : i32
      %174 = tpu.dynamic_rotate %18 by %c45_i32 dim 1 : vector<1x256xf32>, i32 -> vector<1x256xf32>
      %c45_i32_51 = arith.constant 45 : i32
      %175 = tpu.dynamic_rotate %21 by %c45_i32_51 dim 1 : vector<1x256xf32>, i32 -> vector<1x256xf32>
      %c6 = arith.constant 6 : index
      %176 = memref.load %arg2[%c6] : memref<98xf32, #tpu.memory_space<smem>>
      %177 = vector.broadcast %176 : f32 to vector<1x256xf32>
      %178 = arith.mulf %177, %174 : vector<1x256xf32>
      %c55 = arith.constant 55 : index
      %179 = memref.load %arg2[%c55] : memref<98xf32, #tpu.memory_space<smem>>
      %180 = vector.broadcast %179 : f32 to vector<1x256xf32>
      %181 = arith.mulf %180, %175 : vector<1x256xf32>
      %182 = arith.addf %178, %181 : vector<1x256xf32>
      %183 = arith.andi %28, %93 : vector<1x256xi1>
      %cst_52 = arith.constant 0.000000e+00 : f32
      %184 = vector.broadcast %cst_52 : f32 to vector<1x256xf32>
      %185 = arith.select %183, %182, %184 : vector<1x256xi1>, vector<1x256xf32>
      %186 = arith.addf %173, %185 : vector<1x256xf32>
      %c35_i32 = arith.constant 35 : i32
      %187 = tpu.dynamic_rotate %18 by %c35_i32 dim 1 : vector<1x256xf32>, i32 -> vector<1x256xf32>
      %c35_i32_53 = arith.constant 35 : i32
      %188 = tpu.dynamic_rotate %21 by %c35_i32_53 dim 1 : vector<1x256xf32>, i32 -> vector<1x256xf32>
      %c7 = arith.constant 7 : index
      %189 = memref.load %arg2[%c7] : memref<98xf32, #tpu.memory_space<smem>>
      %190 = vector.broadcast %189 : f32 to vector<1x256xf32>
      %191 = arith.mulf %190, %187 : vector<1x256xf32>
      %c56 = arith.constant 56 : index
      %192 = memref.load %arg2[%c56] : memref<98xf32, #tpu.memory_space<smem>>
      %193 = vector.broadcast %192 : f32 to vector<1x256xf32>
      %194 = arith.mulf %193, %188 : vector<1x256xf32>
      %195 = arith.addf %191, %194 : vector<1x256xf32>
      %196 = arith.andi %33, %63 : vector<1x256xi1>
      %cst_54 = arith.constant 0.000000e+00 : f32
      %197 = vector.broadcast %cst_54 : f32 to vector<1x256xf32>
      %198 = arith.select %196, %195, %197 : vector<1x256xi1>, vector<1x256xf32>
      %199 = arith.addf %186, %198 : vector<1x256xf32>
      %c34_i32 = arith.constant 34 : i32
      %200 = tpu.dynamic_rotate %18 by %c34_i32 dim 1 : vector<1x256xf32>, i32 -> vector<1x256xf32>
      %c34_i32_55 = arith.constant 34 : i32
      %201 = tpu.dynamic_rotate %21 by %c34_i32_55 dim 1 : vector<1x256xf32>, i32 -> vector<1x256xf32>
      %c8 = arith.constant 8 : index
      %202 = memref.load %arg2[%c8] : memref<98xf32, #tpu.memory_space<smem>>
      %203 = vector.broadcast %202 : f32 to vector<1x256xf32>
      %204 = arith.mulf %203, %200 : vector<1x256xf32>
      %c57 = arith.constant 57 : index
      %205 = memref.load %arg2[%c57] : memref<98xf32, #tpu.memory_space<smem>>
      %206 = vector.broadcast %205 : f32 to vector<1x256xf32>
      %207 = arith.mulf %206, %201 : vector<1x256xf32>
      %208 = arith.addf %204, %207 : vector<1x256xf32>
      %209 = arith.andi %33, %68 : vector<1x256xi1>
      %cst_56 = arith.constant 0.000000e+00 : f32
      %210 = vector.broadcast %cst_56 : f32 to vector<1x256xf32>
      %211 = arith.select %209, %208, %210 : vector<1x256xi1>, vector<1x256xf32>
      %212 = arith.addf %199, %211 : vector<1x256xf32>
      %c33_i32 = arith.constant 33 : i32
      %213 = tpu.dynamic_rotate %18 by %c33_i32 dim 1 : vector<1x256xf32>, i32 -> vector<1x256xf32>
      %c33_i32_57 = arith.constant 33 : i32
      %214 = tpu.dynamic_rotate %21 by %c33_i32_57 dim 1 : vector<1x256xf32>, i32 -> vector<1x256xf32>
      %c9 = arith.constant 9 : index
      %215 = memref.load %arg2[%c9] : memref<98xf32, #tpu.memory_space<smem>>
      %216 = vector.broadcast %215 : f32 to vector<1x256xf32>
      %217 = arith.mulf %216, %213 : vector<1x256xf32>
      %c58 = arith.constant 58 : index
      %218 = memref.load %arg2[%c58] : memref<98xf32, #tpu.memory_space<smem>>
      %219 = vector.broadcast %218 : f32 to vector<1x256xf32>
      %220 = arith.mulf %219, %214 : vector<1x256xf32>
      %221 = arith.addf %217, %220 : vector<1x256xf32>
      %222 = arith.andi %33, %73 : vector<1x256xi1>
      %cst_58 = arith.constant 0.000000e+00 : f32
      %223 = vector.broadcast %cst_58 : f32 to vector<1x256xf32>
      %224 = arith.select %222, %221, %223 : vector<1x256xi1>, vector<1x256xf32>
      %225 = arith.addf %212, %224 : vector<1x256xf32>
      %c32_i32_59 = arith.constant 32 : i32
      %226 = tpu.dynamic_rotate %18 by %c32_i32_59 dim 1 : vector<1x256xf32>, i32 -> vector<1x256xf32>
      %c32_i32_60 = arith.constant 32 : i32
      %227 = tpu.dynamic_rotate %21 by %c32_i32_60 dim 1 : vector<1x256xf32>, i32 -> vector<1x256xf32>
      %c10 = arith.constant 10 : index
      %228 = memref.load %arg2[%c10] : memref<98xf32, #tpu.memory_space<smem>>
      %229 = vector.broadcast %228 : f32 to vector<1x256xf32>
      %230 = arith.mulf %229, %226 : vector<1x256xf32>
      %c59 = arith.constant 59 : index
      %231 = memref.load %arg2[%c59] : memref<98xf32, #tpu.memory_space<smem>>
      %232 = vector.broadcast %231 : f32 to vector<1x256xf32>
      %233 = arith.mulf %232, %227 : vector<1x256xf32>
      %234 = arith.addf %230, %233 : vector<1x256xf32>
      %235 = arith.andi %33, %78 : vector<1x256xi1>
      %cst_61 = arith.constant 0.000000e+00 : f32
      %236 = vector.broadcast %cst_61 : f32 to vector<1x256xf32>
      %237 = arith.select %235, %234, %236 : vector<1x256xi1>, vector<1x256xf32>
      %238 = arith.addf %225, %237 : vector<1x256xf32>
      %c31_i32 = arith.constant 31 : i32
      %239 = tpu.dynamic_rotate %18 by %c31_i32 dim 1 : vector<1x256xf32>, i32 -> vector<1x256xf32>
      %c31_i32_62 = arith.constant 31 : i32
      %240 = tpu.dynamic_rotate %21 by %c31_i32_62 dim 1 : vector<1x256xf32>, i32 -> vector<1x256xf32>
      %c11 = arith.constant 11 : index
      %241 = memref.load %arg2[%c11] : memref<98xf32, #tpu.memory_space<smem>>
      %242 = vector.broadcast %241 : f32 to vector<1x256xf32>
      %243 = arith.mulf %242, %239 : vector<1x256xf32>
      %c60 = arith.constant 60 : index
      %244 = memref.load %arg2[%c60] : memref<98xf32, #tpu.memory_space<smem>>
      %245 = vector.broadcast %244 : f32 to vector<1x256xf32>
      %246 = arith.mulf %245, %240 : vector<1x256xf32>
      %247 = arith.addf %243, %246 : vector<1x256xf32>
      %248 = arith.andi %33, %83 : vector<1x256xi1>
      %cst_63 = arith.constant 0.000000e+00 : f32
      %249 = vector.broadcast %cst_63 : f32 to vector<1x256xf32>
      %250 = arith.select %248, %247, %249 : vector<1x256xi1>, vector<1x256xf32>
      %251 = arith.addf %238, %250 : vector<1x256xf32>
      %c30_i32 = arith.constant 30 : i32
      %252 = tpu.dynamic_rotate %18 by %c30_i32 dim 1 : vector<1x256xf32>, i32 -> vector<1x256xf32>
      %c30_i32_64 = arith.constant 30 : i32
      %253 = tpu.dynamic_rotate %21 by %c30_i32_64 dim 1 : vector<1x256xf32>, i32 -> vector<1x256xf32>
      %c12 = arith.constant 12 : index
      %254 = memref.load %arg2[%c12] : memref<98xf32, #tpu.memory_space<smem>>
      %255 = vector.broadcast %254 : f32 to vector<1x256xf32>
      %256 = arith.mulf %255, %252 : vector<1x256xf32>
      %c61 = arith.constant 61 : index
      %257 = memref.load %arg2[%c61] : memref<98xf32, #tpu.memory_space<smem>>
      %258 = vector.broadcast %257 : f32 to vector<1x256xf32>
      %259 = arith.mulf %258, %253 : vector<1x256xf32>
      %260 = arith.addf %256, %259 : vector<1x256xf32>
      %261 = arith.andi %33, %88 : vector<1x256xi1>
      %cst_65 = arith.constant 0.000000e+00 : f32
      %262 = vector.broadcast %cst_65 : f32 to vector<1x256xf32>
      %263 = arith.select %261, %260, %262 : vector<1x256xi1>, vector<1x256xf32>
      %264 = arith.addf %251, %263 : vector<1x256xf32>
      %c29_i32 = arith.constant 29 : i32
      %265 = tpu.dynamic_rotate %18 by %c29_i32 dim 1 : vector<1x256xf32>, i32 -> vector<1x256xf32>
      %c29_i32_66 = arith.constant 29 : i32
      %266 = tpu.dynamic_rotate %21 by %c29_i32_66 dim 1 : vector<1x256xf32>, i32 -> vector<1x256xf32>
      %c13 = arith.constant 13 : index
      %267 = memref.load %arg2[%c13] : memref<98xf32, #tpu.memory_space<smem>>
      %268 = vector.broadcast %267 : f32 to vector<1x256xf32>
      %269 = arith.mulf %268, %265 : vector<1x256xf32>
      %c62 = arith.constant 62 : index
      %270 = memref.load %arg2[%c62] : memref<98xf32, #tpu.memory_space<smem>>
      %271 = vector.broadcast %270 : f32 to vector<1x256xf32>
      %272 = arith.mulf %271, %266 : vector<1x256xf32>
      %273 = arith.addf %269, %272 : vector<1x256xf32>
      %274 = arith.andi %33, %93 : vector<1x256xi1>
      %cst_67 = arith.constant 0.000000e+00 : f32
      %275 = vector.broadcast %cst_67 : f32 to vector<1x256xf32>
      %276 = arith.select %274, %273, %275 : vector<1x256xi1>, vector<1x256xf32>
      %277 = arith.addf %264, %276 : vector<1x256xf32>
      %c19_i32 = arith.constant 19 : i32
      %278 = tpu.dynamic_rotate %18 by %c19_i32 dim 1 : vector<1x256xf32>, i32 -> vector<1x256xf32>
      %c19_i32_68 = arith.constant 19 : i32
      %279 = tpu.dynamic_rotate %21 by %c19_i32_68 dim 1 : vector<1x256xf32>, i32 -> vector<1x256xf32>
      %c14 = arith.constant 14 : index
      %280 = memref.load %arg2[%c14] : memref<98xf32, #tpu.memory_space<smem>>
      %281 = vector.broadcast %280 : f32 to vector<1x256xf32>
      %282 = arith.mulf %281, %278 : vector<1x256xf32>
      %c63 = arith.constant 63 : index
      %283 = memref.load %arg2[%c63] : memref<98xf32, #tpu.memory_space<smem>>
      %284 = vector.broadcast %283 : f32 to vector<1x256xf32>
      %285 = arith.mulf %284, %279 : vector<1x256xf32>
      %286 = arith.addf %282, %285 : vector<1x256xf32>
      %287 = arith.andi %38, %63 : vector<1x256xi1>
      %cst_69 = arith.constant 0.000000e+00 : f32
      %288 = vector.broadcast %cst_69 : f32 to vector<1x256xf32>
      %289 = arith.select %287, %286, %288 : vector<1x256xi1>, vector<1x256xf32>
      %290 = arith.addf %277, %289 : vector<1x256xf32>
      %c18_i32 = arith.constant 18 : i32
      %291 = tpu.dynamic_rotate %18 by %c18_i32 dim 1 : vector<1x256xf32>, i32 -> vector<1x256xf32>
      %c18_i32_70 = arith.constant 18 : i32
      %292 = tpu.dynamic_rotate %21 by %c18_i32_70 dim 1 : vector<1x256xf32>, i32 -> vector<1x256xf32>
      %c15 = arith.constant 15 : index
      %293 = memref.load %arg2[%c15] : memref<98xf32, #tpu.memory_space<smem>>
      %294 = vector.broadcast %293 : f32 to vector<1x256xf32>
      %295 = arith.mulf %294, %291 : vector<1x256xf32>
      %c64 = arith.constant 64 : index
      %296 = memref.load %arg2[%c64] : memref<98xf32, #tpu.memory_space<smem>>
      %297 = vector.broadcast %296 : f32 to vector<1x256xf32>
      %298 = arith.mulf %297, %292 : vector<1x256xf32>
      %299 = arith.addf %295, %298 : vector<1x256xf32>
      %300 = arith.andi %38, %68 : vector<1x256xi1>
      %cst_71 = arith.constant 0.000000e+00 : f32
      %301 = vector.broadcast %cst_71 : f32 to vector<1x256xf32>
      %302 = arith.select %300, %299, %301 : vector<1x256xi1>, vector<1x256xf32>
      %303 = arith.addf %290, %302 : vector<1x256xf32>
      %c17_i32 = arith.constant 17 : i32
      %304 = tpu.dynamic_rotate %18 by %c17_i32 dim 1 : vector<1x256xf32>, i32 -> vector<1x256xf32>
      %c17_i32_72 = arith.constant 17 : i32
      %305 = tpu.dynamic_rotate %21 by %c17_i32_72 dim 1 : vector<1x256xf32>, i32 -> vector<1x256xf32>
      %c16 = arith.constant 16 : index
      %306 = memref.load %arg2[%c16] : memref<98xf32, #tpu.memory_space<smem>>
      %307 = vector.broadcast %306 : f32 to vector<1x256xf32>
      %308 = arith.mulf %307, %304 : vector<1x256xf32>
      %c65 = arith.constant 65 : index
      %309 = memref.load %arg2[%c65] : memref<98xf32, #tpu.memory_space<smem>>
      %310 = vector.broadcast %309 : f32 to vector<1x256xf32>
      %311 = arith.mulf %310, %305 : vector<1x256xf32>
      %312 = arith.addf %308, %311 : vector<1x256xf32>
      %313 = arith.andi %38, %73 : vector<1x256xi1>
      %cst_73 = arith.constant 0.000000e+00 : f32
      %314 = vector.broadcast %cst_73 : f32 to vector<1x256xf32>
      %315 = arith.select %313, %312, %314 : vector<1x256xi1>, vector<1x256xf32>
      %316 = arith.addf %303, %315 : vector<1x256xf32>
      %c16_i32_74 = arith.constant 16 : i32
      %317 = tpu.dynamic_rotate %18 by %c16_i32_74 dim 1 : vector<1x256xf32>, i32 -> vector<1x256xf32>
      %c16_i32_75 = arith.constant 16 : i32
      %318 = tpu.dynamic_rotate %21 by %c16_i32_75 dim 1 : vector<1x256xf32>, i32 -> vector<1x256xf32>
      %c17 = arith.constant 17 : index
      %319 = memref.load %arg2[%c17] : memref<98xf32, #tpu.memory_space<smem>>
      %320 = vector.broadcast %319 : f32 to vector<1x256xf32>
      %321 = arith.mulf %320, %317 : vector<1x256xf32>
      %c66 = arith.constant 66 : index
      %322 = memref.load %arg2[%c66] : memref<98xf32, #tpu.memory_space<smem>>
      %323 = vector.broadcast %322 : f32 to vector<1x256xf32>
      %324 = arith.mulf %323, %318 : vector<1x256xf32>
      %325 = arith.addf %321, %324 : vector<1x256xf32>
      %326 = arith.andi %38, %78 : vector<1x256xi1>
      %cst_76 = arith.constant 0.000000e+00 : f32
      %327 = vector.broadcast %cst_76 : f32 to vector<1x256xf32>
      %328 = arith.select %326, %325, %327 : vector<1x256xi1>, vector<1x256xf32>
      %329 = arith.addf %316, %328 : vector<1x256xf32>
      %c15_i32_77 = arith.constant 15 : i32
      %330 = tpu.dynamic_rotate %18 by %c15_i32_77 dim 1 : vector<1x256xf32>, i32 -> vector<1x256xf32>
      %c15_i32_78 = arith.constant 15 : i32
      %331 = tpu.dynamic_rotate %21 by %c15_i32_78 dim 1 : vector<1x256xf32>, i32 -> vector<1x256xf32>
      %c18 = arith.constant 18 : index
      %332 = memref.load %arg2[%c18] : memref<98xf32, #tpu.memory_space<smem>>
      %333 = vector.broadcast %332 : f32 to vector<1x256xf32>
      %334 = arith.mulf %333, %330 : vector<1x256xf32>
      %c67 = arith.constant 67 : index
      %335 = memref.load %arg2[%c67] : memref<98xf32, #tpu.memory_space<smem>>
      %336 = vector.broadcast %335 : f32 to vector<1x256xf32>
      %337 = arith.mulf %336, %331 : vector<1x256xf32>
      %338 = arith.addf %334, %337 : vector<1x256xf32>
      %339 = arith.andi %38, %83 : vector<1x256xi1>
      %cst_79 = arith.constant 0.000000e+00 : f32
      %340 = vector.broadcast %cst_79 : f32 to vector<1x256xf32>
      %341 = arith.select %339, %338, %340 : vector<1x256xi1>, vector<1x256xf32>
      %342 = arith.addf %329, %341 : vector<1x256xf32>
      %c14_i32_80 = arith.constant 14 : i32
      %343 = tpu.dynamic_rotate %18 by %c14_i32_80 dim 1 : vector<1x256xf32>, i32 -> vector<1x256xf32>
      %c14_i32_81 = arith.constant 14 : i32
      %344 = tpu.dynamic_rotate %21 by %c14_i32_81 dim 1 : vector<1x256xf32>, i32 -> vector<1x256xf32>
      %c19 = arith.constant 19 : index
      %345 = memref.load %arg2[%c19] : memref<98xf32, #tpu.memory_space<smem>>
      %346 = vector.broadcast %345 : f32 to vector<1x256xf32>
      %347 = arith.mulf %346, %343 : vector<1x256xf32>
      %c68 = arith.constant 68 : index
      %348 = memref.load %arg2[%c68] : memref<98xf32, #tpu.memory_space<smem>>
      %349 = vector.broadcast %348 : f32 to vector<1x256xf32>
      %350 = arith.mulf %349, %344 : vector<1x256xf32>
      %351 = arith.addf %347, %350 : vector<1x256xf32>
      %352 = arith.andi %38, %88 : vector<1x256xi1>
      %cst_82 = arith.constant 0.000000e+00 : f32
      %353 = vector.broadcast %cst_82 : f32 to vector<1x256xf32>
      %354 = arith.select %352, %351, %353 : vector<1x256xi1>, vector<1x256xf32>
      %355 = arith.addf %342, %354 : vector<1x256xf32>
      %c13_i32_83 = arith.constant 13 : i32
      %356 = tpu.dynamic_rotate %18 by %c13_i32_83 dim 1 : vector<1x256xf32>, i32 -> vector<1x256xf32>
      %c13_i32_84 = arith.constant 13 : i32
      %357 = tpu.dynamic_rotate %21 by %c13_i32_84 dim 1 : vector<1x256xf32>, i32 -> vector<1x256xf32>
      %c20 = arith.constant 20 : index
      %358 = memref.load %arg2[%c20] : memref<98xf32, #tpu.memory_space<smem>>
      %359 = vector.broadcast %358 : f32 to vector<1x256xf32>
      %360 = arith.mulf %359, %356 : vector<1x256xf32>
      %c69 = arith.constant 69 : index
      %361 = memref.load %arg2[%c69] : memref<98xf32, #tpu.memory_space<smem>>
      %362 = vector.broadcast %361 : f32 to vector<1x256xf32>
      %363 = arith.mulf %362, %357 : vector<1x256xf32>
      %364 = arith.addf %360, %363 : vector<1x256xf32>
      %365 = arith.andi %38, %93 : vector<1x256xi1>
      %cst_85 = arith.constant 0.000000e+00 : f32
      %366 = vector.broadcast %cst_85 : f32 to vector<1x256xf32>
      %367 = arith.select %365, %364, %366 : vector<1x256xi1>, vector<1x256xf32>
      %368 = arith.addf %355, %367 : vector<1x256xf32>
      %c3_i32_86 = arith.constant 3 : i32
      %369 = tpu.dynamic_rotate %18 by %c3_i32_86 dim 1 : vector<1x256xf32>, i32 -> vector<1x256xf32>
      %c3_i32_87 = arith.constant 3 : i32
      %370 = tpu.dynamic_rotate %21 by %c3_i32_87 dim 1 : vector<1x256xf32>, i32 -> vector<1x256xf32>
      %c21 = arith.constant 21 : index
      %371 = memref.load %arg2[%c21] : memref<98xf32, #tpu.memory_space<smem>>
      %372 = vector.broadcast %371 : f32 to vector<1x256xf32>
      %373 = arith.mulf %372, %369 : vector<1x256xf32>
      %c70 = arith.constant 70 : index
      %374 = memref.load %arg2[%c70] : memref<98xf32, #tpu.memory_space<smem>>
      %375 = vector.broadcast %374 : f32 to vector<1x256xf32>
      %376 = arith.mulf %375, %370 : vector<1x256xf32>
      %377 = arith.addf %373, %376 : vector<1x256xf32>
      %378 = arith.andi %43, %63 : vector<1x256xi1>
      %cst_88 = arith.constant 0.000000e+00 : f32
      %379 = vector.broadcast %cst_88 : f32 to vector<1x256xf32>
      %380 = arith.select %378, %377, %379 : vector<1x256xi1>, vector<1x256xf32>
      %381 = arith.addf %368, %380 : vector<1x256xf32>
      %c2_i32_89 = arith.constant 2 : i32
      %382 = tpu.dynamic_rotate %18 by %c2_i32_89 dim 1 : vector<1x256xf32>, i32 -> vector<1x256xf32>
      %c2_i32_90 = arith.constant 2 : i32
      %383 = tpu.dynamic_rotate %21 by %c2_i32_90 dim 1 : vector<1x256xf32>, i32 -> vector<1x256xf32>
      %c22 = arith.constant 22 : index
      %384 = memref.load %arg2[%c22] : memref<98xf32, #tpu.memory_space<smem>>
      %385 = vector.broadcast %384 : f32 to vector<1x256xf32>
      %386 = arith.mulf %385, %382 : vector<1x256xf32>
      %c71 = arith.constant 71 : index
      %387 = memref.load %arg2[%c71] : memref<98xf32, #tpu.memory_space<smem>>
      %388 = vector.broadcast %387 : f32 to vector<1x256xf32>
      %389 = arith.mulf %388, %383 : vector<1x256xf32>
      %390 = arith.addf %386, %389 : vector<1x256xf32>
      %391 = arith.andi %43, %68 : vector<1x256xi1>
      %cst_91 = arith.constant 0.000000e+00 : f32
      %392 = vector.broadcast %cst_91 : f32 to vector<1x256xf32>
      %393 = arith.select %391, %390, %392 : vector<1x256xi1>, vector<1x256xf32>
      %394 = arith.addf %381, %393 : vector<1x256xf32>
      %c1_i32_92 = arith.constant 1 : i32
      %395 = tpu.dynamic_rotate %18 by %c1_i32_92 dim 1 : vector<1x256xf32>, i32 -> vector<1x256xf32>
      %c1_i32_93 = arith.constant 1 : i32
      %396 = tpu.dynamic_rotate %21 by %c1_i32_93 dim 1 : vector<1x256xf32>, i32 -> vector<1x256xf32>
      %c23 = arith.constant 23 : index
      %397 = memref.load %arg2[%c23] : memref<98xf32, #tpu.memory_space<smem>>
      %398 = vector.broadcast %397 : f32 to vector<1x256xf32>
      %399 = arith.mulf %398, %395 : vector<1x256xf32>
      %c72 = arith.constant 72 : index
      %400 = memref.load %arg2[%c72] : memref<98xf32, #tpu.memory_space<smem>>
      %401 = vector.broadcast %400 : f32 to vector<1x256xf32>
      %402 = arith.mulf %401, %396 : vector<1x256xf32>
      %403 = arith.addf %399, %402 : vector<1x256xf32>
      %404 = arith.andi %43, %73 : vector<1x256xi1>
      %cst_94 = arith.constant 0.000000e+00 : f32
      %405 = vector.broadcast %cst_94 : f32 to vector<1x256xf32>
      %406 = arith.select %404, %403, %405 : vector<1x256xi1>, vector<1x256xf32>
      %407 = arith.addf %394, %406 : vector<1x256xf32>
      %c24 = arith.constant 24 : index
      %408 = memref.load %arg2[%c24] : memref<98xf32, #tpu.memory_space<smem>>
      %409 = vector.broadcast %408 : f32 to vector<1x256xf32>
      %410 = arith.mulf %409, %18 : vector<1x256xf32>
      %c73 = arith.constant 73 : index
      %411 = memref.load %arg2[%c73] : memref<98xf32, #tpu.memory_space<smem>>
      %412 = vector.broadcast %411 : f32 to vector<1x256xf32>
      %413 = arith.mulf %412, %21 : vector<1x256xf32>
      %414 = arith.addf %410, %413 : vector<1x256xf32>
      %415 = arith.andi %43, %78 : vector<1x256xi1>
      %cst_95 = arith.constant 0.000000e+00 : f32
      %416 = vector.broadcast %cst_95 : f32 to vector<1x256xf32>
      %417 = arith.select %415, %414, %416 : vector<1x256xi1>, vector<1x256xf32>
      %418 = arith.addf %407, %417 : vector<1x256xf32>
      %c255_i32 = arith.constant 255 : i32
      %419 = tpu.dynamic_rotate %18 by %c255_i32 dim 1 : vector<1x256xf32>, i32 -> vector<1x256xf32>
      %c255_i32_96 = arith.constant 255 : i32
      %420 = tpu.dynamic_rotate %21 by %c255_i32_96 dim 1 : vector<1x256xf32>, i32 -> vector<1x256xf32>
      %c25 = arith.constant 25 : index
      %421 = memref.load %arg2[%c25] : memref<98xf32, #tpu.memory_space<smem>>
      %422 = vector.broadcast %421 : f32 to vector<1x256xf32>
      %423 = arith.mulf %422, %419 : vector<1x256xf32>
      %c74 = arith.constant 74 : index
      %424 = memref.load %arg2[%c74] : memref<98xf32, #tpu.memory_space<smem>>
      %425 = vector.broadcast %424 : f32 to vector<1x256xf32>
      %426 = arith.mulf %425, %420 : vector<1x256xf32>
      %427 = arith.addf %423, %426 : vector<1x256xf32>
      %428 = arith.andi %43, %83 : vector<1x256xi1>
      %cst_97 = arith.constant 0.000000e+00 : f32
      %429 = vector.broadcast %cst_97 : f32 to vector<1x256xf32>
      %430 = arith.select %428, %427, %429 : vector<1x256xi1>, vector<1x256xf32>
      %431 = arith.addf %418, %430 : vector<1x256xf32>
      %c254_i32 = arith.constant 254 : i32
      %432 = tpu.dynamic_rotate %18 by %c254_i32 dim 1 : vector<1x256xf32>, i32 -> vector<1x256xf32>
      %c254_i32_98 = arith.constant 254 : i32
      %433 = tpu.dynamic_rotate %21 by %c254_i32_98 dim 1 : vector<1x256xf32>, i32 -> vector<1x256xf32>
      %c26 = arith.constant 26 : index
      %434 = memref.load %arg2[%c26] : memref<98xf32, #tpu.memory_space<smem>>
      %435 = vector.broadcast %434 : f32 to vector<1x256xf32>
      %436 = arith.mulf %435, %432 : vector<1x256xf32>
      %c75 = arith.constant 75 : index
      %437 = memref.load %arg2[%c75] : memref<98xf32, #tpu.memory_space<smem>>
      %438 = vector.broadcast %437 : f32 to vector<1x256xf32>
      %439 = arith.mulf %438, %433 : vector<1x256xf32>
      %440 = arith.addf %436, %439 : vector<1x256xf32>
      %441 = arith.andi %43, %88 : vector<1x256xi1>
      %cst_99 = arith.constant 0.000000e+00 : f32
      %442 = vector.broadcast %cst_99 : f32 to vector<1x256xf32>
      %443 = arith.select %441, %440, %442 : vector<1x256xi1>, vector<1x256xf32>
      %444 = arith.addf %431, %443 : vector<1x256xf32>
      %c253_i32 = arith.constant 253 : i32
      %445 = tpu.dynamic_rotate %18 by %c253_i32 dim 1 : vector<1x256xf32>, i32 -> vector<1x256xf32>
      %c253_i32_100 = arith.constant 253 : i32
      %446 = tpu.dynamic_rotate %21 by %c253_i32_100 dim 1 : vector<1x256xf32>, i32 -> vector<1x256xf32>
      %c27 = arith.constant 27 : index
      %447 = memref.load %arg2[%c27] : memref<98xf32, #tpu.memory_space<smem>>
      %448 = vector.broadcast %447 : f32 to vector<1x256xf32>
      %449 = arith.mulf %448, %445 : vector<1x256xf32>
      %c76 = arith.constant 76 : index
      %450 = memref.load %arg2[%c76] : memref<98xf32, #tpu.memory_space<smem>>
      %451 = vector.broadcast %450 : f32 to vector<1x256xf32>
      %452 = arith.mulf %451, %446 : vector<1x256xf32>
      %453 = arith.addf %449, %452 : vector<1x256xf32>
      %454 = arith.andi %43, %93 : vector<1x256xi1>
      %cst_101 = arith.constant 0.000000e+00 : f32
      %455 = vector.broadcast %cst_101 : f32 to vector<1x256xf32>
      %456 = arith.select %454, %453, %455 : vector<1x256xi1>, vector<1x256xf32>
      %457 = arith.addf %444, %456 : vector<1x256xf32>
      %c243_i32 = arith.constant 243 : i32
      %458 = tpu.dynamic_rotate %18 by %c243_i32 dim 1 : vector<1x256xf32>, i32 -> vector<1x256xf32>
      %c243_i32_102 = arith.constant 243 : i32
      %459 = tpu.dynamic_rotate %21 by %c243_i32_102 dim 1 : vector<1x256xf32>, i32 -> vector<1x256xf32>
      %c28 = arith.constant 28 : index
      %460 = memref.load %arg2[%c28] : memref<98xf32, #tpu.memory_space<smem>>
      %461 = vector.broadcast %460 : f32 to vector<1x256xf32>
      %462 = arith.mulf %461, %458 : vector<1x256xf32>
      %c77 = arith.constant 77 : index
      %463 = memref.load %arg2[%c77] : memref<98xf32, #tpu.memory_space<smem>>
      %464 = vector.broadcast %463 : f32 to vector<1x256xf32>
      %465 = arith.mulf %464, %459 : vector<1x256xf32>
      %466 = arith.addf %462, %465 : vector<1x256xf32>
      %467 = arith.andi %48, %63 : vector<1x256xi1>
      %cst_103 = arith.constant 0.000000e+00 : f32
      %468 = vector.broadcast %cst_103 : f32 to vector<1x256xf32>
      %469 = arith.select %467, %466, %468 : vector<1x256xi1>, vector<1x256xf32>
      %470 = arith.addf %457, %469 : vector<1x256xf32>
      %c242_i32 = arith.constant 242 : i32
      %471 = tpu.dynamic_rotate %18 by %c242_i32 dim 1 : vector<1x256xf32>, i32 -> vector<1x256xf32>
      %c242_i32_104 = arith.constant 242 : i32
      %472 = tpu.dynamic_rotate %21 by %c242_i32_104 dim 1 : vector<1x256xf32>, i32 -> vector<1x256xf32>
      %c29 = arith.constant 29 : index
      %473 = memref.load %arg2[%c29] : memref<98xf32, #tpu.memory_space<smem>>
      %474 = vector.broadcast %473 : f32 to vector<1x256xf32>
      %475 = arith.mulf %474, %471 : vector<1x256xf32>
      %c78 = arith.constant 78 : index
      %476 = memref.load %arg2[%c78] : memref<98xf32, #tpu.memory_space<smem>>
      %477 = vector.broadcast %476 : f32 to vector<1x256xf32>
      %478 = arith.mulf %477, %472 : vector<1x256xf32>
      %479 = arith.addf %475, %478 : vector<1x256xf32>
      %480 = arith.andi %48, %68 : vector<1x256xi1>
      %cst_105 = arith.constant 0.000000e+00 : f32
      %481 = vector.broadcast %cst_105 : f32 to vector<1x256xf32>
      %482 = arith.select %480, %479, %481 : vector<1x256xi1>, vector<1x256xf32>
      %483 = arith.addf %470, %482 : vector<1x256xf32>
      %c241_i32 = arith.constant 241 : i32
      %484 = tpu.dynamic_rotate %18 by %c241_i32 dim 1 : vector<1x256xf32>, i32 -> vector<1x256xf32>
      %c241_i32_106 = arith.constant 241 : i32
      %485 = tpu.dynamic_rotate %21 by %c241_i32_106 dim 1 : vector<1x256xf32>, i32 -> vector<1x256xf32>
      %c30 = arith.constant 30 : index
      %486 = memref.load %arg2[%c30] : memref<98xf32, #tpu.memory_space<smem>>
      %487 = vector.broadcast %486 : f32 to vector<1x256xf32>
      %488 = arith.mulf %487, %484 : vector<1x256xf32>
      %c79 = arith.constant 79 : index
      %489 = memref.load %arg2[%c79] : memref<98xf32, #tpu.memory_space<smem>>
      %490 = vector.broadcast %489 : f32 to vector<1x256xf32>
      %491 = arith.mulf %490, %485 : vector<1x256xf32>
      %492 = arith.addf %488, %491 : vector<1x256xf32>
      %493 = arith.andi %48, %73 : vector<1x256xi1>
      %cst_107 = arith.constant 0.000000e+00 : f32
      %494 = vector.broadcast %cst_107 : f32 to vector<1x256xf32>
      %495 = arith.select %493, %492, %494 : vector<1x256xi1>, vector<1x256xf32>
      %496 = arith.addf %483, %495 : vector<1x256xf32>
      %c240_i32_108 = arith.constant 240 : i32
      %497 = tpu.dynamic_rotate %18 by %c240_i32_108 dim 1 : vector<1x256xf32>, i32 -> vector<1x256xf32>
      %c240_i32_109 = arith.constant 240 : i32
      %498 = tpu.dynamic_rotate %21 by %c240_i32_109 dim 1 : vector<1x256xf32>, i32 -> vector<1x256xf32>
      %c31 = arith.constant 31 : index
      %499 = memref.load %arg2[%c31] : memref<98xf32, #tpu.memory_space<smem>>
      %500 = vector.broadcast %499 : f32 to vector<1x256xf32>
      %501 = arith.mulf %500, %497 : vector<1x256xf32>
      %c80 = arith.constant 80 : index
      %502 = memref.load %arg2[%c80] : memref<98xf32, #tpu.memory_space<smem>>
      %503 = vector.broadcast %502 : f32 to vector<1x256xf32>
      %504 = arith.mulf %503, %498 : vector<1x256xf32>
      %505 = arith.addf %501, %504 : vector<1x256xf32>
      %506 = arith.andi %48, %78 : vector<1x256xi1>
      %cst_110 = arith.constant 0.000000e+00 : f32
      %507 = vector.broadcast %cst_110 : f32 to vector<1x256xf32>
      %508 = arith.select %506, %505, %507 : vector<1x256xi1>, vector<1x256xf32>
      %509 = arith.addf %496, %508 : vector<1x256xf32>
      %c239_i32 = arith.constant 239 : i32
      %510 = tpu.dynamic_rotate %18 by %c239_i32 dim 1 : vector<1x256xf32>, i32 -> vector<1x256xf32>
      %c239_i32_111 = arith.constant 239 : i32
      %511 = tpu.dynamic_rotate %21 by %c239_i32_111 dim 1 : vector<1x256xf32>, i32 -> vector<1x256xf32>
      %c32 = arith.constant 32 : index
      %512 = memref.load %arg2[%c32] : memref<98xf32, #tpu.memory_space<smem>>
      %513 = vector.broadcast %512 : f32 to vector<1x256xf32>
      %514 = arith.mulf %513, %510 : vector<1x256xf32>
      %c81 = arith.constant 81 : index
      %515 = memref.load %arg2[%c81] : memref<98xf32, #tpu.memory_space<smem>>
      %516 = vector.broadcast %515 : f32 to vector<1x256xf32>
      %517 = arith.mulf %516, %511 : vector<1x256xf32>
      %518 = arith.addf %514, %517 : vector<1x256xf32>
      %519 = arith.andi %48, %83 : vector<1x256xi1>
      %cst_112 = arith.constant 0.000000e+00 : f32
      %520 = vector.broadcast %cst_112 : f32 to vector<1x256xf32>
      %521 = arith.select %519, %518, %520 : vector<1x256xi1>, vector<1x256xf32>
      %522 = arith.addf %509, %521 : vector<1x256xf32>
      %c238_i32 = arith.constant 238 : i32
      %523 = tpu.dynamic_rotate %18 by %c238_i32 dim 1 : vector<1x256xf32>, i32 -> vector<1x256xf32>
      %c238_i32_113 = arith.constant 238 : i32
      %524 = tpu.dynamic_rotate %21 by %c238_i32_113 dim 1 : vector<1x256xf32>, i32 -> vector<1x256xf32>
      %c33 = arith.constant 33 : index
      %525 = memref.load %arg2[%c33] : memref<98xf32, #tpu.memory_space<smem>>
      %526 = vector.broadcast %525 : f32 to vector<1x256xf32>
      %527 = arith.mulf %526, %523 : vector<1x256xf32>
      %c82 = arith.constant 82 : index
      %528 = memref.load %arg2[%c82] : memref<98xf32, #tpu.memory_space<smem>>
      %529 = vector.broadcast %528 : f32 to vector<1x256xf32>
      %530 = arith.mulf %529, %524 : vector<1x256xf32>
      %531 = arith.addf %527, %530 : vector<1x256xf32>
      %532 = arith.andi %48, %88 : vector<1x256xi1>
      %cst_114 = arith.constant 0.000000e+00 : f32
      %533 = vector.broadcast %cst_114 : f32 to vector<1x256xf32>
      %534 = arith.select %532, %531, %533 : vector<1x256xi1>, vector<1x256xf32>
      %535 = arith.addf %522, %534 : vector<1x256xf32>
      %c237_i32 = arith.constant 237 : i32
      %536 = tpu.dynamic_rotate %18 by %c237_i32 dim 1 : vector<1x256xf32>, i32 -> vector<1x256xf32>
      %c237_i32_115 = arith.constant 237 : i32
      %537 = tpu.dynamic_rotate %21 by %c237_i32_115 dim 1 : vector<1x256xf32>, i32 -> vector<1x256xf32>
      %c34 = arith.constant 34 : index
      %538 = memref.load %arg2[%c34] : memref<98xf32, #tpu.memory_space<smem>>
      %539 = vector.broadcast %538 : f32 to vector<1x256xf32>
      %540 = arith.mulf %539, %536 : vector<1x256xf32>
      %c83 = arith.constant 83 : index
      %541 = memref.load %arg2[%c83] : memref<98xf32, #tpu.memory_space<smem>>
      %542 = vector.broadcast %541 : f32 to vector<1x256xf32>
      %543 = arith.mulf %542, %537 : vector<1x256xf32>
      %544 = arith.addf %540, %543 : vector<1x256xf32>
      %545 = arith.andi %48, %93 : vector<1x256xi1>
      %cst_116 = arith.constant 0.000000e+00 : f32
      %546 = vector.broadcast %cst_116 : f32 to vector<1x256xf32>
      %547 = arith.select %545, %544, %546 : vector<1x256xi1>, vector<1x256xf32>
      %548 = arith.addf %535, %547 : vector<1x256xf32>
      %c227_i32 = arith.constant 227 : i32
      %549 = tpu.dynamic_rotate %18 by %c227_i32 dim 1 : vector<1x256xf32>, i32 -> vector<1x256xf32>
      %c227_i32_117 = arith.constant 227 : i32
      %550 = tpu.dynamic_rotate %21 by %c227_i32_117 dim 1 : vector<1x256xf32>, i32 -> vector<1x256xf32>
      %c35 = arith.constant 35 : index
      %551 = memref.load %arg2[%c35] : memref<98xf32, #tpu.memory_space<smem>>
      %552 = vector.broadcast %551 : f32 to vector<1x256xf32>
      %553 = arith.mulf %552, %549 : vector<1x256xf32>
      %c84 = arith.constant 84 : index
      %554 = memref.load %arg2[%c84] : memref<98xf32, #tpu.memory_space<smem>>
      %555 = vector.broadcast %554 : f32 to vector<1x256xf32>
      %556 = arith.mulf %555, %550 : vector<1x256xf32>
      %557 = arith.addf %553, %556 : vector<1x256xf32>
      %558 = arith.andi %53, %63 : vector<1x256xi1>
      %cst_118 = arith.constant 0.000000e+00 : f32
      %559 = vector.broadcast %cst_118 : f32 to vector<1x256xf32>
      %560 = arith.select %558, %557, %559 : vector<1x256xi1>, vector<1x256xf32>
      %561 = arith.addf %548, %560 : vector<1x256xf32>
      %c226_i32 = arith.constant 226 : i32
      %562 = tpu.dynamic_rotate %18 by %c226_i32 dim 1 : vector<1x256xf32>, i32 -> vector<1x256xf32>
      %c226_i32_119 = arith.constant 226 : i32
      %563 = tpu.dynamic_rotate %21 by %c226_i32_119 dim 1 : vector<1x256xf32>, i32 -> vector<1x256xf32>
      %c36 = arith.constant 36 : index
      %564 = memref.load %arg2[%c36] : memref<98xf32, #tpu.memory_space<smem>>
      %565 = vector.broadcast %564 : f32 to vector<1x256xf32>
      %566 = arith.mulf %565, %562 : vector<1x256xf32>
      %c85 = arith.constant 85 : index
      %567 = memref.load %arg2[%c85] : memref<98xf32, #tpu.memory_space<smem>>
      %568 = vector.broadcast %567 : f32 to vector<1x256xf32>
      %569 = arith.mulf %568, %563 : vector<1x256xf32>
      %570 = arith.addf %566, %569 : vector<1x256xf32>
      %571 = arith.andi %53, %68 : vector<1x256xi1>
      %cst_120 = arith.constant 0.000000e+00 : f32
      %572 = vector.broadcast %cst_120 : f32 to vector<1x256xf32>
      %573 = arith.select %571, %570, %572 : vector<1x256xi1>, vector<1x256xf32>
      %574 = arith.addf %561, %573 : vector<1x256xf32>
      %c225_i32 = arith.constant 225 : i32
      %575 = tpu.dynamic_rotate %18 by %c225_i32 dim 1 : vector<1x256xf32>, i32 -> vector<1x256xf32>
      %c225_i32_121 = arith.constant 225 : i32
      %576 = tpu.dynamic_rotate %21 by %c225_i32_121 dim 1 : vector<1x256xf32>, i32 -> vector<1x256xf32>
      %c37 = arith.constant 37 : index
      %577 = memref.load %arg2[%c37] : memref<98xf32, #tpu.memory_space<smem>>
      %578 = vector.broadcast %577 : f32 to vector<1x256xf32>
      %579 = arith.mulf %578, %575 : vector<1x256xf32>
      %c86 = arith.constant 86 : index
      %580 = memref.load %arg2[%c86] : memref<98xf32, #tpu.memory_space<smem>>
      %581 = vector.broadcast %580 : f32 to vector<1x256xf32>
      %582 = arith.mulf %581, %576 : vector<1x256xf32>
      %583 = arith.addf %579, %582 : vector<1x256xf32>
      %584 = arith.andi %53, %73 : vector<1x256xi1>
      %cst_122 = arith.constant 0.000000e+00 : f32
      %585 = vector.broadcast %cst_122 : f32 to vector<1x256xf32>
      %586 = arith.select %584, %583, %585 : vector<1x256xi1>, vector<1x256xf32>
      %587 = arith.addf %574, %586 : vector<1x256xf32>
      %c224_i32_123 = arith.constant 224 : i32
      %588 = tpu.dynamic_rotate %18 by %c224_i32_123 dim 1 : vector<1x256xf32>, i32 -> vector<1x256xf32>
      %c224_i32_124 = arith.constant 224 : i32
      %589 = tpu.dynamic_rotate %21 by %c224_i32_124 dim 1 : vector<1x256xf32>, i32 -> vector<1x256xf32>
      %c38 = arith.constant 38 : index
      %590 = memref.load %arg2[%c38] : memref<98xf32, #tpu.memory_space<smem>>
      %591 = vector.broadcast %590 : f32 to vector<1x256xf32>
      %592 = arith.mulf %591, %588 : vector<1x256xf32>
      %c87 = arith.constant 87 : index
      %593 = memref.load %arg2[%c87] : memref<98xf32, #tpu.memory_space<smem>>
      %594 = vector.broadcast %593 : f32 to vector<1x256xf32>
      %595 = arith.mulf %594, %589 : vector<1x256xf32>
      %596 = arith.addf %592, %595 : vector<1x256xf32>
      %597 = arith.andi %53, %78 : vector<1x256xi1>
      %cst_125 = arith.constant 0.000000e+00 : f32
      %598 = vector.broadcast %cst_125 : f32 to vector<1x256xf32>
      %599 = arith.select %597, %596, %598 : vector<1x256xi1>, vector<1x256xf32>
      %600 = arith.addf %587, %599 : vector<1x256xf32>
      %c223_i32 = arith.constant 223 : i32
      %601 = tpu.dynamic_rotate %18 by %c223_i32 dim 1 : vector<1x256xf32>, i32 -> vector<1x256xf32>
      %c223_i32_126 = arith.constant 223 : i32
      %602 = tpu.dynamic_rotate %21 by %c223_i32_126 dim 1 : vector<1x256xf32>, i32 -> vector<1x256xf32>
      %c39 = arith.constant 39 : index
      %603 = memref.load %arg2[%c39] : memref<98xf32, #tpu.memory_space<smem>>
      %604 = vector.broadcast %603 : f32 to vector<1x256xf32>
      %605 = arith.mulf %604, %601 : vector<1x256xf32>
      %c88 = arith.constant 88 : index
      %606 = memref.load %arg2[%c88] : memref<98xf32, #tpu.memory_space<smem>>
      %607 = vector.broadcast %606 : f32 to vector<1x256xf32>
      %608 = arith.mulf %607, %602 : vector<1x256xf32>
      %609 = arith.addf %605, %608 : vector<1x256xf32>
      %610 = arith.andi %53, %83 : vector<1x256xi1>
      %cst_127 = arith.constant 0.000000e+00 : f32
      %611 = vector.broadcast %cst_127 : f32 to vector<1x256xf32>
      %612 = arith.select %610, %609, %611 : vector<1x256xi1>, vector<1x256xf32>
      %613 = arith.addf %600, %612 : vector<1x256xf32>
      %c222_i32 = arith.constant 222 : i32
      %614 = tpu.dynamic_rotate %18 by %c222_i32 dim 1 : vector<1x256xf32>, i32 -> vector<1x256xf32>
      %c222_i32_128 = arith.constant 222 : i32
      %615 = tpu.dynamic_rotate %21 by %c222_i32_128 dim 1 : vector<1x256xf32>, i32 -> vector<1x256xf32>
      %c40 = arith.constant 40 : index
      %616 = memref.load %arg2[%c40] : memref<98xf32, #tpu.memory_space<smem>>
      %617 = vector.broadcast %616 : f32 to vector<1x256xf32>
      %618 = arith.mulf %617, %614 : vector<1x256xf32>
      %c89 = arith.constant 89 : index
      %619 = memref.load %arg2[%c89] : memref<98xf32, #tpu.memory_space<smem>>
      %620 = vector.broadcast %619 : f32 to vector<1x256xf32>
      %621 = arith.mulf %620, %615 : vector<1x256xf32>
      %622 = arith.addf %618, %621 : vector<1x256xf32>
      %623 = arith.andi %53, %88 : vector<1x256xi1>
      %cst_129 = arith.constant 0.000000e+00 : f32
      %624 = vector.broadcast %cst_129 : f32 to vector<1x256xf32>
      %625 = arith.select %623, %622, %624 : vector<1x256xi1>, vector<1x256xf32>
      %626 = arith.addf %613, %625 : vector<1x256xf32>
      %c221_i32 = arith.constant 221 : i32
      %627 = tpu.dynamic_rotate %18 by %c221_i32 dim 1 : vector<1x256xf32>, i32 -> vector<1x256xf32>
      %c221_i32_130 = arith.constant 221 : i32
      %628 = tpu.dynamic_rotate %21 by %c221_i32_130 dim 1 : vector<1x256xf32>, i32 -> vector<1x256xf32>
      %c41 = arith.constant 41 : index
      %629 = memref.load %arg2[%c41] : memref<98xf32, #tpu.memory_space<smem>>
      %630 = vector.broadcast %629 : f32 to vector<1x256xf32>
      %631 = arith.mulf %630, %627 : vector<1x256xf32>
      %c90 = arith.constant 90 : index
      %632 = memref.load %arg2[%c90] : memref<98xf32, #tpu.memory_space<smem>>
      %633 = vector.broadcast %632 : f32 to vector<1x256xf32>
      %634 = arith.mulf %633, %628 : vector<1x256xf32>
      %635 = arith.addf %631, %634 : vector<1x256xf32>
      %636 = arith.andi %53, %93 : vector<1x256xi1>
      %cst_131 = arith.constant 0.000000e+00 : f32
      %637 = vector.broadcast %cst_131 : f32 to vector<1x256xf32>
      %638 = arith.select %636, %635, %637 : vector<1x256xi1>, vector<1x256xf32>
      %639 = arith.addf %626, %638 : vector<1x256xf32>
      %c211_i32 = arith.constant 211 : i32
      %640 = tpu.dynamic_rotate %18 by %c211_i32 dim 1 : vector<1x256xf32>, i32 -> vector<1x256xf32>
      %c211_i32_132 = arith.constant 211 : i32
      %641 = tpu.dynamic_rotate %21 by %c211_i32_132 dim 1 : vector<1x256xf32>, i32 -> vector<1x256xf32>
      %c42 = arith.constant 42 : index
      %642 = memref.load %arg2[%c42] : memref<98xf32, #tpu.memory_space<smem>>
      %643 = vector.broadcast %642 : f32 to vector<1x256xf32>
      %644 = arith.mulf %643, %640 : vector<1x256xf32>
      %c91 = arith.constant 91 : index
      %645 = memref.load %arg2[%c91] : memref<98xf32, #tpu.memory_space<smem>>
      %646 = vector.broadcast %645 : f32 to vector<1x256xf32>
      %647 = arith.mulf %646, %641 : vector<1x256xf32>
      %648 = arith.addf %644, %647 : vector<1x256xf32>
      %649 = arith.andi %58, %63 : vector<1x256xi1>
      %cst_133 = arith.constant 0.000000e+00 : f32
      %650 = vector.broadcast %cst_133 : f32 to vector<1x256xf32>
      %651 = arith.select %649, %648, %650 : vector<1x256xi1>, vector<1x256xf32>
      %652 = arith.addf %639, %651 : vector<1x256xf32>
      %c210_i32 = arith.constant 210 : i32
      %653 = tpu.dynamic_rotate %18 by %c210_i32 dim 1 : vector<1x256xf32>, i32 -> vector<1x256xf32>
      %c210_i32_134 = arith.constant 210 : i32
      %654 = tpu.dynamic_rotate %21 by %c210_i32_134 dim 1 : vector<1x256xf32>, i32 -> vector<1x256xf32>
      %c43 = arith.constant 43 : index
      %655 = memref.load %arg2[%c43] : memref<98xf32, #tpu.memory_space<smem>>
      %656 = vector.broadcast %655 : f32 to vector<1x256xf32>
      %657 = arith.mulf %656, %653 : vector<1x256xf32>
      %c92 = arith.constant 92 : index
      %658 = memref.load %arg2[%c92] : memref<98xf32, #tpu.memory_space<smem>>
      %659 = vector.broadcast %658 : f32 to vector<1x256xf32>
      %660 = arith.mulf %659, %654 : vector<1x256xf32>
      %661 = arith.addf %657, %660 : vector<1x256xf32>
      %662 = arith.andi %58, %68 : vector<1x256xi1>
      %cst_135 = arith.constant 0.000000e+00 : f32
      %663 = vector.broadcast %cst_135 : f32 to vector<1x256xf32>
      %664 = arith.select %662, %661, %663 : vector<1x256xi1>, vector<1x256xf32>
      %665 = arith.addf %652, %664 : vector<1x256xf32>
      %c209_i32 = arith.constant 209 : i32
      %666 = tpu.dynamic_rotate %18 by %c209_i32 dim 1 : vector<1x256xf32>, i32 -> vector<1x256xf32>
      %c209_i32_136 = arith.constant 209 : i32
      %667 = tpu.dynamic_rotate %21 by %c209_i32_136 dim 1 : vector<1x256xf32>, i32 -> vector<1x256xf32>
      %c44 = arith.constant 44 : index
      %668 = memref.load %arg2[%c44] : memref<98xf32, #tpu.memory_space<smem>>
      %669 = vector.broadcast %668 : f32 to vector<1x256xf32>
      %670 = arith.mulf %669, %666 : vector<1x256xf32>
      %c93 = arith.constant 93 : index
      %671 = memref.load %arg2[%c93] : memref<98xf32, #tpu.memory_space<smem>>
      %672 = vector.broadcast %671 : f32 to vector<1x256xf32>
      %673 = arith.mulf %672, %667 : vector<1x256xf32>
      %674 = arith.addf %670, %673 : vector<1x256xf32>
      %675 = arith.andi %58, %73 : vector<1x256xi1>
      %cst_137 = arith.constant 0.000000e+00 : f32
      %676 = vector.broadcast %cst_137 : f32 to vector<1x256xf32>
      %677 = arith.select %675, %674, %676 : vector<1x256xi1>, vector<1x256xf32>
      %678 = arith.addf %665, %677 : vector<1x256xf32>
      %c208_i32_138 = arith.constant 208 : i32
      %679 = tpu.dynamic_rotate %18 by %c208_i32_138 dim 1 : vector<1x256xf32>, i32 -> vector<1x256xf32>
      %c208_i32_139 = arith.constant 208 : i32
      %680 = tpu.dynamic_rotate %21 by %c208_i32_139 dim 1 : vector<1x256xf32>, i32 -> vector<1x256xf32>
      %c45 = arith.constant 45 : index
      %681 = memref.load %arg2[%c45] : memref<98xf32, #tpu.memory_space<smem>>
      %682 = vector.broadcast %681 : f32 to vector<1x256xf32>
      %683 = arith.mulf %682, %679 : vector<1x256xf32>
      %c94 = arith.constant 94 : index
      %684 = memref.load %arg2[%c94] : memref<98xf32, #tpu.memory_space<smem>>
      %685 = vector.broadcast %684 : f32 to vector<1x256xf32>
      %686 = arith.mulf %685, %680 : vector<1x256xf32>
      %687 = arith.addf %683, %686 : vector<1x256xf32>
      %688 = arith.andi %58, %78 : vector<1x256xi1>
      %cst_140 = arith.constant 0.000000e+00 : f32
      %689 = vector.broadcast %cst_140 : f32 to vector<1x256xf32>
      %690 = arith.select %688, %687, %689 : vector<1x256xi1>, vector<1x256xf32>
      %691 = arith.addf %678, %690 : vector<1x256xf32>
      %c207_i32 = arith.constant 207 : i32
      %692 = tpu.dynamic_rotate %18 by %c207_i32 dim 1 : vector<1x256xf32>, i32 -> vector<1x256xf32>
      %c207_i32_141 = arith.constant 207 : i32
      %693 = tpu.dynamic_rotate %21 by %c207_i32_141 dim 1 : vector<1x256xf32>, i32 -> vector<1x256xf32>
      %c46 = arith.constant 46 : index
      %694 = memref.load %arg2[%c46] : memref<98xf32, #tpu.memory_space<smem>>
      %695 = vector.broadcast %694 : f32 to vector<1x256xf32>
      %696 = arith.mulf %695, %692 : vector<1x256xf32>
      %c95 = arith.constant 95 : index
      %697 = memref.load %arg2[%c95] : memref<98xf32, #tpu.memory_space<smem>>
      %698 = vector.broadcast %697 : f32 to vector<1x256xf32>
      %699 = arith.mulf %698, %693 : vector<1x256xf32>
      %700 = arith.addf %696, %699 : vector<1x256xf32>
      %701 = arith.andi %58, %83 : vector<1x256xi1>
      %cst_142 = arith.constant 0.000000e+00 : f32
      %702 = vector.broadcast %cst_142 : f32 to vector<1x256xf32>
      %703 = arith.select %701, %700, %702 : vector<1x256xi1>, vector<1x256xf32>
      %704 = arith.addf %691, %703 : vector<1x256xf32>
      %c206_i32 = arith.constant 206 : i32
      %705 = tpu.dynamic_rotate %18 by %c206_i32 dim 1 : vector<1x256xf32>, i32 -> vector<1x256xf32>
      %c206_i32_143 = arith.constant 206 : i32
      %706 = tpu.dynamic_rotate %21 by %c206_i32_143 dim 1 : vector<1x256xf32>, i32 -> vector<1x256xf32>
      %c47 = arith.constant 47 : index
      %707 = memref.load %arg2[%c47] : memref<98xf32, #tpu.memory_space<smem>>
      %708 = vector.broadcast %707 : f32 to vector<1x256xf32>
      %709 = arith.mulf %708, %705 : vector<1x256xf32>
      %c96 = arith.constant 96 : index
      %710 = memref.load %arg2[%c96] : memref<98xf32, #tpu.memory_space<smem>>
      %711 = vector.broadcast %710 : f32 to vector<1x256xf32>
      %712 = arith.mulf %711, %706 : vector<1x256xf32>
      %713 = arith.addf %709, %712 : vector<1x256xf32>
      %714 = arith.andi %58, %88 : vector<1x256xi1>
      %cst_144 = arith.constant 0.000000e+00 : f32
      %715 = vector.broadcast %cst_144 : f32 to vector<1x256xf32>
      %716 = arith.select %714, %713, %715 : vector<1x256xi1>, vector<1x256xf32>
      %717 = arith.addf %704, %716 : vector<1x256xf32>
      %c205_i32 = arith.constant 205 : i32
      %718 = tpu.dynamic_rotate %18 by %c205_i32 dim 1 : vector<1x256xf32>, i32 -> vector<1x256xf32>
      %c205_i32_145 = arith.constant 205 : i32
      %719 = tpu.dynamic_rotate %21 by %c205_i32_145 dim 1 : vector<1x256xf32>, i32 -> vector<1x256xf32>
      %c48 = arith.constant 48 : index
      %720 = memref.load %arg2[%c48] : memref<98xf32, #tpu.memory_space<smem>>
      %721 = vector.broadcast %720 : f32 to vector<1x256xf32>
      %722 = arith.mulf %721, %718 : vector<1x256xf32>
      %c97 = arith.constant 97 : index
      %723 = memref.load %arg2[%c97] : memref<98xf32, #tpu.memory_space<smem>>
      %724 = vector.broadcast %723 : f32 to vector<1x256xf32>
      %725 = arith.mulf %724, %719 : vector<1x256xf32>
      %726 = arith.addf %722, %725 : vector<1x256xf32>
      %727 = arith.andi %58, %93 : vector<1x256xi1>
      %cst_146 = arith.constant 0.000000e+00 : f32
      %728 = vector.broadcast %cst_146 : f32 to vector<1x256xf32>
      %729 = arith.select %727, %726, %728 : vector<1x256xi1>, vector<1x256xf32>
      %730 = arith.addf %717, %729 : vector<1x256xf32>
      %731 = arith.negf %730 : vector<1x256xf32>
      %732 = math.exp %731 : vector<1x256xf32>
      %cst_147 = arith.constant 1.000000e+00 : f32
      %733 = vector.broadcast %cst_147 : f32 to vector<1x256xf32>
      %734 = arith.addf %733, %732 : vector<1x256xf32>
      %735 = arith.divf %733, %734 : vector<1x256xf32>
      %c0_148 = arith.constant 0 : index
      %c0_149 = arith.constant 0 : index
      %c0_150 = arith.constant 0 : index
      %736 = vector.load %arg6[%c0_148, %c0_149, %c0_150] : memref<1x1x256xf32, #tpu.memory_space<vmem>>, vector<1x1x256xf32>
      %737 = vector.shape_cast %736 : vector<1x1x256xf32> to vector<1x256xf32>
      %738 = vector.shape_cast %735 : vector<1x256xf32> to vector<1x1x256xf32>
      tpu.vector_store %arg6[%c0_148, %c0_149, %c0_150], %738 {strides = array<i32>} : memref<1x1x256xf32, #tpu.memory_space<vmem>>, vector<1x1x256xf32>,
    } else {
    }
    return
  }
  func.func @transform_0(%arg0: i32, %arg1: i32) -> i32 {
    %c0_i32 = arith.constant 0 : i32
    %c0_i32_0 = arith.constant 0 : i32
    return %c0_i32 : i32
  }
  func.func @transform_1(%arg0: i32, %arg1: i32) -> i32 {
    %c0_i32 = arith.constant 0 : i32
    %c0_i32_0 = arith.constant 0 : i32
    return %c0_i32 : i32
  }
  func.func @transform_2(%arg0: i32, %arg1: i32) -> (i32, i32, i32) {
    %c0_i32 = arith.constant 0 : i32
    %c0_i32_0 = arith.constant 0 : i32
    return %arg0, %arg1, %c0_i32 : i32, i32, i32
  }
  func.func @transform_3(%arg0: i32, %arg1: i32) -> (i32, i32) {
    %c0_i32 = arith.constant 0 : i32
    %c0_i32_0 = arith.constant 0 : i32
    %c0_i32_1 = arith.constant 0 : i32
    return %c0_i32, %c0_i32_0 : i32, i32
  }
  func.func @transform_4(%arg0: i32, %arg1: i32) -> (i32, i32, i32) {
    %c0_i32 = arith.constant 0 : i32
    %c0_i32_0 = arith.constant 0 : i32
    %c0_i32_1 = arith.constant 0 : i32
    return %arg0, %c0_i32, %c0_i32_0 : i32, i32, i32
  }
}

</mosaic_0001>

<llo_original>
// kernel: tpu_custom_call.1
$region0: #{tpu_custom_call.1}
  #allocation0 [shape = 'u32[]', space=smem, size = 0x4, offset = 0x4, fixed_abs, tag = 'smem constant byte address 0x4 - core index']
  #allocation1 [shape = 'u32[144,128]{1,0:T(1,128)}', space=vmem, size = 0x12000, scoped, tag = 'internal scratch']
  #allocation2 [shape = 'f32[1,256]{1,0:T(1,128)}', space=vmem, size = 0x400, scoped, tag = 'scratch operand']
  #allocation3 [shape = 'f32[1,256]{1,0:T(1,128)}', space=vmem, size = 0x400, scoped, tag = 'scratch operand']
  #allocation4 [shape = 'f32[1]{0:T(128)S(6)}', space=smem, size = 0x200, scoped, tag = 'scoped memory for tpu_custom_call.1']
  %s0 = inlined_call_operand.vmem [shape: f32[98], index: 0, kind: input, shape index: {}]
  %s1 = inlined_call_operand.<no memory space> [shape: f32[1], index: 1, kind: input, shape index: {}]
  %s2 = inlined_call_operand.hbm [shape: f32[2,4,256], index: 2, kind: input, shape index: {}]
  %s3 = inlined_call_operand.vmem [shape: s32[1,256], index: 3, kind: input, shape index: {}]
  %s4 = inlined_call_operand.hbm [shape: f32[2,1,256], index: 4, kind: output, shape index: {}]
  %s5 = sld [smem:[#allocation0]]
  $region65: #{tpu_custom_call.1} parent=0
    _
  %s7 = ssub.s32 1, %s5
  %s8 = scalar_select 0, %s7, %s5
  %9 = sst [smem:[#allocation4]] %s1
  $region1: #{tpu_custom_call.1} parent=0
    #allocation5 [shape = 'u8[512]{0}', space=smem, size = 0x200, scoped, tag = 'input window, operand 0, single buffered']
    #allocation6 [shape = 's32[2]{0}', space=sflag, size = 0x8, scoped, tag = 'scoped memory for tpu_custom_call.1']
    #allocation7 [shape = 's32[2]{0}', space=sflag, size = 0x8, scoped, tag = 'scoped memory for tpu_custom_call.1']
    #allocation8 [shape = 's32[2]{0}', space=sflag, size = 0x8, scoped, tag = 'scoped memory for tpu_custom_call.1']
    #allocation9 [shape = 'u8[8192]{0}', space=vmem, size = 0x2000, scoped, tag = 'input window, operand 2']
    #allocation10 [shape = 'u8[2048]{0}', space=vmem, size = 0x800, scoped, tag = 'output window, operand 0']
    %10 = vsyncpa [#allocation8], 0
    %11 = vsyncpa [#allocation6], 0
    %s12 = scalar_lea.sflag [#allocation6], 1
    %13 = vsyncpa %s12, 0
    %14 = vsyncpa [#allocation7], 0
    %s15 = scalar_lea.sflag [#allocation7], 1
    %16 = vsyncpa %s15, 0
    loop: start=0, step=1, limit=4
    $region2: #{tpu_custom_call.1} parent=1 // loop_pre_header
      _
    $region3: #{tpu_custom_call.1} parent=1 // loop_header
      %s18 = sphi 0, %s22
      %p19 = scmp.ge.s32.totalorder %s18, 4
      %s25 = sphi 0, %s37
      %s26 = sphi 0, %s33
      %s27 = sphi 0, %s25
      %s28 = sphi 0, %s26
      %s29 = sphi 0, %s27
      %s30 = sphi 0, %s28
      %s38 = sphi 0, %s38
      %s40 = sphi 0, %s38
      %s41 = sphi 0, %s40
      %s55 = sphi 0, %s41
      %s59 = sphi 0, %s59
      %s61 = sphi 0, %s59
      %s62 = sphi 0, %s61
      %s76 = sphi 0, %s62
      %s84 = sphi 0, %s86
      %s87 = sphi 0, %s84
      %s88 = sphi 0, %s87
      %s104 = sphi 0, %s88
      %s108 = sphi 0, %s108
      %s110 = sphi 0, %s108
      %s111 = sphi 0, %s110
      %s125 = sphi 0, %s111
      %s131 = sphi 0, %s133
      %s134 = sphi 0, %s131
      %s135 = sphi 0, %s134
      %s151 = sphi 0, %s135
    $region4: #{tpu_custom_call.1} parent=1 // loop_header_branch
      %21 = sbr.rel (%p19) target = $region8
    $region5: #{tpu_custom_call.1} parent=1 // loop_body
      %s23 = ssub.s32 %s18, 1
      %s24 = ssub.s32 %s18, 2
      %s31 = sadd.s32 1, %s26
      %p32 = scmp.ge.s32.totalorder %s31, 1
      %s33 = scalar_select %p32, 0, %s31
      %s34 = sadd.s32 1, %s25
      %s35 = scalar_select %p32, %s34, %s25
      %p36 = scmp.ge.s32.totalorder %s35, 2
      %s37 = scalar_select %p36, 0, %s35
      %s39 = sadd.s32 %s38, 1
      %p42 = scmp.eq.s32.totalorder %s18, 1
      %p43 = scmp.ne.s32.totalorder %s38, %s40
      %p44 = scmp.eq.s32.totalorder %s18, 0
      %p45 = por %p43, %p44
      %p46 = scmp.ne.s32.totalorder %s38, %s40
      %p47 = scmp.eq.s32.totalorder %s23, 1
      %p48 = por %p46, %p47
      %p49 = scmp.ne.s32.totalorder %s40, %s41
      %p50 = scmp.eq.s32.totalorder %s23, 0
      %p51 = por %p49, %p50
      %p52 = scmp.ne.s32.totalorder %s40, %s41
      %p53 = scmp.eq.s32.totalorder %s24, 1
      %p54 = por %p52, %p53
      %p56 = scmp.ne.s32.totalorder %s41, %s55
      %p57 = scmp.eq.s32.totalorder %s24, 0
      %p58 = por %p56, %p57
      %s60 = sadd.s32 %s59, 1
      %p63 = scmp.eq.s32.totalorder %s18, 1
      %p64 = scmp.ne.s32.totalorder %s59, %s61
      %p65 = scmp.eq.s32.totalorder %s18, 0
      %p66 = por %p64, %p65
      %p67 = scmp.ne.s32.totalorder %s59, %s61
      %p68 = scmp.eq.s32.totalorder %s23, 1
      %p69 = por %p67, %p68
      %p70 = scmp.ne.s32.totalorder %s61, %s62
      %p71 = scmp.eq.s32.totalorder %s23, 0
      %p72 = por %p70, %p71
      %p73 = scmp.ne.s32.totalorder %s61, %s62
      %p74 = scmp.eq.s32.totalorder %s24, 1
      %p75 = por %p73, %p74
      %p77 = scmp.ne.s32.totalorder %s62, %s76
      %p78 = scmp.eq.s32.totalorder %s24, 0
      %p79 = por %p77, %p78
      %s80 = ssub.s32 %s25, %s37
      %s81 = ssub.s32 %s26, %s33
      %s82 = sor.u32 %s80, %s81
      %p83 = scmp.eq.s32.totalorder %s82, 0
      %s85 = sadd.s32 %s84, 1
      %s86 = scalar_select %p83, %s84, %s85
      %p89 = pneg %p83
      %p90 = scmp.eq.s32.totalorder %s18, 1
      %p91 = por %p89, %p90
      %p92 = scmp.ne.s32.totalorder %s84, %s87
      %p93 = scmp.eq.s32.totalorder %s18, 0
      %p94 = por %p92, %p93
      %p95 = scmp.ne.s32.totalorder %s84, %s87
      %p96 = scmp.eq.s32.totalorder %s23, 1
      %p97 = por %p95, %p96
      %p98 = scmp.ne.s32.totalorder %s87, %s88
      %p99 = scmp.eq.s32.totalorder %s23, 0
      %p100 = por %p98, %p99
      %p101 = scmp.ne.s32.totalorder %s87, %s88
      %p102 = scmp.eq.s32.totalorder %s24, 1
      %p103 = por %p101, %p102
      %p105 = scmp.ne.s32.totalorder %s88, %s104
      %p106 = scmp.eq.s32.totalorder %s24, 0
      %p107 = por %p105, %p106
      %s109 = sadd.s32 %s108, 1
      %p112 = scmp.eq.s32.totalorder %s18, 1
      %p113 = scmp.ne.s32.totalorder %s108, %s110
      %p114 = scmp.eq.s32.totalorder %s18, 0
      %p115 = por %p113, %p114
      %p116 = scmp.ne.s32.totalorder %s108, %s110
      %p117 = scmp.eq.s32.totalorder %s23, 1
      %p118 = por %p116, %p117
      %p119 = scmp.ne.s32.totalorder %s110, %s111
      %p120 = scmp.eq.s32.totalorder %s23, 0
      %p121 = por %p119, %p120
      %p122 = scmp.ne.s32.totalorder %s110, %s111
      %p123 = scmp.eq.s32.totalorder %s24, 1
      %p124 = por %p122, %p123
      %p126 = scmp.ne.s32.totalorder %s111, %s125
      %p127 = scmp.eq.s32.totalorder %s24, 0
      %p128 = por %p126, %p127
      %s129 = ssub.s32 %s25, %s37
      %p130 = scmp.eq.s32.totalorder %s129, 0
      %s132 = sadd.s32 %s131, 1
      %s133 = scalar_select %p130, %s131, %s132
      %p136 = pneg %p130
      %p137 = scmp.eq.s32.totalorder %s18, 1
      %p138 = por %p136, %p137
      %p139 = scmp.ne.s32.totalorder %s131, %s134
      %p140 = scmp.eq.s32.totalorder %s18, 0
      %p141 = por %p139, %p140
      %p142 = scmp.ne.s32.totalorder %s131, %s134
      %p143 = scmp.eq.s32.totalorder %s23, 1
      %p144 = por %p142, %p143
      %p145 = scmp.ne.s32.totalorder %s134, %s135
      %p146 = scmp.eq.s32.totalorder %s23, 0
      %p147 = por %p145, %p146
      %p148 = scmp.ne.s32.totalorder %s134, %s135
      %p149 = scmp.eq.s32.totalorder %s24, 1
      %p150 = por %p148, %p149
      %p152 = scmp.ne.s32.totalorder %s135, %s151
      %p153 = scmp.eq.s32.totalorder %s24, 0
      %p154 = por %p152, %p153
      %p155 = scmp.le.s32.totalorder 1, %s18
      %p156 = scmp.lt.s32.totalorder %s18, 3
      %p157 = pnand %p155, %p156
      %p158 = pneg %p157
      // Predicated region
      $region9: #{tpu_custom_call.1} parent=5 // pred_check
        _
      $region10: #{tpu_custom_call.1} parent=5 // pred_check_branch
        %160 = sbr.rel (%p157) target = $region12
      $region11: #{tpu_custom_call.1} parent=5 // pred_region
        %s161 = ssub.s32 %s18, 1
        // Predicated region
        $region13: #{tpu_custom_call.1} parent=11 // pred_check
          %p162 = pneg %p51
        $region14: #{tpu_custom_call.1} parent=11 // pred_check_branch
          %164 = sbr.rel (%p162) target = $region16
        $region15: #{tpu_custom_call.1} parent=11 // pred_region
          %s166 = ssub.s32 16, 16
          %167 = vsyncadd [#allocation8], %s166
          %s169 = sshll.u32 %s0, 4
          %s170 = int_to_ptr.vmem [resolvable:$true] %s169
          %172 = dma.vmem_to_smem %s170, 16, [#allocation5], [#allocation8]
        $region16: #{tpu_custom_call.1} parent=11 // pred_fallthru
          _
        // Predicated region
        $region17: #{tpu_custom_call.1} parent=11 // pred_check
          %p173 = pneg %p72
        $region18: #{tpu_custom_call.1} parent=11 // pred_check_branch
          %175 = sbr.rel (%p173) target = $region20
        $region19: #{tpu_custom_call.1} parent=11 // pred_region
          _
        $region20: #{tpu_custom_call.1} parent=11 // pred_fallthru
          _
        // Predicated region
        $region21: #{tpu_custom_call.1} parent=11 // pred_check
          %p176 = pneg %p121
        $region22: #{tpu_custom_call.1} parent=11 // pred_check_branch
          %178 = sbr.rel (%p176) target = $region24
        $region23: #{tpu_custom_call.1} parent=11 // pred_region
          _
        $region24: #{tpu_custom_call.1} parent=11 // pred_fallthru
          _
      $region12: #{tpu_custom_call.1} parent=5 // pred_fallthru
        _
      %p179 = scmp.lt.s32.totalorder %s18, 2
      // Predicated region
      $region25: #{tpu_custom_call.1} parent=5 // pred_check
        %p180 = pneg %p179
      $region26: #{tpu_custom_call.1} parent=5 // pred_check_branch
        %182 = sbr.rel (%p180) target = $region28
      $region27: #{tpu_custom_call.1} parent=5 // pred_region
        // Predicated region
        $region29: #{tpu_custom_call.1} parent=27 // pred_check
          %p183 = pneg %p94
        $region30: #{tpu_custom_call.1} parent=27 // pred_check_branch
          %185 = sbr.rel (%p183) target = $region32
        $region31: #{tpu_custom_call.1} parent=27 // pred_region
          %s186 = sand.u32 %s84, 1
          %s187 = scalar_lea.sflag [#allocation6], %s186
          %s188 = sand.u32 %s84, 1
          %s189 = smul.addr %s188, 8
          %s190 = scalar_lea.vmem [#allocation9], %s189
          %s192 = ssub.s32 128, 128
          %193 = vsyncadd %s187, %s192
          %s194 = smul.addr %s26, 2
          %s195 = smul.addr %s25, 2
          %s196 = sadd.s32 %s194, %s195
          %s197 = smul.addr %s196, 64
          %s198 = scalar_lea.hbm %s2, %s197
          %s200 = sshll.u32 %s190, 4
          %s201 = int_to_ptr.vmem [resolvable:$true] %s200
          %203 = dma.hbm_to_vmem [thread:$0]  %s198, 128, %s201, %s187
        $region32: #{tpu_custom_call.1} parent=27 // pred_fallthru
          _
      $region28: #{tpu_custom_call.1} parent=5 // pred_fallthru
        _
      %p204 = scmp.le.s32.totalorder 1, %s18
      %p205 = scmp.lt.s32.totalorder %s18, 3
      %p206 = pnand %p204, %p205
      %p207 = pneg %p206
      // Predicated region
      $region33: #{tpu_custom_call.1} parent=5 // pred_check
        _
      $region34: #{tpu_custom_call.1} parent=5 // pred_check_branch
        %209 = sbr.rel (%p206) target = $region36
      $region35: #{tpu_custom_call.1} parent=5 // pred_region
        %s210 = ssub.s32 %s18, 1
        // Predicated region
        $region37: #{tpu_custom_call.1} parent=35 // pred_check
          %p211 = pneg %p51
        $region38: #{tpu_custom_call.1} parent=35 // pred_check_branch
          %213 = sbr.rel (%p211) target = $region40
        $region39: #{tpu_custom_call.1} parent=35 // pred_region
          %214 = dma.done [#allocation8], 16
        $region40: #{tpu_custom_call.1} parent=35 // pred_fallthru
          _
        %s215 = sand.u32 %s87, 1
        %s216 = scalar_lea.sflag [#allocation6], %s215
        %s217 = sand.u32 %s87, 1
        %s218 = smul.addr %s217, 8
        %s219 = scalar_lea.vmem [#allocation9], %s218
        // Predicated region
        $region41: #{tpu_custom_call.1} parent=35 // pred_check
          %p220 = pneg %p100
        $region42: #{tpu_custom_call.1} parent=35 // pred_check_branch
          %222 = sbr.rel (%p220) target = $region44
        $region43: #{tpu_custom_call.1} parent=35 // pred_region
          %223 = dma.done %s216, 128
        $region44: #{tpu_custom_call.1} parent=35 // pred_fallthru
          _
        %224 = sfence
        %p225 = pneg %p51
        %p226 = pneg %p48
        %p227 = pneg %p72
        %p228 = pneg %p69
        %s229 = sand.u32 %s87, 1
        %s230 = scalar_lea.sflag [#allocation6], %s229
        %s231 = sand.u32 %s87, 1
        %s232 = smul.addr %s231, 8
        %s233 = scalar_lea.vmem [#allocation9], %s232
        %p234 = pneg %p100
        %p235 = pneg %p97
        %p236 = pneg %p121
        %p237 = pneg %p118
        %p238 = pneg %p147
        %p239 = pneg %p144
        %s240 = sand.u32 %s134, 1
        %s241 = scalar_lea.sflag [#allocation7], %s240
        %s242 = sand.u32 %s134, 1
        %s243 = smul.addr %s242, 2
        %s244 = scalar_lea.vmem [#allocation10], %s243
        %p245 = scmp.eq.s32.totalorder %s28, 0
        // Predicated region
        $region45: #{tpu_custom_call.1} parent=35 // pred_check
          %p246 = pneg %p245
        $region46: #{tpu_custom_call.1} parent=35 // pred_check_branch
          %248 = sbr.rel (%p246) target = $region48
        $region47: #{tpu_custom_call.1} parent=35 // pred_region
          %v249 = vlaneseq
          %vm250 = vcmp.ge.s32.totalorder %v249, 0
          %vm251 = vcmp.lt.s32.totalorder %v249, 256
          %vm252 = vmand %vm250, %vm251
          %253 = vst.msk [vmem:[#allocation2] sm:$0x3] %vm252, -inf
          %254 = vst.msk [vmem:[#allocation3] sm:$0x3] %vm252, 0.0
        $region48: #{tpu_custom_call.1} parent=35 // pred_fallthru
          _
        %v255 = vld [vmem:[%s219] sm:$0xff]
        %v256 = vld [vmem:[#allocation2] sm:$0x3]
        %v258 = vcombine.high %v255, %v255
        %vm260 = vcmask 1043456
        %v261 = vsel %vm260, %v255, -inf
        %v262 = vrot.slane %v261, 4
        %v263 = vmax.f32 %v261, %v262
        %v264 = vrot.slane %v263, 2
        %v265 = vmax.f32 %v263, %v264
        %v266 = vrot.slane %v265, 1
        %v267 = vmax.f32 %v265, %v266
        %v268 = vsel %vm260, %v258, -inf
        %v269 = vrot.slane %v268, 4
        %v270 = vmax.f32 %v268, %v269
        %v271 = vrot.slane %v270, 2
        %v272 = vmax.f32 %v270, %v271
        %v273 = vrot.slane %v272, 1
        %v274 = vmax.f32 %v272, %v273
        %v277 = vcombine.low %v267, %v274
        %v279 = vunpack.c.l.s4 1966171168
        %v280 = vunpack.c.0.s8 %v279
        %v281 = vlaneseq
        %v282 = vshrl.u32 %v281, 7
        %v283 = vsub.s32 %v280, %v282
        %v284 = vrot.slane %v277, %v283
        %v286 = vunpack.c.l.s4 1966171168
        %v287 = vunpack.c.0.s8 %v286
        %v288 = vlaneseq
        %v289 = vshrl.u32 %v288, 7
        %v290 = vsub.s32 %v287, %v289
        %v291 = vrot.slane %v284, %v290
        %v293 = vmax.f32 %v256, %v291
        %v294 = vlaneseq
        %vm295 = vcmp.ge.s32.totalorder %v294, 0
        %vm296 = vcmp.lt.s32.totalorder %v294, 256
        %vm297 = vmand %vm295, %vm296
        %298 = vst.msk [vmem:[#allocation2] sm:$0x3] %vm297, %v293
        %v299 = vld [vmem:[#allocation3] sm:$0x3]
        %v300 = vsel %vm260, %v255, 0.0
        %v301 = vrot.slane %v300, 4
        %v302 = vadd.f32 %v300, %v301
        %v303 = vrot.slane %v302, 2
        %v304 = vadd.f32 %v302, %v303
        %v305 = vrot.slane %v304, 1
        %v306 = vadd.f32 %v304, %v305
        %v307 = vsel %vm260, %v258, 0.0
        %v308 = vrot.slane %v307, 4
        %v309 = vadd.f32 %v307, %v308
        %v310 = vrot.slane %v309, 2
        %v311 = vadd.f32 %v309, %v310
        %v312 = vrot.slane %v311, 1
        %v313 = vadd.f32 %v311, %v312
        %v316 = vcombine.low %v306, %v313
        %v318 = vunpack.c.l.s4 1966171168
        %v319 = vunpack.c.0.s8 %v318
        %v320 = vlaneseq
        %v321 = vshrl.u32 %v320, 7
        %v322 = vsub.s32 %v319, %v321
        %v323 = vrot.slane %v316, %v322
        %v325 = vunpack.c.l.s4 1966171168
        %v326 = vunpack.c.0.s8 %v325
        %v327 = vlaneseq
        %v328 = vshrl.u32 %v327, 7
        %v329 = vsub.s32 %v326, %v328
        %v330 = vrot.slane %v323, %v329
        %v332 = vadd.f32 %v299, %v330
        %333 = vst.msk [vmem:[#allocation3] sm:$0x3] %vm297, %v332
        // Predicated region
        $region49: #{tpu_custom_call.1} parent=35 // pred_check
          %p334 = pneg %p245
        $region50: #{tpu_custom_call.1} parent=35 // pred_check_branch
          %336 = sbr.rel (%p334) target = $region52
        $region51: #{tpu_custom_call.1} parent=35 // pred_region
          %v337 = vld [vmem:[#allocation2] sm:$0x3]
          %v338 = vld [vmem:[#allocation3] sm:$0x3]
          %v339 = vrcp.pop 4.0
          %v340 = vmul.f32 %v338, %v339
          %v341 = vlaneseq
          %v342 = vand.u32 %v341, 127
          %v343 = vadd.s32 %v342, 128
          %v344 = vld [vmem:[%s3] sm:$0x3]
          %vm345 = vcmp.ge.s32.totalorder %v342, 48
          %vm346 = vcmp.ge.s32.totalorder %v343, 48
          %vm347 = vcmp.lt.s32.totalorder %v342, 256
          %vm348 = vcmp.lt.s32.totalorder %v343, 256
          %vm349 = vmand %vm345, %vm347
          %vm350 = vmand %vm346, %vm348
          %vm351 = vcmp.ge.s32.totalorder %v342, 32
          %vm352 = vcmp.ge.s32.totalorder %v343, 32
          %vm353 = vmand %vm351, %vm347
          %vm354 = vmand %vm352, %vm348
          %vm355 = vcmp.ge.s32.totalorder %v342, 16
          %vm356 = vcmp.ge.s32.totalorder %v343, 16
          %vm357 = vmand %vm355, %vm347
          %vm358 = vmand %vm356, %vm348
          %vm359 = vcmp.ge.s32.totalorder %v342, 0
          %vm360 = vcmp.ge.s32.totalorder %v343, 0
          %vm361 = vmand %vm359, %vm347
          %vm362 = vmand %vm360, %vm348
          %vm363 = vcmp.lt.s32.totalorder %v342, 240
          %vm364 = vcmp.lt.s32.totalorder %v343, 240
          %vm365 = vmand %vm359, %vm363
          %vm366 = vmand %vm360, %vm364
          %vm367 = vcmp.lt.s32.totalorder %v342, 224
          %vm368 = vcmp.lt.s32.totalorder %v343, 224
          %vm369 = vmand %vm359, %vm367
          %vm370 = vmand %vm360, %vm368
          %vm371 = vcmp.lt.s32.totalorder %v342, 208
          %vm372 = vcmp.lt.s32.totalorder %v343, 208
          %vm373 = vmand %vm359, %vm371
          %vm374 = vmand %vm360, %vm372
          %vm375 = vcmp.ge.s32.totalorder %v344, 3
          %vm376 = vcmp.lt.s32.totalorder %v344, 16
          %vm377 = vmand %vm375, %vm376
          %vm378 = vcmp.ge.s32.totalorder %v344, 2
          %vm379 = vmand %vm378, %vm376
          %vm380 = vcmp.ge.s32.totalorder %v344, 1
          %vm381 = vmand %vm380, %vm376
          %vm382 = vcmp.ge.s32.totalorder %v344, 0
          %vm383 = vmand %vm382, %vm376
          %vm384 = vcmp.lt.s32.totalorder %v344, 15
          %vm385 = vmand %vm382, %vm384
          %vm386 = vcmp.lt.s32.totalorder %v344, 14
          %vm387 = vmand %vm382, %vm386
          %vm388 = vcmp.lt.s32.totalorder %v344, 13
          %vm389 = vmand %vm382, %vm388
          %s390 = sld [smem:[#allocation4]]
          %v391 = vstv %s390
          %v393 = vlaneseq
          %v394 = vshrl.u32 %v393, 7
          %v395 = vsub.s32 0, %v394
          %v396 = vrot.slane %v337, %v395
          %v397 = vlaneseq
          %v398 = vshrl.u32 %v397, 7
          %v399 = vsub.s32 1, %v398
          %v400 = vrot.slane %v337, %v399
          %403 = vrot.lane.b32.xlu0 %v396, 51
          %v404 = vpop.permute.xlu0 %403
          %405 = vrot.lane.b32.xlu0 %v400, 51
          %v406 = vpop.permute.xlu0 %405
          %vm407 = vcmp.lt.s32.totalorder %v342, 51
          %v408 = vsel %vm407, %v404, %v406
          %v409 = vsel %vm407, %v406, %v404
          %v411 = vlaneseq
          %v412 = vshrl.u32 %v411, 7
          %v413 = vsub.s32 0, %v412
          %v414 = vrot.slane %v340, %v413
          %v415 = vlaneseq
          %v416 = vshrl.u32 %v415, 7
          %v417 = vsub.s32 1, %v416
          %v418 = vrot.slane %v340, %v417
          %421 = vrot.lane.b32.xlu0 %v414, 51
          %v422 = vpop.permute.xlu0 %421
          %423 = vrot.lane.b32.xlu0 %v418, 51
          %v424 = vpop.permute.xlu0 %423
          %v425 = vsel %vm407, %v422, %v424
          %v426 = vsel %vm407, %v424, %v422
          %s427 = sld [smem:[#allocation5]]
          %v428 = vstv %s427
          %v429 = vmul.f32 %v428, %v409
          %v430 = vmul.f32 %v428, %v408
          %s431 = sld [smem:[#allocation5 + $0x31]]
          %v432 = vstv %s431
          %v433 = vmul.f32 %v432, %v426
          %v434 = vmul.f32 %v432, %v425
          %v435 = vadd.f32 %v429, %v433
          %v436 = vadd.f32 %v430, %v434
          %v437 = vsel %vm377, 1, 0
          %v438 = vlaneseq
          %v439 = vshrl.u32 %v438, 7
          %v440 = vsub.s32 0, %v439
          %v441 = vrot.slane %v437, %v440
          %v442 = vlaneseq
          %v443 = vshrl.u32 %v442, 7
          %v444 = vsub.s32 1, %v443
          %v445 = vrot.slane %v437, %v444
          %vm446 = vcmp.ne.s32.totalorder %v441, 0
          %vm447 = vcmp.ne.s32.totalorder %v445, 0
          %vm448 = vmand %vm349, %vm446
          %vm449 = vmand %vm350, %vm447
          %v450 = vsel %vm448, %v435, 0.0
          %v451 = vsel %vm449, %v436, 0.0
          %v452 = vadd.f32 %v391, %v450
          %v453 = vadd.f32 %v391, %v451
          %454 = vrot.lane.b32.xlu0 %v396, 50
          %v455 = vpop.permute.xlu0 %454
          %456 = vrot.lane.b32.xlu0 %v400, 50
          %v457 = vpop.permute.xlu0 %456
          %vm458 = vcmp.lt.s32.totalorder %v342, 50
          %v459 = vsel %vm458, %v455, %v457
          %v460 = vsel %vm458, %v457, %v455
          %461 = vrot.lane.b32.xlu0 %v414, 50
          %v462 = vpop.permute.xlu0 %461
          %463 = vrot.lane.b32.xlu0 %v418, 50
          %v464 = vpop.permute.xlu0 %463
          %v465 = vsel %vm458, %v462, %v464
          %v466 = vsel %vm458, %v464, %v462
          %s467 = sld [smem:[#allocation5 + $0x1]]
          %v468 = vstv %s467
          %v469 = vmul.f32 %v468, %v460
          %v470 = vmul.f32 %v468, %v459
          %s471 = sld [smem:[#allocation5 + $0x32]]
          %v472 = vstv %s471
          %v473 = vmul.f32 %v472, %v466
          %v474 = vmul.f32 %v472, %v465
          %v475 = vadd.f32 %v469, %v473
          %v476 = vadd.f32 %v470, %v474
          %v477 = vsel %vm379, 1, 0
          %v478 = vlaneseq
          %v479 = vshrl.u32 %v478, 7
          %v480 = vsub.s32 0, %v479
          %v481 = vrot.slane %v477, %v480
          %v482 = vlaneseq
          %v483 = vshrl.u32 %v482, 7
          %v484 = vsub.s32 1, %v483
          %v485 = vrot.slane %v477, %v484
          %vm486 = vcmp.ne.s32.totalorder %v481, 0
          %vm487 = vcmp.ne.s32.totalorder %v485, 0
          %vm488 = vmand %vm349, %vm486
          %vm489 = vmand %vm350, %vm487
          %v490 = vsel %vm488, %v475, 0.0
          %v491 = vsel %vm489, %v476, 0.0
          %v492 = vadd.f32 %v452, %v490
          %v493 = vadd.f32 %v453, %v491
          %494 = vrot.lane.b32.xlu0 %v396, 49
          %v495 = vpop.permute.xlu0 %494
          %496 = vrot.lane.b32.xlu0 %v400, 49
          %v497 = vpop.permute.xlu0 %496
          %vm498 = vcmp.lt.s32.totalorder %v342, 49
          %v499 = vsel %vm498, %v495, %v497
          %v500 = vsel %vm498, %v497, %v495
          %501 = vrot.lane.b32.xlu0 %v414, 49
          %v502 = vpop.permute.xlu0 %501
          %503 = vrot.lane.b32.xlu0 %v418, 49
          %v504 = vpop.permute.xlu0 %503
          %v505 = vsel %vm498, %v502, %v504
          %v506 = vsel %vm498, %v504, %v502
          %s507 = sld [smem:[#allocation5 + $0x2]]
          %v508 = vstv %s507
          %v509 = vmul.f32 %v508, %v500
          %v510 = vmul.f32 %v508, %v499
          %s511 = sld [smem:[#allocation5 + $0x33]]
          %v512 = vstv %s511
          %v513 = vmul.f32 %v512, %v506
          %v514 = vmul.f32 %v512, %v505
          %v515 = vadd.f32 %v509, %v513
          %v516 = vadd.f32 %v510, %v514
          %v517 = vsel %vm381, 1, 0
          %v518 = vlaneseq
          %v519 = vshrl.u32 %v518, 7
          %v520 = vsub.s32 0, %v519
          %v521 = vrot.slane %v517, %v520
          %v522 = vlaneseq
          %v523 = vshrl.u32 %v522, 7
          %v524 = vsub.s32 1, %v523
          %v525 = vrot.slane %v517, %v524
          %vm526 = vcmp.ne.s32.totalorder %v521, 0
          %vm527 = vcmp.ne.s32.totalorder %v525, 0
          %vm528 = vmand %vm349, %vm526
          %vm529 = vmand %vm350, %vm527
          %v530 = vsel %vm528, %v515, 0.0
          %v531 = vsel %vm529, %v516, 0.0
          %v532 = vadd.f32 %v492, %v530
          %v533 = vadd.f32 %v493, %v531
          %534 = vrot.lane.b32.xlu0 %v396, 48
          %v535 = vpop.permute.xlu0 %534
          %536 = vrot.lane.b32.xlu0 %v400, 48
          %v537 = vpop.permute.xlu0 %536
          %vm538 = vcmp.lt.s32.totalorder %v342, 48
          %v539 = vsel %vm538, %v535, %v537
          %v540 = vsel %vm538, %v537, %v535
          %541 = vrot.lane.b32.xlu0 %v414, 48
          %v542 = vpop.permute.xlu0 %541
          %543 = vrot.lane.b32.xlu0 %v418, 48
          %v544 = vpop.permute.xlu0 %543
          %v545 = vsel %vm538, %v542, %v544
          %v546 = vsel %vm538, %v544, %v542
          %s547 = sld [smem:[#allocation5 + $0x3]]
          %v548 = vstv %s547
          %v549 = vmul.f32 %v548, %v540
          %v550 = vmul.f32 %v548, %v539
          %s551 = sld [smem:[#allocation5 + $0x34]]
          %v552 = vstv %s551
          %v553 = vmul.f32 %v552, %v546
          %v554 = vmul.f32 %v552, %v545
          %v555 = vadd.f32 %v549, %v553
          %v556 = vadd.f32 %v550, %v554
          %v557 = vsel %vm383, 1, 0
          %v558 = vlaneseq
          %v559 = vshrl.u32 %v558, 7
          %v560 = vsub.s32 0, %v559
          %v561 = vrot.slane %v557, %v560
          %v562 = vlaneseq
          %v563 = vshrl.u32 %v562, 7
          %v564 = vsub.s32 1, %v563
          %v565 = vrot.slane %v557, %v564
          %vm566 = vcmp.ne.s32.totalorder %v561, 0
          %vm567 = vcmp.ne.s32.totalorder %v565, 0
          %vm568 = vmand %vm349, %vm566
          %vm569 = vmand %vm350, %vm567
          %v570 = vsel %vm568, %v555, 0.0
          %v571 = vsel %vm569, %v556, 0.0
          %v572 = vadd.f32 %v532, %v570
          %v573 = vadd.f32 %v533, %v571
          %574 = vrot.lane.b32.xlu0 %v396, 47
          %v575 = vpop.permute.xlu0 %574
          %576 = vrot.lane.b32.xlu0 %v400, 47
          %v577 = vpop.permute.xlu0 %576
          %vm578 = vcmp.lt.s32.totalorder %v342, 47
          %v579 = vsel %vm578, %v575, %v577
          %v580 = vsel %vm578, %v577, %v575
          %581 = vrot.lane.b32.xlu0 %v414, 47
          %v582 = vpop.permute.xlu0 %581
          %583 = vrot.lane.b32.xlu0 %v418, 47
          %v584 = vpop.permute.xlu0 %583
          %v585 = vsel %vm578, %v582, %v584
          %v586 = vsel %vm578, %v584, %v582
          %s587 = sld [smem:[#allocation5 + $0x4]]
          %v588 = vstv %s587
          %v589 = vmul.f32 %v588, %v580
          %v590 = vmul.f32 %v588, %v579
          %s591 = sld [smem:[#allocation5 + $0x35]]
          %v592 = vstv %s591
          %v593 = vmul.f32 %v592, %v586
          %v594 = vmul.f32 %v592, %v585
          %v595 = vadd.f32 %v589, %v593
          %v596 = vadd.f32 %v590, %v594
          %v597 = vsel %vm385, 1, 0
          %v598 = vlaneseq
          %v599 = vshrl.u32 %v598, 7
          %v600 = vsub.s32 0, %v599
          %v601 = vrot.slane %v597, %v600
          %v602 = vlaneseq
          %v603 = vshrl.u32 %v602, 7
          %v604 = vsub.s32 1, %v603
          %v605 = vrot.slane %v597, %v604
          %vm606 = vcmp.ne.s32.totalorder %v601, 0
          %vm607 = vcmp.ne.s32.totalorder %v605, 0
          %vm608 = vmand %vm349, %vm606
          %vm609 = vmand %vm350, %vm607
          %v610 = vsel %vm608, %v595, 0.0
          %v611 = vsel %vm609, %v596, 0.0
          %v612 = vadd.f32 %v572, %v610
          %v613 = vadd.f32 %v573, %v611
          %614 = vrot.lane.b32.xlu0 %v396, 46
          %v615 = vpop.permute.xlu0 %614
          %616 = vrot.lane.b32.xlu0 %v400, 46
          %v617 = vpop.permute.xlu0 %616
          %vm618 = vcmp.lt.s32.totalorder %v342, 46
          %v619 = vsel %vm618, %v615, %v617
          %v620 = vsel %vm618, %v617, %v615
          %621 = vrot.lane.b32.xlu0 %v414, 46
          %v622 = vpop.permute.xlu0 %621
          %623 = vrot.lane.b32.xlu0 %v418, 46
          %v624 = vpop.permute.xlu0 %623
          %v625 = vsel %vm618, %v622, %v624
          %v626 = vsel %vm618, %v624, %v622
          %s627 = sld [smem:[#allocation5 + $0x5]]
          %v628 = vstv %s627
          %v629 = vmul.f32 %v628, %v620
          %v630 = vmul.f32 %v628, %v619
          %s631 = sld [smem:[#allocation5 + $0x36]]
          %v632 = vstv %s631
          %v633 = vmul.f32 %v632, %v626
          %v634 = vmul.f32 %v632, %v625
          %v635 = vadd.f32 %v629, %v633
          %v636 = vadd.f32 %v630, %v634
          %v637 = vsel %vm387, 1, 0
          %v638 = vlaneseq
          %v639 = vshrl.u32 %v638, 7
          %v640 = vsub.s32 0, %v639
          %v641 = vrot.slane %v637, %v640
          %v642 = vlaneseq
          %v643 = vshrl.u32 %v642, 7
          %v644 = vsub.s32 1, %v643
          %v645 = vrot.slane %v637, %v644
          %vm646 = vcmp.ne.s32.totalorder %v641, 0
          %vm647 = vcmp.ne.s32.totalorder %v645, 0
          %vm648 = vmand %vm349, %vm646
          %vm649 = vmand %vm350, %vm647
          %v650 = vsel %vm648, %v635, 0.0
          %v651 = vsel %vm649, %v636, 0.0
          %v652 = vadd.f32 %v612, %v650
          %v653 = vadd.f32 %v613, %v651
          %654 = vrot.lane.b32.xlu0 %v396, 45
          %v655 = vpop.permute.xlu0 %654
          %656 = vrot.lane.b32.xlu0 %v400, 45
          %v657 = vpop.permute.xlu0 %656
          %vm658 = vcmp.lt.s32.totalorder %v342, 45
          %v659 = vsel %vm658, %v655, %v657
          %v660 = vsel %vm658, %v657, %v655
          %661 = vrot.lane.b32.xlu0 %v414, 45
          %v662 = vpop.permute.xlu0 %661
          %663 = vrot.lane.b32.xlu0 %v418, 45
          %v664 = vpop.permute.xlu0 %663
          %v665 = vsel %vm658, %v662, %v664
          %v666 = vsel %vm658, %v664, %v662
          %s667 = sld [smem:[#allocation5 + $0x6]]
          %v668 = vstv %s667
          %v669 = vmul.f32 %v668, %v660
          %v670 = vmul.f32 %v668, %v659
          %s671 = sld [smem:[#allocation5 + $0x37]]
          %v672 = vstv %s671
          %v673 = vmul.f32 %v672, %v666
          %v674 = vmul.f32 %v672, %v665
          %v675 = vadd.f32 %v669, %v673
          %v676 = vadd.f32 %v670, %v674
          %v677 = vsel %vm389, 1, 0
          %v678 = vlaneseq
          %v679 = vshrl.u32 %v678, 7
          %v680 = vsub.s32 0, %v679
          %v681 = vrot.slane %v677, %v680
          %v682 = vlaneseq
          %v683 = vshrl.u32 %v682, 7
          %v684 = vsub.s32 1, %v683
          %v685 = vrot.slane %v677, %v684
          %vm686 = vcmp.ne.s32.totalorder %v681, 0
          %vm687 = vcmp.ne.s32.totalorder %v685, 0
          %vm688 = vmand %vm349, %vm686
          %vm689 = vmand %vm350, %vm687
          %v690 = vsel %vm688, %v675, 0.0
          %v691 = vsel %vm689, %v676, 0.0
          %v692 = vadd.f32 %v652, %v690
          %v693 = vadd.f32 %v653, %v691
          %694 = vrot.lane.b32.xlu0 %v396, 35
          %v695 = vpop.permute.xlu0 %694
          %696 = vrot.lane.b32.xlu0 %v400, 35
          %v697 = vpop.permute.xlu0 %696
          %vm698 = vcmp.lt.s32.totalorder %v342, 35
          %v699 = vsel %vm698, %v695, %v697
          %v700 = vsel %vm698, %v697, %v695
          %701 = vrot.lane.b32.xlu0 %v414, 35
          %v702 = vpop.permute.xlu0 %701
          %703 = vrot.lane.b32.xlu0 %v418, 35
          %v704 = vpop.permute.xlu0 %703
          %v705 = vsel %vm698, %v702, %v704
          %v706 = vsel %vm698, %v704, %v702
          %s707 = sld [smem:[#allocation5 + $0x7]]
          %v708 = vstv %s707
          %v709 = vmul.f32 %v708, %v700
          %v710 = vmul.f32 %v708, %v699
          %s711 = sld [smem:[#allocation5 + $0x38]]
          %v712 = vstv %s711
          %v713 = vmul.f32 %v712, %v706
          %v714 = vmul.f32 %v712, %v705
          %v715 = vadd.f32 %v709, %v713
          %v716 = vadd.f32 %v710, %v714
          %vm717 = vmand %vm353, %vm446
          %vm718 = vmand %vm354, %vm447
          %v719 = vsel %vm717, %v715, 0.0
          %v720 = vsel %vm718, %v716, 0.0
          %v721 = vadd.f32 %v692, %v719
          %v722 = vadd.f32 %v693, %v720
          %723 = vrot.lane.b32.xlu0 %v396, 34
          %v724 = vpop.permute.xlu0 %723
          %725 = vrot.lane.b32.xlu0 %v400, 34
          %v726 = vpop.permute.xlu0 %725
          %vm727 = vcmp.lt.s32.totalorder %v342, 34
          %v728 = vsel %vm727, %v724, %v726
          %v729 = vsel %vm727, %v726, %v724
          %730 = vrot.lane.b32.xlu0 %v414, 34
          %v731 = vpop.permute.xlu0 %730
          %732 = vrot.lane.b32.xlu0 %v418, 34
          %v733 = vpop.permute.xlu0 %732
          %v734 = vsel %vm727, %v731, %v733
          %v735 = vsel %vm727, %v733, %v731
          %s736 = sld [smem:[#allocation5 + $0x8]]
          %v737 = vstv %s736
          %v738 = vmul.f32 %v737, %v729
          %v739 = vmul.f32 %v737, %v728
          %s740 = sld [smem:[#allocation5 + $0x39]]
          %v741 = vstv %s740
          %v742 = vmul.f32 %v741, %v735
          %v743 = vmul.f32 %v741, %v734
          %v744 = vadd.f32 %v738, %v742
          %v745 = vadd.f32 %v739, %v743
          %vm746 = vmand %vm353, %vm486
          %vm747 = vmand %vm354, %vm487
          %v748 = vsel %vm746, %v744, 0.0
          %v749 = vsel %vm747, %v745, 0.0
          %v750 = vadd.f32 %v721, %v748
          %v751 = vadd.f32 %v722, %v749
          %752 = vrot.lane.b32.xlu0 %v396, 33
          %v753 = vpop.permute.xlu0 %752
          %754 = vrot.lane.b32.xlu0 %v400, 33
          %v755 = vpop.permute.xlu0 %754
          %vm756 = vcmp.lt.s32.totalorder %v342, 33
          %v757 = vsel %vm756, %v753, %v755
          %v758 = vsel %vm756, %v755, %v753
          %759 = vrot.lane.b32.xlu0 %v414, 33
          %v760 = vpop.permute.xlu0 %759
          %761 = vrot.lane.b32.xlu0 %v418, 33
          %v762 = vpop.permute.xlu0 %761
          %v763 = vsel %vm756, %v760, %v762
          %v764 = vsel %vm756, %v762, %v760
          %s765 = sld [smem:[#allocation5 + $0x9]]
          %v766 = vstv %s765
          %v767 = vmul.f32 %v766, %v758
          %v768 = vmul.f32 %v766, %v757
          %s769 = sld [smem:[#allocation5 + $0x3a]]
          %v770 = vstv %s769
          %v771 = vmul.f32 %v770, %v764
          %v772 = vmul.f32 %v770, %v763
          %v773 = vadd.f32 %v767, %v771
          %v774 = vadd.f32 %v768, %v772
          %vm775 = vmand %vm353, %vm526
          %vm776 = vmand %vm354, %vm527
          %v777 = vsel %vm775, %v773, 0.0
          %v778 = vsel %vm776, %v774, 0.0
          %v779 = vadd.f32 %v750, %v777
          %v780 = vadd.f32 %v751, %v778
          %781 = vrot.lane.b32.xlu0 %v396, 32
          %v782 = vpop.permute.xlu0 %781
          %783 = vrot.lane.b32.xlu0 %v400, 32
          %v784 = vpop.permute.xlu0 %783
          %vm785 = vcmp.lt.s32.totalorder %v342, 32
          %v786 = vsel %vm785, %v782, %v784
          %v787 = vsel %vm785, %v784, %v782
          %788 = vrot.lane.b32.xlu0 %v414, 32
          %v789 = vpop.permute.xlu0 %788
          %790 = vrot.lane.b32.xlu0 %v418, 32
          %v791 = vpop.permute.xlu0 %790
          %v792 = vsel %vm785, %v789, %v791
          %v793 = vsel %vm785, %v791, %v789
          %s794 = sld [smem:[#allocation5 + $0xa]]
          %v795 = vstv %s794
          %v796 = vmul.f32 %v795, %v787
          %v797 = vmul.f32 %v795, %v786
          %s798 = sld [smem:[#allocation5 + $0x3b]]
          %v799 = vstv %s798
          %v800 = vmul.f32 %v799, %v793
          %v801 = vmul.f32 %v799, %v792
          %v802 = vadd.f32 %v796, %v800
          %v803 = vadd.f32 %v797, %v801
          %vm804 = vmand %vm353, %vm566
          %vm805 = vmand %vm354, %vm567
          %v806 = vsel %vm804, %v802, 0.0
          %v807 = vsel %vm805, %v803, 0.0
          %v808 = vadd.f32 %v779, %v806
          %v809 = vadd.f32 %v780, %v807
          %810 = vrot.lane.b32.xlu0 %v396, 31
          %v811 = vpop.permute.xlu0 %810
          %812 = vrot.lane.b32.xlu0 %v400, 31
          %v813 = vpop.permute.xlu0 %812
          %vm814 = vcmp.lt.s32.totalorder %v342, 31
          %v815 = vsel %vm814, %v811, %v813
          %v816 = vsel %vm814, %v813, %v811
          %817 = vrot.lane.b32.xlu0 %v414, 31
          %v818 = vpop.permute.xlu0 %817
          %819 = vrot.lane.b32.xlu0 %v418, 31
          %v820 = vpop.permute.xlu0 %819
          %v821 = vsel %vm814, %v818, %v820
          %v822 = vsel %vm814, %v820, %v818
          %s823 = sld [smem:[#allocation5 + $0xb]]
          %v824 = vstv %s823
          %v825 = vmul.f32 %v824, %v816
          %v826 = vmul.f32 %v824, %v815
          %s827 = sld [smem:[#allocation5 + $0x3c]]
          %v828 = vstv %s827
          %v829 = vmul.f32 %v828, %v822
          %v830 = vmul.f32 %v828, %v821
          %v831 = vadd.f32 %v825, %v829
          %v832 = vadd.f32 %v826, %v830
          %vm833 = vmand %vm353, %vm606
          %vm834 = vmand %vm354, %vm607
          %v835 = vsel %vm833, %v831, 0.0
          %v836 = vsel %vm834, %v832, 0.0
          %v837 = vadd.f32 %v808, %v835
          %v838 = vadd.f32 %v809, %v836
          %839 = vrot.lane.b32.xlu0 %v396, 30
          %v840 = vpop.permute.xlu0 %839
          %841 = vrot.lane.b32.xlu0 %v400, 30
          %v842 = vpop.permute.xlu0 %841
          %vm843 = vcmp.lt.s32.totalorder %v342, 30
          %v844 = vsel %vm843, %v840, %v842
          %v845 = vsel %vm843, %v842, %v840
          %846 = vrot.lane.b32.xlu0 %v414, 30
          %v847 = vpop.permute.xlu0 %846
          %848 = vrot.lane.b32.xlu0 %v418, 30
          %v849 = vpop.permute.xlu0 %848
          %v850 = vsel %vm843, %v847, %v849
          %v851 = vsel %vm843, %v849, %v847
          %s852 = sld [smem:[#allocation5 + $0xc]]
          %v853 = vstv %s852
          %v854 = vmul.f32 %v853, %v845
          %v855 = vmul.f32 %v853, %v844
          %s856 = sld [smem:[#allocation5 + $0x3d]]
          %v857 = vstv %s856
          %v858 = vmul.f32 %v857, %v851
          %v859 = vmul.f32 %v857, %v850
          %v860 = vadd.f32 %v854, %v858
          %v861 = vadd.f32 %v855, %v859
          %vm862 = vmand %vm353, %vm646
          %vm863 = vmand %vm354, %vm647
          %v864 = vsel %vm862, %v860, 0.0
          %v865 = vsel %vm863, %v861, 0.0
          %v866 = vadd.f32 %v837, %v864
          %v867 = vadd.f32 %v838, %v865
          %868 = vrot.lane.b32.xlu0 %v396, 29
          %v869 = vpop.permute.xlu0 %868
          %870 = vrot.lane.b32.xlu0 %v400, 29
          %v871 = vpop.permute.xlu0 %870
          %vm872 = vcmp.lt.s32.totalorder %v342, 29
          %v873 = vsel %vm872, %v869, %v871
          %v874 = vsel %vm872, %v871, %v869
          %875 = vrot.lane.b32.xlu0 %v414, 29
          %v876 = vpop.permute.xlu0 %875
          %877 = vrot.lane.b32.xlu0 %v418, 29
          %v878 = vpop.permute.xlu0 %877
          %v879 = vsel %vm872, %v876, %v878
          %v880 = vsel %vm872, %v878, %v876
          %s881 = sld [smem:[#allocation5 + $0xd]]
          %v882 = vstv %s881
          %v883 = vmul.f32 %v882, %v874
          %v884 = vmul.f32 %v882, %v873
          %s885 = sld [smem:[#allocation5 + $0x3e]]
          %v886 = vstv %s885
          %v887 = vmul.f32 %v886, %v880
          %v888 = vmul.f32 %v886, %v879
          %v889 = vadd.f32 %v883, %v887
          %v890 = vadd.f32 %v884, %v888
          %vm891 = vmand %vm353, %vm686
          %vm892 = vmand %vm354, %vm687
          %v893 = vsel %vm891, %v889, 0.0
          %v894 = vsel %vm892, %v890, 0.0
          %v895 = vadd.f32 %v866, %v893
          %v896 = vadd.f32 %v867, %v894
          %897 = vrot.lane.b32.xlu0 %v396, 19
          %v898 = vpop.permute.xlu0 %897
          %899 = vrot.lane.b32.xlu0 %v400, 19
          %v900 = vpop.permute.xlu0 %899
          %vm901 = vcmp.lt.s32.totalorder %v342, 19
          %v902 = vsel %vm901, %v898, %v900
          %v903 = vsel %vm901, %v900, %v898
          %904 = vrot.lane.b32.xlu0 %v414, 19
          %v905 = vpop.permute.xlu0 %904
          %906 = vrot.lane.b32.xlu0 %v418, 19
          %v907 = vpop.permute.xlu0 %906
          %v908 = vsel %vm901, %v905, %v907
          %v909 = vsel %vm901, %v907, %v905
          %s910 = sld [smem:[#allocation5 + $0xe]]
          %v911 = vstv %s910
          %v912 = vmul.f32 %v911, %v903
          %v913 = vmul.f32 %v911, %v902
          %s914 = sld [smem:[#allocation5 + $0x3f]]
          %v915 = vstv %s914
          %v916 = vmul.f32 %v915, %v909
          %v917 = vmul.f32 %v915, %v908
          %v918 = vadd.f32 %v912, %v916
          %v919 = vadd.f32 %v913, %v917
          %vm920 = vmand %vm357, %vm446
          %vm921 = vmand %vm358, %vm447
          %v922 = vsel %vm920, %v918, 0.0
          %v923 = vsel %vm921, %v919, 0.0
          %v924 = vadd.f32 %v895, %v922
          %v925 = vadd.f32 %v896, %v923
          %926 = vrot.lane.b32.xlu0 %v396, 18
          %v927 = vpop.permute.xlu0 %926
          %928 = vrot.lane.b32.xlu0 %v400, 18
          %v929 = vpop.permute.xlu0 %928
          %vm930 = vcmp.lt.s32.totalorder %v342, 18
          %v931 = vsel %vm930, %v927, %v929
          %v932 = vsel %vm930, %v929, %v927
          %933 = vrot.lane.b32.xlu0 %v414, 18
          %v934 = vpop.permute.xlu0 %933
          %935 = vrot.lane.b32.xlu0 %v418, 18
          %v936 = vpop.permute.xlu0 %935
          %v937 = vsel %vm930, %v934, %v936
          %v938 = vsel %vm930, %v936, %v934
          %s939 = sld [smem:[#allocation5 + $0xf]]
          %v940 = vstv %s939
          %v941 = vmul.f32 %v940, %v932
          %v942 = vmul.f32 %v940, %v931
          %s943 = sld [smem:[#allocation5 + $0x40]]
          %v944 = vstv %s943
          %v945 = vmul.f32 %v944, %v938
          %v946 = vmul.f32 %v944, %v937
          %v947 = vadd.f32 %v941, %v945
          %v948 = vadd.f32 %v942, %v946
          %vm949 = vmand %vm357, %vm486
          %vm950 = vmand %vm358, %vm487
          %v951 = vsel %vm949, %v947, 0.0
          %v952 = vsel %vm950, %v948, 0.0
          %v953 = vadd.f32 %v924, %v951
          %v954 = vadd.f32 %v925, %v952
          %955 = vrot.lane.b32.xlu0 %v396, 17
          %v956 = vpop.permute.xlu0 %955
          %957 = vrot.lane.b32.xlu0 %v400, 17
          %v958 = vpop.permute.xlu0 %957
          %vm959 = vcmp.lt.s32.totalorder %v342, 17
          %v960 = vsel %vm959, %v956, %v958
          %v961 = vsel %vm959, %v958, %v956
          %962 = vrot.lane.b32.xlu0 %v414, 17
          %v963 = vpop.permute.xlu0 %962
          %964 = vrot.lane.b32.xlu0 %v418, 17
          %v965 = vpop.permute.xlu0 %964
          %v966 = vsel %vm959, %v963, %v965
          %v967 = vsel %vm959, %v965, %v963
          %s968 = sld [smem:[#allocation5 + $0x10]]
          %v969 = vstv %s968
          %v970 = vmul.f32 %v969, %v961
          %v971 = vmul.f32 %v969, %v960
          %s972 = sld [smem:[#allocation5 + $0x41]]
          %v973 = vstv %s972
          %v974 = vmul.f32 %v973, %v967
          %v975 = vmul.f32 %v973, %v966
          %v976 = vadd.f32 %v970, %v974
          %v977 = vadd.f32 %v971, %v975
          %vm978 = vmand %vm357, %vm526
          %vm979 = vmand %vm358, %vm527
          %v980 = vsel %vm978, %v976, 0.0
          %v981 = vsel %vm979, %v977, 0.0
          %v982 = vadd.f32 %v953, %v980
          %v983 = vadd.f32 %v954, %v981
          %984 = vrot.lane.b32.xlu0 %v396, 16
          %v985 = vpop.permute.xlu0 %984
          %986 = vrot.lane.b32.xlu0 %v400, 16
          %v987 = vpop.permute.xlu0 %986
          %vm988 = vcmp.lt.s32.totalorder %v342, 16
          %v989 = vsel %vm988, %v985, %v987
          %v990 = vsel %vm988, %v987, %v985
          %991 = vrot.lane.b32.xlu0 %v414, 16
          %v992 = vpop.permute.xlu0 %991
          %993 = vrot.lane.b32.xlu0 %v418, 16
          %v994 = vpop.permute.xlu0 %993
          %v995 = vsel %vm988, %v992, %v994
          %v996 = vsel %vm988, %v994, %v992
          %s997 = sld [smem:[#allocation5 + $0x11]]
          %v998 = vstv %s997
          %v999 = vmul.f32 %v998, %v990
          %v1000 = vmul.f32 %v998, %v989
          %s1001 = sld [smem:[#allocation5 + $0x42]]
          %v1002 = vstv %s1001
          %v1003 = vmul.f32 %v1002, %v996
          %v1004 = vmul.f32 %v1002, %v995
          %v1005 = vadd.f32 %v999, %v1003
          %v1006 = vadd.f32 %v1000, %v1004
          %vm1007 = vmand %vm357, %vm566
          %vm1008 = vmand %vm358, %vm567
          %v1009 = vsel %vm1007, %v1005, 0.0
          %v1010 = vsel %vm1008, %v1006, 0.0
          %v1011 = vadd.f32 %v982, %v1009
          %v1012 = vadd.f32 %v983, %v1010
          %1013 = vrot.lane.b32.xlu0 %v396, 15
          %v1014 = vpop.permute.xlu0 %1013
          %1015 = vrot.lane.b32.xlu0 %v400, 15
          %v1016 = vpop.permute.xlu0 %1015
          %vm1017 = vcmp.lt.s32.totalorder %v342, 15
          %v1018 = vsel %vm1017, %v1014, %v1016
          %v1019 = vsel %vm1017, %v1016, %v1014
          %1020 = vrot.lane.b32.xlu0 %v414, 15
          %v1021 = vpop.permute.xlu0 %1020
          %1022 = vrot.lane.b32.xlu0 %v418, 15
          %v1023 = vpop.permute.xlu0 %1022
          %v1024 = vsel %vm1017, %v1021, %v1023
          %v1025 = vsel %vm1017, %v1023, %v1021
          %s1026 = sld [smem:[#allocation5 + $0x12]]
          %v1027 = vstv %s1026
          %v1028 = vmul.f32 %v1027, %v1019
          %v1029 = vmul.f32 %v1027, %v1018
          %s1030 = sld [smem:[#allocation5 + $0x43]]
          %v1031 = vstv %s1030
          %v1032 = vmul.f32 %v1031, %v1025
          %v1033 = vmul.f32 %v1031, %v1024
          %v1034 = vadd.f32 %v1028, %v1032
          %v1035 = vadd.f32 %v1029, %v1033
          %vm1036 = vmand %vm357, %vm606
          %vm1037 = vmand %vm358, %vm607
          %v1038 = vsel %vm1036, %v1034, 0.0
          %v1039 = vsel %vm1037, %v1035, 0.0
          %v1040 = vadd.f32 %v1011, %v1038
          %v1041 = vadd.f32 %v1012, %v1039
          %1042 = vrot.lane.b32.xlu0 %v396, 14
          %v1043 = vpop.permute.xlu0 %1042
          %1044 = vrot.lane.b32.xlu0 %v400, 14
          %v1045 = vpop.permute.xlu0 %1044
          %vm1046 = vcmp.lt.s32.totalorder %v342, 14
          %v1047 = vsel %vm1046, %v1043, %v1045
          %v1048 = vsel %vm1046, %v1045, %v1043
          %1049 = vrot.lane.b32.xlu0 %v414, 14
          %v1050 = vpop.permute.xlu0 %1049
          %1051 = vrot.lane.b32.xlu0 %v418, 14
          %v1052 = vpop.permute.xlu0 %1051
          %v1053 = vsel %vm1046, %v1050, %v1052
          %v1054 = vsel %vm1046, %v1052, %v1050
          %s1055 = sld [smem:[#allocation5 + $0x13]]
          %v1056 = vstv %s1055
          %v1057 = vmul.f32 %v1056, %v1048
          %v1058 = vmul.f32 %v1056, %v1047
          %s1059 = sld [smem:[#allocation5 + $0x44]]
          %v1060 = vstv %s1059
          %v1061 = vmul.f32 %v1060, %v1054
          %v1062 = vmul.f32 %v1060, %v1053
          %v1063 = vadd.f32 %v1057, %v1061
          %v1064 = vadd.f32 %v1058, %v1062
          %vm1065 = vmand %vm357, %vm646
          %vm1066 = vmand %vm358, %vm647
          %v1067 = vsel %vm1065, %v1063, 0.0
          %v1068 = vsel %vm1066, %v1064, 0.0
          %v1069 = vadd.f32 %v1040, %v1067
          %v1070 = vadd.f32 %v1041, %v1068
          %1071 = vrot.lane.b32.xlu0 %v396, 13
          %v1072 = vpop.permute.xlu0 %1071
          %1073 = vrot.lane.b32.xlu0 %v400, 13
          %v1074 = vpop.permute.xlu0 %1073
          %vm1075 = vcmp.lt.s32.totalorder %v342, 13
          %v1076 = vsel %vm1075, %v1072, %v1074
          %v1077 = vsel %vm1075, %v1074, %v1072
          %1078 = vrot.lane.b32.xlu0 %v414, 13
          %v1079 = vpop.permute.xlu0 %1078
          %1080 = vrot.lane.b32.xlu0 %v418, 13
          %v1081 = vpop.permute.xlu0 %1080
          %v1082 = vsel %vm1075, %v1079, %v1081
          %v1083 = vsel %vm1075, %v1081, %v1079
          %s1084 = sld [smem:[#allocation5 + $0x14]]
          %v1085 = vstv %s1084
          %v1086 = vmul.f32 %v1085, %v1077
          %v1087 = vmul.f32 %v1085, %v1076
          %s1088 = sld [smem:[#allocation5 + $0x45]]
          %v1089 = vstv %s1088
          %v1090 = vmul.f32 %v1089, %v1083
          %v1091 = vmul.f32 %v1089, %v1082
          %v1092 = vadd.f32 %v1086, %v1090
          %v1093 = vadd.f32 %v1087, %v1091
          %vm1094 = vmand %vm357, %vm686
          %vm1095 = vmand %vm358, %vm687
          %v1096 = vsel %vm1094, %v1092, 0.0
          %v1097 = vsel %vm1095, %v1093, 0.0
          %v1098 = vadd.f32 %v1069, %v1096
          %v1099 = vadd.f32 %v1070, %v1097
          %1100 = vrot.lane.b32.xlu0 %v396, 3
          %v1101 = vpop.permute.xlu0 %1100
          %1102 = vrot.lane.b32.xlu0 %v400, 3
          %v1103 = vpop.permute.xlu0 %1102
          %vm1104 = vcmp.lt.s32.totalorder %v342, 3
          %v1105 = vsel %vm1104, %v1101, %v1103
          %v1106 = vsel %vm1104, %v1103, %v1101
          %1107 = vrot.lane.b32.xlu0 %v414, 3
          %v1108 = vpop.permute.xlu0 %1107
          %1109 = vrot.lane.b32.xlu0 %v418, 3
          %v1110 = vpop.permute.xlu0 %1109
          %v1111 = vsel %vm1104, %v1108, %v1110
          %v1112 = vsel %vm1104, %v1110, %v1108
          %s1113 = sld [smem:[#allocation5 + $0x15]]
          %v1114 = vstv %s1113
          %v1115 = vmul.f32 %v1114, %v1106
          %v1116 = vmul.f32 %v1114, %v1105
          %s1117 = sld [smem:[#allocation5 + $0x46]]
          %v1118 = vstv %s1117
          %v1119 = vmul.f32 %v1118, %v1112
          %v1120 = vmul.f32 %v1118, %v1111
          %v1121 = vadd.f32 %v1115, %v1119
          %v1122 = vadd.f32 %v1116, %v1120
          %vm1123 = vmand %vm361, %vm446
          %vm1124 = vmand %vm362, %vm447
          %v1125 = vsel %vm1123, %v1121, 0.0
          %v1126 = vsel %vm1124, %v1122, 0.0
          %v1127 = vadd.f32 %v1098, %v1125
          %v1128 = vadd.f32 %v1099, %v1126
          %1129 = vrot.lane.b32.xlu0 %v396, 2
          %v1130 = vpop.permute.xlu0 %1129
          %1131 = vrot.lane.b32.xlu0 %v400, 2
          %v1132 = vpop.permute.xlu0 %1131
          %vm1133 = vcmp.lt.s32.totalorder %v342, 2
          %v1134 = vsel %vm1133, %v1130, %v1132
          %v1135 = vsel %vm1133, %v1132, %v1130
          %1136 = vrot.lane.b32.xlu0 %v414, 2
          %v1137 = vpop.permute.xlu0 %1136
          %1138 = vrot.lane.b32.xlu0 %v418, 2
          %v1139 = vpop.permute.xlu0 %1138
          %v1140 = vsel %vm1133, %v1137, %v1139
          %v1141 = vsel %vm1133, %v1139, %v1137
          %s1142 = sld [smem:[#allocation5 + $0x16]]
          %v1143 = vstv %s1142
          %v1144 = vmul.f32 %v1143, %v1135
          %v1145 = vmul.f32 %v1143, %v1134
          %s1146 = sld [smem:[#allocation5 + $0x47]]
          %v1147 = vstv %s1146
          %v1148 = vmul.f32 %v1147, %v1141
          %v1149 = vmul.f32 %v1147, %v1140
          %v1150 = vadd.f32 %v1144, %v1148
          %v1151 = vadd.f32 %v1145, %v1149
          %vm1152 = vmand %vm361, %vm486
          %vm1153 = vmand %vm362, %vm487
          %v1154 = vsel %vm1152, %v1150, 0.0
          %v1155 = vsel %vm1153, %v1151, 0.0
          %v1156 = vadd.f32 %v1127, %v1154
          %v1157 = vadd.f32 %v1128, %v1155
          %1158 = vrot.lane.b32.xlu0 %v396, 1
          %v1159 = vpop.permute.xlu0 %1158
          %1160 = vrot.lane.b32.xlu0 %v400, 1
          %v1161 = vpop.permute.xlu0 %1160
          %vm1162 = vcmp.lt.s32.totalorder %v342, 1
          %v1163 = vsel %vm1162, %v1159, %v1161
          %v1164 = vsel %vm1162, %v1161, %v1159
          %1165 = vrot.lane.b32.xlu0 %v414, 1
          %v1166 = vpop.permute.xlu0 %1165
          %1167 = vrot.lane.b32.xlu0 %v418, 1
          %v1168 = vpop.permute.xlu0 %1167
          %v1169 = vsel %vm1162, %v1166, %v1168
          %v1170 = vsel %vm1162, %v1168, %v1166
          %s1171 = sld [smem:[#allocation5 + $0x17]]
          %v1172 = vstv %s1171
          %v1173 = vmul.f32 %v1172, %v1164
          %v1174 = vmul.f32 %v1172, %v1163
          %s1175 = sld [smem:[#allocation5 + $0x48]]
          %v1176 = vstv %s1175
          %v1177 = vmul.f32 %v1176, %v1170
          %v1178 = vmul.f32 %v1176, %v1169
          %v1179 = vadd.f32 %v1173, %v1177
          %v1180 = vadd.f32 %v1174, %v1178
          %vm1181 = vmand %vm361, %vm526
          %vm1182 = vmand %vm362, %vm527
          %v1183 = vsel %vm1181, %v1179, 0.0
          %v1184 = vsel %vm1182, %v1180, 0.0
          %v1185 = vadd.f32 %v1156, %v1183
          %v1186 = vadd.f32 %v1157, %v1184
          %s1187 = sld [smem:[#allocation5 + $0x18]]
          %v1188 = vstv %s1187
          %v1189 = vmul.f32 %v1188, %v337
          %s1190 = sld [smem:[#allocation5 + $0x49]]
          %v1191 = vstv %s1190
          %v1192 = vmul.f32 %v1191, %v340
          %v1193 = vadd.f32 %v1189, %v1192
          %vm1194 = vmand %vm361, %vm566
          %vm1195 = vmand %vm362, %vm567
          %v1197 = vlaneseq
          %v1198 = vshrl.u32 %v1197, 7
          %v1199 = vsub.s32 0, %v1198
          %v1200 = vrot.slane %v1193, %v1199
          %v1201 = vlaneseq
          %v1202 = vshrl.u32 %v1201, 7
          %v1203 = vsub.s32 1, %v1202
          %v1204 = vrot.slane %v1193, %v1203
          %v1207 = vsel %vm1194, %v1200, 0.0
          %v1208 = vsel %vm1195, %v1204, 0.0
          %v1209 = vadd.f32 %v1185, %v1207
          %v1210 = vadd.f32 %v1186, %v1208
          %1211 = vrot.lane.b32.xlu0 %v396, 127
          %v1212 = vpop.permute.xlu0 %1211
          %1213 = vrot.lane.b32.xlu0 %v400, 127
          %v1214 = vpop.permute.xlu0 %1213
          %vm1215 = vcmp.lt.s32.totalorder %v342, 127
          %v1216 = vsel %vm1215, %v1212, %v1214
          %v1217 = vsel %vm1215, %v1214, %v1212
          %1218 = vrot.lane.b32.xlu0 %v414, 127
          %v1219 = vpop.permute.xlu0 %1218
          %1220 = vrot.lane.b32.xlu0 %v418, 127
          %v1221 = vpop.permute.xlu0 %1220
          %v1222 = vsel %vm1215, %v1219, %v1221
          %v1223 = vsel %vm1215, %v1221, %v1219
          %s1224 = sld [smem:[#allocation5 + $0x19]]
          %v1225 = vstv %s1224
          %v1226 = vmul.f32 %v1225, %v1216
          %v1227 = vmul.f32 %v1225, %v1217
          %s1228 = sld [smem:[#allocation5 + $0x4a]]
          %v1229 = vstv %s1228
          %v1230 = vmul.f32 %v1229, %v1222
          %v1231 = vmul.f32 %v1229, %v1223
          %v1232 = vadd.f32 %v1226, %v1230
          %v1233 = vadd.f32 %v1227, %v1231
          %vm1234 = vmand %vm361, %vm606
          %vm1235 = vmand %vm362, %vm607
          %v1236 = vsel %vm1234, %v1232, 0.0
          %v1237 = vsel %vm1235, %v1233, 0.0
          %v1238 = vadd.f32 %v1209, %v1236
          %v1239 = vadd.f32 %v1210, %v1237
          %1240 = vrot.lane.b32.xlu0 %v396, 126
          %v1241 = vpop.permute.xlu0 %1240
          %1242 = vrot.lane.b32.xlu0 %v400, 126
          %v1243 = vpop.permute.xlu0 %1242
          %vm1244 = vcmp.lt.s32.totalorder %v342, 126
          %v1245 = vsel %vm1244, %v1241, %v1243
          %v1246 = vsel %vm1244, %v1243, %v1241
          %1247 = vrot.lane.b32.xlu0 %v414, 126
          %v1248 = vpop.permute.xlu0 %1247
          %1249 = vrot.lane.b32.xlu0 %v418, 126
          %v1250 = vpop.permute.xlu0 %1249
          %v1251 = vsel %vm1244, %v1248, %v1250
          %v1252 = vsel %vm1244, %v1250, %v1248
          %s1253 = sld [smem:[#allocation5 + $0x1a]]
          %v1254 = vstv %s1253
          %v1255 = vmul.f32 %v1254, %v1245
          %v1256 = vmul.f32 %v1254, %v1246
          %s1257 = sld [smem:[#allocation5 + $0x4b]]
          %v1258 = vstv %s1257
          %v1259 = vmul.f32 %v1258, %v1251
          %v1260 = vmul.f32 %v1258, %v1252
          %v1261 = vadd.f32 %v1255, %v1259
          %v1262 = vadd.f32 %v1256, %v1260
          %vm1263 = vmand %vm361, %vm646
          %vm1264 = vmand %vm362, %vm647
          %v1265 = vsel %vm1263, %v1261, 0.0
          %v1266 = vsel %vm1264, %v1262, 0.0
          %v1267 = vadd.f32 %v1238, %v1265
          %v1268 = vadd.f32 %v1239, %v1266
          %1269 = vrot.lane.b32.xlu0 %v396, 125
          %v1270 = vpop.permute.xlu0 %1269
          %1271 = vrot.lane.b32.xlu0 %v400, 125
          %v1272 = vpop.permute.xlu0 %1271
          %vm1273 = vcmp.lt.s32.totalorder %v342, 125
          %v1274 = vsel %vm1273, %v1270, %v1272
          %v1275 = vsel %vm1273, %v1272, %v1270
          %1276 = vrot.lane.b32.xlu0 %v414, 125
          %v1277 = vpop.permute.xlu0 %1276
          %1278 = vrot.lane.b32.xlu0 %v418, 125
          %v1279 = vpop.permute.xlu0 %1278
          %v1280 = vsel %vm1273, %v1277, %v1279
          %v1281 = vsel %vm1273, %v1279, %v1277
          %s1282 = sld [smem:[#allocation5 + $0x1b]]
          %v1283 = vstv %s1282
          %v1284 = vmul.f32 %v1283, %v1274
          %v1285 = vmul.f32 %v1283, %v1275
          %s1286 = sld [smem:[#allocation5 + $0x4c]]
          %v1287 = vstv %s1286
          %v1288 = vmul.f32 %v1287, %v1280
          %v1289 = vmul.f32 %v1287, %v1281
          %v1290 = vadd.f32 %v1284, %v1288
          %v1291 = vadd.f32 %v1285, %v1289
          %vm1292 = vmand %vm361, %vm686
          %vm1293 = vmand %vm362, %vm687
          %v1294 = vsel %vm1292, %v1290, 0.0
          %v1295 = vsel %vm1293, %v1291, 0.0
          %v1296 = vadd.f32 %v1267, %v1294
          %v1297 = vadd.f32 %v1268, %v1295
          %1298 = vrot.lane.b32.xlu0 %v396, 115
          %v1299 = vpop.permute.xlu0 %1298
          %1300 = vrot.lane.b32.xlu0 %v400, 115
          %v1301 = vpop.permute.xlu0 %1300
          %vm1302 = vcmp.lt.s32.totalorder %v342, 115
          %v1303 = vsel %vm1302, %v1299, %v1301
          %v1304 = vsel %vm1302, %v1301, %v1299
          %1305 = vrot.lane.b32.xlu0 %v414, 115
          %v1306 = vpop.permute.xlu0 %1305
          %1307 = vrot.lane.b32.xlu0 %v418, 115
          %v1308 = vpop.permute.xlu0 %1307
          %v1309 = vsel %vm1302, %v1306, %v1308
          %v1310 = vsel %vm1302, %v1308, %v1306
          %s1311 = sld [smem:[#allocation5 + $0x1c]]
          %v1312 = vstv %s1311
          %v1313 = vmul.f32 %v1312, %v1303
          %v1314 = vmul.f32 %v1312, %v1304
          %s1315 = sld [smem:[#allocation5 + $0x4d]]
          %v1316 = vstv %s1315
          %v1317 = vmul.f32 %v1316, %v1309
          %v1318 = vmul.f32 %v1316, %v1310
          %v1319 = vadd.f32 %v1313, %v1317
          %v1320 = vadd.f32 %v1314, %v1318
          %vm1321 = vmand %vm365, %vm446
          %vm1322 = vmand %vm366, %vm447
          %v1323 = vsel %vm1321, %v1319, 0.0
          %v1324 = vsel %vm1322, %v1320, 0.0
          %v1325 = vadd.f32 %v1296, %v1323
          %v1326 = vadd.f32 %v1297, %v1324
          %1327 = vrot.lane.b32.xlu0 %v396, 114
          %v1328 = vpop.permute.xlu0 %1327
          %1329 = vrot.lane.b32.xlu0 %v400, 114
          %v1330 = vpop.permute.xlu0 %1329
          %vm1331 = vcmp.lt.s32.totalorder %v342, 114
          %v1332 = vsel %vm1331, %v1328, %v1330
          %v1333 = vsel %vm1331, %v1330, %v1328
          %1334 = vrot.lane.b32.xlu0 %v414, 114
          %v1335 = vpop.permute.xlu0 %1334
          %1336 = vrot.lane.b32.xlu0 %v418, 114
          %v1337 = vpop.permute.xlu0 %1336
          %v1338 = vsel %vm1331, %v1335, %v1337
          %v1339 = vsel %vm1331, %v1337, %v1335
          %s1340 = sld [smem:[#allocation5 + $0x1d]]
          %v1341 = vstv %s1340
          %v1342 = vmul.f32 %v1341, %v1332
          %v1343 = vmul.f32 %v1341, %v1333
          %s1344 = sld [smem:[#allocation5 + $0x4e]]
          %v1345 = vstv %s1344
          %v1346 = vmul.f32 %v1345, %v1338
          %v1347 = vmul.f32 %v1345, %v1339
          %v1348 = vadd.f32 %v1342, %v1346
          %v1349 = vadd.f32 %v1343, %v1347
          %vm1350 = vmand %vm365, %vm486
          %vm1351 = vmand %vm366, %vm487
          %v1352 = vsel %vm1350, %v1348, 0.0
          %v1353 = vsel %vm1351, %v1349, 0.0
          %v1354 = vadd.f32 %v1325, %v1352
          %v1355 = vadd.f32 %v1326, %v1353
          %1356 = vrot.lane.b32.xlu0 %v396, 113
          %v1357 = vpop.permute.xlu0 %1356
          %1358 = vrot.lane.b32.xlu0 %v400, 113
          %v1359 = vpop.permute.xlu0 %1358
          %vm1360 = vcmp.lt.s32.totalorder %v342, 113
          %v1361 = vsel %vm1360, %v1357, %v1359
          %v1362 = vsel %vm1360, %v1359, %v1357
          %1363 = vrot.lane.b32.xlu0 %v414, 113
          %v1364 = vpop.permute.xlu0 %1363
          %1365 = vrot.lane.b32.xlu0 %v418, 113
          %v1366 = vpop.permute.xlu0 %1365
          %v1367 = vsel %vm1360, %v1364, %v1366
          %v1368 = vsel %vm1360, %v1366, %v1364
          %s1369 = sld [smem:[#allocation5 + $0x1e]]
          %v1370 = vstv %s1369
          %v1371 = vmul.f32 %v1370, %v1361
          %v1372 = vmul.f32 %v1370, %v1362
          %s1373 = sld [smem:[#allocation5 + $0x4f]]
          %v1374 = vstv %s1373
          %v1375 = vmul.f32 %v1374, %v1367
          %v1376 = vmul.f32 %v1374, %v1368
          %v1377 = vadd.f32 %v1371, %v1375
          %v1378 = vadd.f32 %v1372, %v1376
          %vm1379 = vmand %vm365, %vm526
          %vm1380 = vmand %vm366, %vm527
          %v1381 = vsel %vm1379, %v1377, 0.0
          %v1382 = vsel %vm1380, %v1378, 0.0
          %v1383 = vadd.f32 %v1354, %v1381
          %v1384 = vadd.f32 %v1355, %v1382
          %1385 = vrot.lane.b32.xlu0 %v396, 112
          %v1386 = vpop.permute.xlu0 %1385
          %1387 = vrot.lane.b32.xlu0 %v400, 112
          %v1388 = vpop.permute.xlu0 %1387
          %vm1389 = vcmp.lt.s32.totalorder %v342, 112
          %v1390 = vsel %vm1389, %v1386, %v1388
          %v1391 = vsel %vm1389, %v1388, %v1386
          %1392 = vrot.lane.b32.xlu0 %v414, 112
          %v1393 = vpop.permute.xlu0 %1392
          %1394 = vrot.lane.b32.xlu0 %v418, 112
          %v1395 = vpop.permute.xlu0 %1394
          %v1396 = vsel %vm1389, %v1393, %v1395
          %v1397 = vsel %vm1389, %v1395, %v1393
          %s1398 = sld [smem:[#allocation5 + $0x1f]]
          %v1399 = vstv %s1398
          %v1400 = vmul.f32 %v1399, %v1390
          %v1401 = vmul.f32 %v1399, %v1391
          %s1402 = sld [smem:[#allocation5 + $0x50]]
          %v1403 = vstv %s1402
          %v1404 = vmul.f32 %v1403, %v1396
          %v1405 = vmul.f32 %v1403, %v1397
          %v1406 = vadd.f32 %v1400, %v1404
          %v1407 = vadd.f32 %v1401, %v1405
          %vm1408 = vmand %vm365, %vm566
          %vm1409 = vmand %vm366, %vm567
          %v1410 = vsel %vm1408, %v1406, 0.0
          %v1411 = vsel %vm1409, %v1407, 0.0
          %v1412 = vadd.f32 %v1383, %v1410
          %v1413 = vadd.f32 %v1384, %v1411
          %1414 = vrot.lane.b32.xlu0 %v396, 111
          %v1415 = vpop.permute.xlu0 %1414
          %1416 = vrot.lane.b32.xlu0 %v400, 111
          %v1417 = vpop.permute.xlu0 %1416
          %vm1418 = vcmp.lt.s32.totalorder %v342, 111
          %v1419 = vsel %vm1418, %v1415, %v1417
          %v1420 = vsel %vm1418, %v1417, %v1415
          %1421 = vrot.lane.b32.xlu0 %v414, 111
          %v1422 = vpop.permute.xlu0 %1421
          %1423 = vrot.lane.b32.xlu0 %v418, 111
          %v1424 = vpop.permute.xlu0 %1423
          %v1425 = vsel %vm1418, %v1422, %v1424
          %v1426 = vsel %vm1418, %v1424, %v1422
          %s1427 = sld [smem:[#allocation5 + $0x20]]
          %v1428 = vstv %s1427
          %v1429 = vmul.f32 %v1428, %v1419
          %v1430 = vmul.f32 %v1428, %v1420
          %s1431 = sld [smem:[#allocation5 + $0x51]]
          %v1432 = vstv %s1431
          %v1433 = vmul.f32 %v1432, %v1425
          %v1434 = vmul.f32 %v1432, %v1426
          %v1435 = vadd.f32 %v1429, %v1433
          %v1436 = vadd.f32 %v1430, %v1434
          %vm1437 = vmand %vm365, %vm606
          %vm1438 = vmand %vm366, %vm607
          %v1439 = vsel %vm1437, %v1435, 0.0
          %v1440 = vsel %vm1438, %v1436, 0.0
          %v1441 = vadd.f32 %v1412, %v1439
          %v1442 = vadd.f32 %v1413, %v1440
          %1443 = vrot.lane.b32.xlu0 %v396, 110
          %v1444 = vpop.permute.xlu0 %1443
          %1445 = vrot.lane.b32.xlu0 %v400, 110
          %v1446 = vpop.permute.xlu0 %1445
          %vm1447 = vcmp.lt.s32.totalorder %v342, 110
          %v1448 = vsel %vm1447, %v1444, %v1446
          %v1449 = vsel %vm1447, %v1446, %v1444
          %1450 = vrot.lane.b32.xlu0 %v414, 110
          %v1451 = vpop.permute.xlu0 %1450
          %1452 = vrot.lane.b32.xlu0 %v418, 110
          %v1453 = vpop.permute.xlu0 %1452
          %v1454 = vsel %vm1447, %v1451, %v1453
          %v1455 = vsel %vm1447, %v1453, %v1451
          %s1456 = sld [smem:[#allocation5 + $0x21]]
          %v1457 = vstv %s1456
          %v1458 = vmul.f32 %v1457, %v1448
          %v1459 = vmul.f32 %v1457, %v1449
          %s1460 = sld [smem:[#allocation5 + $0x52]]
          %v1461 = vstv %s1460
          %v1462 = vmul.f32 %v1461, %v1454
          %v1463 = vmul.f32 %v1461, %v1455
          %v1464 = vadd.f32 %v1458, %v1462
          %v1465 = vadd.f32 %v1459, %v1463
          %vm1466 = vmand %vm365, %vm646
          %vm1467 = vmand %vm366, %vm647
          %v1468 = vsel %vm1466, %v1464, 0.0
          %v1469 = vsel %vm1467, %v1465, 0.0
          %v1470 = vadd.f32 %v1441, %v1468
          %v1471 = vadd.f32 %v1442, %v1469
          %1472 = vrot.lane.b32.xlu0 %v396, 109
          %v1473 = vpop.permute.xlu0 %1472
          %1474 = vrot.lane.b32.xlu0 %v400, 109
          %v1475 = vpop.permute.xlu0 %1474
          %vm1476 = vcmp.lt.s32.totalorder %v342, 109
          %v1477 = vsel %vm1476, %v1473, %v1475
          %v1478 = vsel %vm1476, %v1475, %v1473
          %1479 = vrot.lane.b32.xlu0 %v414, 109
          %v1480 = vpop.permute.xlu0 %1479
          %1481 = vrot.lane.b32.xlu0 %v418, 109
          %v1482 = vpop.permute.xlu0 %1481
          %v1483 = vsel %vm1476, %v1480, %v1482
          %v1484 = vsel %vm1476, %v1482, %v1480
          %s1485 = sld [smem:[#allocation5 + $0x22]]
          %v1486 = vstv %s1485
          %v1487 = vmul.f32 %v1486, %v1477
          %v1488 = vmul.f32 %v1486, %v1478
          %s1489 = sld [smem:[#allocation5 + $0x53]]
          %v1490 = vstv %s1489
          %v1491 = vmul.f32 %v1490, %v1483
          %v1492 = vmul.f32 %v1490, %v1484
          %v1493 = vadd.f32 %v1487, %v1491
          %v1494 = vadd.f32 %v1488, %v1492
          %vm1495 = vmand %vm365, %vm686
          %vm1496 = vmand %vm366, %vm687
          %v1497 = vsel %vm1495, %v1493, 0.0
          %v1498 = vsel %vm1496, %v1494, 0.0
          %v1499 = vadd.f32 %v1470, %v1497
          %v1500 = vadd.f32 %v1471, %v1498
          %1501 = vrot.lane.b32.xlu0 %v396, 99
          %v1502 = vpop.permute.xlu0 %1501
          %1503 = vrot.lane.b32.xlu0 %v400, 99
          %v1504 = vpop.permute.xlu0 %1503
          %vm1505 = vcmp.lt.s32.totalorder %v342, 99
          %v1506 = vsel %vm1505, %v1502, %v1504
          %v1507 = vsel %vm1505, %v1504, %v1502
          %1508 = vrot.lane.b32.xlu0 %v414, 99
          %v1509 = vpop.permute.xlu0 %1508
          %1510 = vrot.lane.b32.xlu0 %v418, 99
          %v1511 = vpop.permute.xlu0 %1510
          %v1512 = vsel %vm1505, %v1509, %v1511
          %v1513 = vsel %vm1505, %v1511, %v1509
          %s1514 = sld [smem:[#allocation5 + $0x23]]
          %v1515 = vstv %s1514
          %v1516 = vmul.f32 %v1515, %v1506
          %v1517 = vmul.f32 %v1515, %v1507
          %s1518 = sld [smem:[#allocation5 + $0x54]]
          %v1519 = vstv %s1518
          %v1520 = vmul.f32 %v1519, %v1512
          %v1521 = vmul.f32 %v1519, %v1513
          %v1522 = vadd.f32 %v1516, %v1520
          %v1523 = vadd.f32 %v1517, %v1521
          %vm1524 = vmand %vm369, %vm446
          %vm1525 = vmand %vm370, %vm447
          %v1526 = vsel %vm1524, %v1522, 0.0
          %v1527 = vsel %vm1525, %v1523, 0.0
          %v1528 = vadd.f32 %v1499, %v1526
          %v1529 = vadd.f32 %v1500, %v1527
          %1530 = vrot.lane.b32.xlu0 %v396, 98
          %v1531 = vpop.permute.xlu0 %1530
          %1532 = vrot.lane.b32.xlu0 %v400, 98
          %v1533 = vpop.permute.xlu0 %1532
          %vm1534 = vcmp.lt.s32.totalorder %v342, 98
          %v1535 = vsel %vm1534, %v1531, %v1533
          %v1536 = vsel %vm1534, %v1533, %v1531
          %1537 = vrot.lane.b32.xlu0 %v414, 98
          %v1538 = vpop.permute.xlu0 %1537
          %1539 = vrot.lane.b32.xlu0 %v418, 98
          %v1540 = vpop.permute.xlu0 %1539
          %v1541 = vsel %vm1534, %v1538, %v1540
          %v1542 = vsel %vm1534, %v1540, %v1538
          %s1543 = sld [smem:[#allocation5 + $0x24]]
          %v1544 = vstv %s1543
          %v1545 = vmul.f32 %v1544, %v1535
          %v1546 = vmul.f32 %v1544, %v1536
          %s1547 = sld [smem:[#allocation5 + $0x55]]
          %v1548 = vstv %s1547
          %v1549 = vmul.f32 %v1548, %v1541
          %v1550 = vmul.f32 %v1548, %v1542
          %v1551 = vadd.f32 %v1545, %v1549
          %v1552 = vadd.f32 %v1546, %v1550
          %vm1553 = vmand %vm369, %vm486
          %vm1554 = vmand %vm370, %vm487
          %v1555 = vsel %vm1553, %v1551, 0.0
          %v1556 = vsel %vm1554, %v1552, 0.0
          %v1557 = vadd.f32 %v1528, %v1555
          %v1558 = vadd.f32 %v1529, %v1556
          %1559 = vrot.lane.b32.xlu0 %v396, 97
          %v1560 = vpop.permute.xlu0 %1559
          %1561 = vrot.lane.b32.xlu0 %v400, 97
          %v1562 = vpop.permute.xlu0 %1561
          %vm1563 = vcmp.lt.s32.totalorder %v342, 97
          %v1564 = vsel %vm1563, %v1560, %v1562
          %v1565 = vsel %vm1563, %v1562, %v1560
          %1566 = vrot.lane.b32.xlu0 %v414, 97
          %v1567 = vpop.permute.xlu0 %1566
          %1568 = vrot.lane.b32.xlu0 %v418, 97
          %v1569 = vpop.permute.xlu0 %1568
          %v1570 = vsel %vm1563, %v1567, %v1569
          %v1571 = vsel %vm1563, %v1569, %v1567
          %s1572 = sld [smem:[#allocation5 + $0x25]]
          %v1573 = vstv %s1572
          %v1574 = vmul.f32 %v1573, %v1564
          %v1575 = vmul.f32 %v1573, %v1565
          %s1576 = sld [smem:[#allocation5 + $0x56]]
          %v1577 = vstv %s1576
          %v1578 = vmul.f32 %v1577, %v1570
          %v1579 = vmul.f32 %v1577, %v1571
          %v1580 = vadd.f32 %v1574, %v1578
          %v1581 = vadd.f32 %v1575, %v1579
          %vm1582 = vmand %vm369, %vm526
          %vm1583 = vmand %vm370, %vm527
          %v1584 = vsel %vm1582, %v1580, 0.0
          %v1585 = vsel %vm1583, %v1581, 0.0
          %v1586 = vadd.f32 %v1557, %v1584
          %v1587 = vadd.f32 %v1558, %v1585
          %1588 = vrot.lane.b32.xlu0 %v396, 96
          %v1589 = vpop.permute.xlu0 %1588
          %1590 = vrot.lane.b32.xlu0 %v400, 96
          %v1591 = vpop.permute.xlu0 %1590
          %vm1592 = vcmp.lt.s32.totalorder %v342, 96
          %v1593 = vsel %vm1592, %v1589, %v1591
          %v1594 = vsel %vm1592, %v1591, %v1589
          %1595 = vrot.lane.b32.xlu0 %v414, 96
          %v1596 = vpop.permute.xlu0 %1595
          %1597 = vrot.lane.b32.xlu0 %v418, 96
          %v1598 = vpop.permute.xlu0 %1597
          %v1599 = vsel %vm1592, %v1596, %v1598
          %v1600 = vsel %vm1592, %v1598, %v1596
          %s1601 = sld [smem:[#allocation5 + $0x26]]
          %v1602 = vstv %s1601
          %v1603 = vmul.f32 %v1602, %v1593
          %v1604 = vmul.f32 %v1602, %v1594
          %s1605 = sld [smem:[#allocation5 + $0x57]]
          %v1606 = vstv %s1605
          %v1607 = vmul.f32 %v1606, %v1599
          %v1608 = vmul.f32 %v1606, %v1600
          %v1609 = vadd.f32 %v1603, %v1607
          %v1610 = vadd.f32 %v1604, %v1608
          %vm1611 = vmand %vm369, %vm566
          %vm1612 = vmand %vm370, %vm567
          %v1613 = vsel %vm1611, %v1609, 0.0
          %v1614 = vsel %vm1612, %v1610, 0.0
          %v1615 = vadd.f32 %v1586, %v1613
          %v1616 = vadd.f32 %v1587, %v1614
          %1617 = vrot.lane.b32.xlu0 %v396, 95
          %v1618 = vpop.permute.xlu0 %1617
          %1619 = vrot.lane.b32.xlu0 %v400, 95
          %v1620 = vpop.permute.xlu0 %1619
          %vm1621 = vcmp.lt.s32.totalorder %v342, 95
          %v1622 = vsel %vm1621, %v1618, %v1620
          %v1623 = vsel %vm1621, %v1620, %v1618
          %1624 = vrot.lane.b32.xlu0 %v414, 95
          %v1625 = vpop.permute.xlu0 %1624
          %1626 = vrot.lane.b32.xlu0 %v418, 95
          %v1627 = vpop.permute.xlu0 %1626
          %v1628 = vsel %vm1621, %v1625, %v1627
          %v1629 = vsel %vm1621, %v1627, %v1625
          %s1630 = sld [smem:[#allocation5 + $0x27]]
          %v1631 = vstv %s1630
          %v1632 = vmul.f32 %v1631, %v1622
          %v1633 = vmul.f32 %v1631, %v1623
          %s1634 = sld [smem:[#allocation5 + $0x58]]
          %v1635 = vstv %s1634
          %v1636 = vmul.f32 %v1635, %v1628
          %v1637 = vmul.f32 %v1635, %v1629
          %v1638 = vadd.f32 %v1632, %v1636
          %v1639 = vadd.f32 %v1633, %v1637
          %vm1640 = vmand %vm369, %vm606
          %vm1641 = vmand %vm370, %vm607
          %v1642 = vsel %vm1640, %v1638, 0.0
          %v1643 = vsel %vm1641, %v1639, 0.0
          %v1644 = vadd.f32 %v1615, %v1642
          %v1645 = vadd.f32 %v1616, %v1643
          %1646 = vrot.lane.b32.xlu0 %v396, 94
          %v1647 = vpop.permute.xlu0 %1646
          %1648 = vrot.lane.b32.xlu0 %v400, 94
          %v1649 = vpop.permute.xlu0 %1648
          %vm1650 = vcmp.lt.s32.totalorder %v342, 94
          %v1651 = vsel %vm1650, %v1647, %v1649
          %v1652 = vsel %vm1650, %v1649, %v1647
          %1653 = vrot.lane.b32.xlu0 %v414, 94
          %v1654 = vpop.permute.xlu0 %1653
          %1655 = vrot.lane.b32.xlu0 %v418, 94
          %v1656 = vpop.permute.xlu0 %1655
          %v1657 = vsel %vm1650, %v1654, %v1656
          %v1658 = vsel %vm1650, %v1656, %v1654
          %s1659 = sld [smem:[#allocation5 + $0x28]]
          %v1660 = vstv %s1659
          %v1661 = vmul.f32 %v1660, %v1651
          %v1662 = vmul.f32 %v1660, %v1652
          %s1663 = sld [smem:[#allocation5 + $0x59]]
          %v1664 = vstv %s1663
          %v1665 = vmul.f32 %v1664, %v1657
          %v1666 = vmul.f32 %v1664, %v1658
          %v1667 = vadd.f32 %v1661, %v1665
          %v1668 = vadd.f32 %v1662, %v1666
          %vm1669 = vmand %vm369, %vm646
          %vm1670 = vmand %vm370, %vm647
          %v1671 = vsel %vm1669, %v1667, 0.0
          %v1672 = vsel %vm1670, %v1668, 0.0
          %v1673 = vadd.f32 %v1644, %v1671
          %v1674 = vadd.f32 %v1645, %v1672
          %1675 = vrot.lane.b32.xlu0 %v396, 93
          %v1676 = vpop.permute.xlu0 %1675
          %1677 = vrot.lane.b32.xlu0 %v400, 93
          %v1678 = vpop.permute.xlu0 %1677
          %vm1679 = vcmp.lt.s32.totalorder %v342, 93
          %v1680 = vsel %vm1679, %v1676, %v1678
          %v1681 = vsel %vm1679, %v1678, %v1676
          %1682 = vrot.lane.b32.xlu0 %v414, 93
          %v1683 = vpop.permute.xlu0 %1682
          %1684 = vrot.lane.b32.xlu0 %v418, 93
          %v1685 = vpop.permute.xlu0 %1684
          %v1686 = vsel %vm1679, %v1683, %v1685
          %v1687 = vsel %vm1679, %v1685, %v1683
          %s1688 = sld [smem:[#allocation5 + $0x29]]
          %v1689 = vstv %s1688
          %v1690 = vmul.f32 %v1689, %v1680
          %v1691 = vmul.f32 %v1689, %v1681
          %s1692 = sld [smem:[#allocation5 + $0x5a]]
          %v1693 = vstv %s1692
          %v1694 = vmul.f32 %v1693, %v1686
          %v1695 = vmul.f32 %v1693, %v1687
          %v1696 = vadd.f32 %v1690, %v1694
          %v1697 = vadd.f32 %v1691, %v1695
          %vm1698 = vmand %vm369, %vm686
          %vm1699 = vmand %vm370, %vm687
          %v1700 = vsel %vm1698, %v1696, 0.0
          %v1701 = vsel %vm1699, %v1697, 0.0
          %v1702 = vadd.f32 %v1673, %v1700
          %v1703 = vadd.f32 %v1674, %v1701
          %1704 = vrot.lane.b32.xlu0 %v396, 83
          %v1705 = vpop.permute.xlu0 %1704
          %1706 = vrot.lane.b32.xlu0 %v400, 83
          %v1707 = vpop.permute.xlu0 %1706
          %vm1708 = vcmp.lt.s32.totalorder %v342, 83
          %v1709 = vsel %vm1708, %v1705, %v1707
          %v1710 = vsel %vm1708, %v1707, %v1705
          %1711 = vrot.lane.b32.xlu0 %v414, 83
          %v1712 = vpop.permute.xlu0 %1711
          %1713 = vrot.lane.b32.xlu0 %v418, 83
          %v1714 = vpop.permute.xlu0 %1713
          %v1715 = vsel %vm1708, %v1712, %v1714
          %v1716 = vsel %vm1708, %v1714, %v1712
          %s1717 = sld [smem:[#allocation5 + $0x2a]]
          %v1718 = vstv %s1717
          %v1719 = vmul.f32 %v1718, %v1709
          %v1720 = vmul.f32 %v1718, %v1710
          %s1721 = sld [smem:[#allocation5 + $0x5b]]
          %v1722 = vstv %s1721
          %v1723 = vmul.f32 %v1722, %v1715
          %v1724 = vmul.f32 %v1722, %v1716
          %v1725 = vadd.f32 %v1719, %v1723
          %v1726 = vadd.f32 %v1720, %v1724
          %vm1727 = vmand %vm373, %vm446
          %vm1728 = vmand %vm374, %vm447
          %v1729 = vsel %vm1727, %v1725, 0.0
          %v1730 = vsel %vm1728, %v1726, 0.0
          %v1731 = vadd.f32 %v1702, %v1729
          %v1732 = vadd.f32 %v1703, %v1730
          %1733 = vrot.lane.b32.xlu0 %v396, 82
          %v1734 = vpop.permute.xlu0 %1733
          %1735 = vrot.lane.b32.xlu0 %v400, 82
          %v1736 = vpop.permute.xlu0 %1735
          %vm1737 = vcmp.lt.s32.totalorder %v342, 82
          %v1738 = vsel %vm1737, %v1734, %v1736
          %v1739 = vsel %vm1737, %v1736, %v1734
          %1740 = vrot.lane.b32.xlu0 %v414, 82
          %v1741 = vpop.permute.xlu0 %1740
          %1742 = vrot.lane.b32.xlu0 %v418, 82
          %v1743 = vpop.permute.xlu0 %1742
          %v1744 = vsel %vm1737, %v1741, %v1743
          %v1745 = vsel %vm1737, %v1743, %v1741
          %s1746 = sld [smem:[#allocation5 + $0x2b]]
          %v1747 = vstv %s1746
          %v1748 = vmul.f32 %v1747, %v1738
          %v1749 = vmul.f32 %v1747, %v1739
          %s1750 = sld [smem:[#allocation5 + $0x5c]]
          %v1751 = vstv %s1750
          %v1752 = vmul.f32 %v1751, %v1744
          %v1753 = vmul.f32 %v1751, %v1745
          %v1754 = vadd.f32 %v1748, %v1752
          %v1755 = vadd.f32 %v1749, %v1753
          %vm1756 = vmand %vm373, %vm486
          %vm1757 = vmand %vm374, %vm487
          %v1758 = vsel %vm1756, %v1754, 0.0
          %v1759 = vsel %vm1757, %v1755, 0.0
          %v1760 = vadd.f32 %v1731, %v1758
          %v1761 = vadd.f32 %v1732, %v1759
          %1762 = vrot.lane.b32.xlu0 %v396, 81
          %v1763 = vpop.permute.xlu0 %1762
          %1764 = vrot.lane.b32.xlu0 %v400, 81
          %v1765 = vpop.permute.xlu0 %1764
          %vm1766 = vcmp.lt.s32.totalorder %v342, 81
          %v1767 = vsel %vm1766, %v1763, %v1765
          %v1768 = vsel %vm1766, %v1765, %v1763
          %1769 = vrot.lane.b32.xlu0 %v414, 81
          %v1770 = vpop.permute.xlu0 %1769
          %1771 = vrot.lane.b32.xlu0 %v418, 81
          %v1772 = vpop.permute.xlu0 %1771
          %v1773 = vsel %vm1766, %v1770, %v1772
          %v1774 = vsel %vm1766, %v1772, %v1770
          %s1775 = sld [smem:[#allocation5 + $0x2c]]
          %v1776 = vstv %s1775
          %v1777 = vmul.f32 %v1776, %v1767
          %v1778 = vmul.f32 %v1776, %v1768
          %s1779 = sld [smem:[#allocation5 + $0x5d]]
          %v1780 = vstv %s1779
          %v1781 = vmul.f32 %v1780, %v1773
          %v1782 = vmul.f32 %v1780, %v1774
          %v1783 = vadd.f32 %v1777, %v1781
          %v1784 = vadd.f32 %v1778, %v1782
          %vm1785 = vmand %vm373, %vm526
          %vm1786 = vmand %vm374, %vm527
          %v1787 = vsel %vm1785, %v1783, 0.0
          %v1788 = vsel %vm1786, %v1784, 0.0
          %v1789 = vadd.f32 %v1760, %v1787
          %v1790 = vadd.f32 %v1761, %v1788
          %1791 = vrot.lane.b32.xlu0 %v396, 80
          %v1792 = vpop.permute.xlu0 %1791
          %1793 = vrot.lane.b32.xlu0 %v400, 80
          %v1794 = vpop.permute.xlu0 %1793
          %vm1795 = vcmp.lt.s32.totalorder %v342, 80
          %v1796 = vsel %vm1795, %v1792, %v1794
          %v1797 = vsel %vm1795, %v1794, %v1792
          %1798 = vrot.lane.b32.xlu0 %v414, 80
          %v1799 = vpop.permute.xlu0 %1798
          %1800 = vrot.lane.b32.xlu0 %v418, 80
          %v1801 = vpop.permute.xlu0 %1800
          %v1802 = vsel %vm1795, %v1799, %v1801
          %v1803 = vsel %vm1795, %v1801, %v1799
          %s1804 = sld [smem:[#allocation5 + $0x2d]]
          %v1805 = vstv %s1804
          %v1806 = vmul.f32 %v1805, %v1796
          %v1807 = vmul.f32 %v1805, %v1797
          %s1808 = sld [smem:[#allocation5 + $0x5e]]
          %v1809 = vstv %s1808
          %v1810 = vmul.f32 %v1809, %v1802
          %v1811 = vmul.f32 %v1809, %v1803
          %v1812 = vadd.f32 %v1806, %v1810
          %v1813 = vadd.f32 %v1807, %v1811
          %vm1814 = vmand %vm373, %vm566
          %vm1815 = vmand %vm374, %vm567
          %v1816 = vsel %vm1814, %v1812, 0.0
          %v1817 = vsel %vm1815, %v1813, 0.0
          %v1818 = vadd.f32 %v1789, %v1816
          %v1819 = vadd.f32 %v1790, %v1817
          %1820 = vrot.lane.b32.xlu0 %v396, 79
          %v1821 = vpop.permute.xlu0 %1820
          %1822 = vrot.lane.b32.xlu0 %v400, 79
          %v1823 = vpop.permute.xlu0 %1822
          %vm1824 = vcmp.lt.s32.totalorder %v342, 79
          %v1825 = vsel %vm1824, %v1821, %v1823
          %v1826 = vsel %vm1824, %v1823, %v1821
          %1827 = vrot.lane.b32.xlu0 %v414, 79
          %v1828 = vpop.permute.xlu0 %1827
          %1829 = vrot.lane.b32.xlu0 %v418, 79
          %v1830 = vpop.permute.xlu0 %1829
          %v1831 = vsel %vm1824, %v1828, %v1830
          %v1832 = vsel %vm1824, %v1830, %v1828
          %s1833 = sld [smem:[#allocation5 + $0x2e]]
          %v1834 = vstv %s1833
          %v1835 = vmul.f32 %v1834, %v1825
          %v1836 = vmul.f32 %v1834, %v1826
          %s1837 = sld [smem:[#allocation5 + $0x5f]]
          %v1838 = vstv %s1837
          %v1839 = vmul.f32 %v1838, %v1831
          %v1840 = vmul.f32 %v1838, %v1832
          %v1841 = vadd.f32 %v1835, %v1839
          %v1842 = vadd.f32 %v1836, %v1840
          %vm1843 = vmand %vm373, %vm606
          %vm1844 = vmand %vm374, %vm607
          %v1845 = vsel %vm1843, %v1841, 0.0
          %v1846 = vsel %vm1844, %v1842, 0.0
          %v1847 = vadd.f32 %v1818, %v1845
          %v1848 = vadd.f32 %v1819, %v1846
          %1849 = vrot.lane.b32.xlu0 %v396, 78
          %v1850 = vpop.permute.xlu0 %1849
          %1851 = vrot.lane.b32.xlu0 %v400, 78
          %v1852 = vpop.permute.xlu0 %1851
          %vm1853 = vcmp.lt.s32.totalorder %v342, 78
          %v1854 = vsel %vm1853, %v1850, %v1852
          %v1855 = vsel %vm1853, %v1852, %v1850
          %1856 = vrot.lane.b32.xlu0 %v414, 78
          %v1857 = vpop.permute.xlu0 %1856
          %1858 = vrot.lane.b32.xlu0 %v418, 78
          %v1859 = vpop.permute.xlu0 %1858
          %v1860 = vsel %vm1853, %v1857, %v1859
          %v1861 = vsel %vm1853, %v1859, %v1857
          %s1862 = sld [smem:[#allocation5 + $0x2f]]
          %v1863 = vstv %s1862
          %v1864 = vmul.f32 %v1863, %v1854
          %v1865 = vmul.f32 %v1863, %v1855
          %s1866 = sld [smem:[#allocation5 + $0x60]]
          %v1867 = vstv %s1866
          %v1868 = vmul.f32 %v1867, %v1860
          %v1869 = vmul.f32 %v1867, %v1861
          %v1870 = vadd.f32 %v1864, %v1868
          %v1871 = vadd.f32 %v1865, %v1869
          %vm1872 = vmand %vm373, %vm646
          %vm1873 = vmand %vm374, %vm647
          %v1874 = vsel %vm1872, %v1870, 0.0
          %v1875 = vsel %vm1873, %v1871, 0.0
          %v1876 = vadd.f32 %v1847, %v1874
          %v1877 = vadd.f32 %v1848, %v1875
          %1878 = vrot.lane.b32.xlu0 %v396, 77
          %v1879 = vpop.permute.xlu0 %1878
          %1880 = vrot.lane.b32.xlu0 %v400, 77
          %v1881 = vpop.permute.xlu0 %1880
          %vm1882 = vcmp.lt.s32.totalorder %v342, 77
          %v1883 = vsel %vm1882, %v1879, %v1881
          %v1884 = vsel %vm1882, %v1881, %v1879
          %1885 = vrot.lane.b32.xlu0 %v414, 77
          %v1886 = vpop.permute.xlu0 %1885
          %1887 = vrot.lane.b32.xlu0 %v418, 77
          %v1888 = vpop.permute.xlu0 %1887
          %v1889 = vsel %vm1882, %v1886, %v1888
          %v1890 = vsel %vm1882, %v1888, %v1886
          %s1891 = sld [smem:[#allocation5 + $0x30]]
          %v1892 = vstv %s1891
          %v1893 = vmul.f32 %v1892, %v1883
          %v1894 = vmul.f32 %v1892, %v1884
          %s1895 = sld [smem:[#allocation5 + $0x61]]
          %v1896 = vstv %s1895
          %v1897 = vmul.f32 %v1896, %v1889
          %v1898 = vmul.f32 %v1896, %v1890
          %v1899 = vadd.f32 %v1893, %v1897
          %v1900 = vadd.f32 %v1894, %v1898
          %vm1901 = vmand %vm373, %vm686
          %vm1902 = vmand %vm374, %vm687
          %v1903 = vsel %vm1901, %v1899, 0.0
          %v1904 = vsel %vm1902, %v1900, 0.0
          %v1905 = vadd.f32 %v1876, %v1903
          %v1906 = vadd.f32 %v1877, %v1904
          %v1907 = vxor.u32 %v1905, 2147483648
          %v1908 = vxor.u32 %v1906, 2147483648
          %v1909 = vmul.f32 %v1907, 1.442695
          %v1910 = vpow.pop %v1909
          %v1911 = vmul.f32 %v1908, 1.442695
          %v1912 = vpow.pop %v1911
          %v1913 = vadd.f32 %v1910, 1.0
          %v1914 = vadd.f32 %v1912, 1.0
          %v1915 = vrcp.pop %v1913
          %v1916 = vmul.f32 1.0, %v1915
          %v1917 = vrcp.pop %v1914
          %v1918 = vmul.f32 1.0, %v1917
          %v1921 = vcombine.low %v1916, %v1918
          %v1923 = vunpack.c.l.s4 1966171168
          %v1924 = vunpack.c.0.s8 %v1923
          %v1925 = vlaneseq
          %v1926 = vshrl.u32 %v1925, 7
          %v1927 = vsub.s32 %v1924, %v1926
          %v1928 = vrot.slane %v1921, %v1927
          %v1930 = vunpack.c.l.s4 1966171168
          %v1931 = vunpack.c.0.s8 %v1930
          %v1932 = vlaneseq
          %v1933 = vshrl.u32 %v1932, 7
          %v1934 = vsub.s32 %v1931, %v1933
          %v1935 = vrot.slane %v1928, %v1934
          %1937 = vst.msk [vmem:[%s244] sm:$0x3] %vm297, %v1935
        $region52: #{tpu_custom_call.1} parent=35 // pred_fallthru
          _
        %s1938 = sand.u32 %s134, 1
        %s1939 = scalar_lea.sflag [#allocation7], %s1938
        %s1940 = sand.u32 %s134, 1
        %s1941 = smul.addr %s1940, 2
        %s1942 = scalar_lea.vmem [#allocation10], %s1941
        // Predicated region
        $region53: #{tpu_custom_call.1} parent=35 // pred_check
          %p1943 = pneg %p144
        $region54: #{tpu_custom_call.1} parent=35 // pred_check_branch
          %1945 = sbr.rel (%p1943) target = $region56
        $region55: #{tpu_custom_call.1} parent=35 // pred_region
          %s1947 = ssub.s32 32, 32
          %1948 = vsyncadd %s1939, %s1947
          %s1949 = smul.addr %s27, 2
          %s1950 = smul.addr %s1949, 16
          %s1951 = scalar_lea.hbm %s4, %s1950
          %s1953 = sshll.u32 %s1942, 4
          %s1954 = int_to_ptr.vmem [resolvable:$true] %s1953
          %1956 = dma.vmem_to_hbm [thread:$0]  %s1954, 32, %s1951, %s1939
        $region56: #{tpu_custom_call.1} parent=35 // pred_fallthru
          _
      $region36: #{tpu_custom_call.1} parent=5 // pred_fallthru
        _
      %p1957 = scmp.le.s32.totalorder 2, %s18
      // Predicated region
      $region57: #{tpu_custom_call.1} parent=5 // pred_check
        %p1958 = pneg %p1957
      $region58: #{tpu_custom_call.1} parent=5 // pred_check_branch
        %1960 = sbr.rel (%p1958) target = $region60
      $region59: #{tpu_custom_call.1} parent=5 // pred_region
        %s1961 = ssub.s32 %s18, 2
        // Predicated region
        $region61: #{tpu_custom_call.1} parent=59 // pred_check
          %p1962 = pneg %p150
        $region62: #{tpu_custom_call.1} parent=59 // pred_check_branch
          %1964 = sbr.rel (%p1962) target = $region64
        $region63: #{tpu_custom_call.1} parent=59 // pred_region
          %s1965 = sand.u32 %s135, 1
          %s1966 = scalar_lea.sflag [#allocation7], %s1965
          %s1967 = sand.u32 %s135, 1
          %s1968 = smul.addr %s1967, 2
          %s1969 = scalar_lea.vmem [#allocation10], %s1968
          %1970 = dma.done %s1966, 32
        $region64: #{tpu_custom_call.1} parent=59 // pred_fallthru
          _
      $region60: #{tpu_custom_call.1} parent=5 // pred_fallthru
        _
    $region6: #{tpu_custom_call.1} parent=1 // loop_footer
      %s22 = sadd.s32 1, %s18
    $region7: #{tpu_custom_call.1} parent=1 // loop_footer_branch
      %17 = sbr.rel target = $region3
    $region8: #{tpu_custom_call.1} parent=1 // loop_exit
      _
    %1971 = vsyncpa [#allocation6], 1
    %s1972 = scalar_lea.sflag [#allocation6], 1
    %1973 = vsyncpa %s1972, 1
    %1974 = vsyncpa [#allocation7], 1
    %s1975 = scalar_lea.sflag [#allocation7], 1
    %1976 = vsyncpa %s1975, 1
    %1977 = vsyncpa [#allocation8], 1
    %s1978 = scalar_lea.sflag [#allocation8], 1
    %1979 = vsyncpa %s1978, 1

</llo_original>
